<compile_context>
chip_gen: v7x
topology: tpu7x:2x2x1
jax: 0.10.0
libtpu: 0.0.40
codegen_flags: <defaults>
</compile_context>

<pallas_src>
import jax
import jax.numpy as jnp
from jax.experimental import pallas as pl
from jax.experimental.pallas import tpu as pltpu

HIDDEN = 1024


def _round_up(a, b):
    return (a + b - 1) // b * b


def da_ins_head_kernel(x_ref, w1_ref, b1_ref, w2_ref, b2_ref, w3_ref, b3_ref, o_ref):
    # fc1: cast the f32 x tile to bf16 on the VPU (hidden under MXU work), bf16 MXU
    # matmul with f32 accumulation.
    x_bf = x_ref[...].astype(jnp.bfloat16)
    h = jnp.dot(x_bf, w1_ref[...], preferred_element_type=jnp.float32)
    # Bias + ReLU in bf16 (native VPU dtype on v6e/v7x): halves the (tm, 1024)
    # intermediate footprint and vld/vst pressure between the two matmuls.
    h = jnp.maximum(h.astype(jnp.bfloat16) + b1_ref[...], 0.0)
    # dropout (eval mode) = identity
    # TODO(synk): training-mode dropout (p=0.5) would use pltpu.prng_seed + prng_random_bits.
    # fc2: bf16 MXU matmul, f32 accumulation.
    h = jnp.dot(h, w2_ref[...], preferred_element_type=jnp.float32)
    h = jnp.maximum(h.astype(jnp.bfloat16) + b2_ref[...], 0.0)
    # dropout (eval mode) = identity
    # fc3: (1, 1024) x (tm, 1024)^T -> (1, tm) lane-dense logit row on the MXU, so the
    # output store is unmasked and lane-dense.
    out = jax.lax.dot_general(
        w3_ref[...], h, (((1,), (1,)), ((), ())),
        preferred_element_type=jnp.float32)
    o_ref[...] = (out + b3_ref[0]).astype(o_ref.dtype)


def _choose_row_tile(n, tm_req):
    """Pick (row_tile, padded_row_count)."""
    n16 = _round_up(max(n, 1), 16)
    if n16 < 512:
        # Single full-block step: output block equals the full (1, n16) array, so the
        # lane dim does not need 128 alignment and padding waste stays minimal.
        return n16, n16
    tm_req = max(256, _round_up(tm_req, 256))
    # >= 2 grid steps (keeps both v7x TensorCores busy); tile lane/MXU aligned (x128).
    g = max(2, pl.cdiv(n16, tm_req))
    tile = _round_up(pl.cdiv(n16, g), 128)
    return tile, _round_up(n16, tile)


def da_ins_head(x, w1, b1, w2, b2, w3, b3, *, tm=512):
    """x: (N, C) float32. Returns (N, 1) float32 domain logits (inference mode)."""
    N, C = x.shape
    if N == 0:
        return jnp.zeros((0, 1), jnp.float32)

    tile, n_pad = _choose_row_tile(N, tm)
    c_pad = _round_up(C, 128)

    # Fuse row + channel zero-padding into one pass; x stays f32 (cast in-kernel).
    if (n_pad, c_pad) != (N, C):
        x_p = jnp.pad(x, ((0, n_pad - N), (0, c_pad - C)))
    else:
        x_p = x
    x_p = x_p.astype(jnp.float32)

    # Weights: bf16 MXU operands (one-time cast); w1's K dim padded along with x's C.
    w1_bf = (jnp.pad(w1, ((0, c_pad - C), (0, 0))) if c_pad != C else w1).astype(jnp.bfloat16)
    w2_bf = w2.astype(jnp.bfloat16)
    w3_row = w3.reshape(1, HIDDEN).astype(jnp.bfloat16)
    b1_2d = b1.reshape(1, HIDDEN).astype(jnp.bfloat16)
    b2_2d = b2.reshape(1, HIDDEN).astype(jnp.bfloat16)
    b3_s = b3.reshape(1).astype(jnp.float32)

    grid = (n_pad // tile,)

    flops = 2 * n_pad * (c_pad * HIDDEN + HIDDEN * HIDDEN + HIDDEN)
    bytes_accessed = (n_pad * c_pad * 4            # x (f32, read once)
                      + c_pad * HIDDEN * 2         # w1 (bf16, resident)
                      + HIDDEN * HIDDEN * 2        # w2 (bf16, resident)
                      + 4 * HIDDEN * 2             # b1 / b2 / w3 row
                      + n_pad * 4)                 # output logits
    cost = pl.CostEstimate(flops=flops, transcendentals=0,
                           bytes_accessed=bytes_accessed)

    # Explicit VMEM budget: double-buffered x tile + resident bf16 weights + f32/bf16
    # intermediates, with headroom. Keeps large-C / large-tile configs from tripping the
    # 16 MiB (v5e) scoped default while staying under v7x's 64 MiB physical VMEM.
    vmem_budget = (2 * tile * c_pad * 4            # x tile, double-buffered
                   + c_pad * HIDDEN * 2            # w1
                   + HIDDEN * HIDDEN * 2           # w2
                   + 8 * HIDDEN * 4                # small vectors
                   + 2 * tile * 4                  # output row, double-buffered
                   + 8 * tile * HIDDEN * 4)        # intermediates (generous)
    vmem_limit = int(min(max(vmem_budget, 32 * 1024 * 1024), 56 * 1024 * 1024))

    out = pl.pallas_call(
        da_ins_head_kernel,
        out_shape=jax.ShapeDtypeStruct((1, n_pad), jnp.float32),
        grid_spec=pltpu.PrefetchScalarGridSpec(
            num_scalar_prefetch=0,
            grid=grid,
            in_specs=[
                pl.BlockSpec((tile, c_pad), lambda i: (i, 0)),       # x tile (pipelined)
                pl.BlockSpec((c_pad, HIDDEN), lambda i: (0, 0)),     # w1 (resident)
                pl.BlockSpec((1, HIDDEN), lambda i: (0, 0)),         # b1
                pl.BlockSpec((HIDDEN, HIDDEN), lambda i: (0, 0)),    # w2 (resident)
                pl.BlockSpec((1, HIDDEN), lambda i: (0, 0)),         # b2
                pl.BlockSpec((1, HIDDEN), lambda i: (0, 0)),         # w3 row vector
                pl.BlockSpec(memory_space=pltpu.MemorySpace.SMEM),   # b3 scalar
            ],
            out_specs=pl.BlockSpec((1, tile), lambda i: (0, i)),     # lane-dense logit row
        ),
        compiler_params=pltpu.CompilerParams(
            dimension_semantics=("parallel",),
            vmem_limit_bytes=vmem_limit,
        ),
        cost_estimate=cost,
    )(x_p, w1_bf, b1_2d, w2_bf, b2_2d, w3_row, b3_s)

    return out[0, :N].reshape(N, 1)


def init_params(key, in_channels):
    """Deterministic init matching DAInsHead.__init__ (normal std / zero bias).
    Weights stored as (in_features, out_features)."""
    k1, k2, k3 = jax.random.split(key, 3)
    w1 = 0.01 * jax.random.normal(k1, (in_channels, HIDDEN), jnp.float32)
    b1 = jnp.zeros((HIDDEN,), jnp.float32)
    w2 = 0.01 * jax.random.normal(k2, (HIDDEN, HIDDEN), jnp.float32)
    b2 = jnp.zeros((HIDDEN,), jnp.float32)
    w3 = 0.05 * jax.random.normal(k3, (HIDDEN, 1), jnp.float32)
    b3 = jnp.zeros((1,), jnp.float32)
    return w1, b1, w2, b2, w3, b3


def da_ins_head_ref(x, w1, b1, w2, b2, w3, b3):
    h = jnp.maximum(x @ w1 + b1, 0.0)
    h = jnp.maximum(h @ w2 + b2, 0.0)
    return h @ w3 + b3


if __name__ == "__main__":
    key = jax.random.PRNGKey(0)
    kx, kx2, kp = jax.random.split(key, 3)

    # Small example: 20 instance features of 48 channels (N and C deliberately not
    # tile/lane multiples to exercise the pad/slice path; single-block grid).
    N, C = 20, 48
    x = jax.random.normal(kx, (N, C), jnp.float32)
    params = init_params(kp, C)

    out = jax.block_until_ready(da_ins_head(x, *params))
    ref = da_ins_head_ref(x, *params)
    assert out.shape == (N, 1)
    # bf16 matmul operands vs f32 reference -> loose tolerance.
    assert jnp.allclose(out, ref, atol=1e-2, rtol=5e-2), "mismatch vs reference (small)"

    # Larger example exercising the multi-step "parallel" grid / lane-dense tiled output.
    N2, C2 = 640, 256
    x2 = jax.random.normal(kx2, (N2, C2), jnp.float32)
    params2 = init_params(kp, C2)
    out2 = jax.block_until_ready(da_ins_head(x2, *params2))
    ref2 = da_ins_head_ref(x2, *params2)
    assert out2.shape == (N2, 1)
    assert jnp.allclose(out2, ref2, atol=1e-2, rtol=5e-2), "mismatch vs reference (large)"

    print("KERNEL_OK")
</pallas_src>

<mosaic_0001>
module attributes {stable_mosaic.version = 11 : i64} {
  func.func @da_ins_head_kernel(%arg0: i32, %arg1: memref<32x128xf32, #tpu.memory_space<vmem>>, %arg2: memref<128x1024xbf16, #tpu.memory_space<vmem>>, %arg3: memref<1x1024xbf16, #tpu.memory_space<vmem>>, %arg4: memref<1024x1024xbf16, #tpu.memory_space<vmem>>, %arg5: memref<1x1024xbf16, #tpu.memory_space<vmem>>, %arg6: memref<1x1024xbf16, #tpu.memory_space<vmem>>, %arg7: memref<1xf32, #tpu.memory_space<smem>>, %arg8: memref<1x32xf32, #tpu.memory_space<vmem>>) attributes {dimension_semantics = [#tpu.dimension_semantics<parallel>], iteration_bounds = array<i64: 1>, scalar_prefetch = 0 : i64, scratch_operands = 0 : i64, tpu.core_type = #tpu.core_type<tc>, window_params = [{transform_indices = @transform_0, window_bounds = array<i64: 32, 128>}, {pipeline_mode = #tpu.pipeline_mode<synchronous>, transform_indices = @transform_1, window_bounds = array<i64: 128, 1024>}, {pipeline_mode = #tpu.pipeline_mode<synchronous>, transform_indices = @transform_2, window_bounds = array<i64: 1, 1024>}, {pipeline_mode = #tpu.pipeline_mode<synchronous>, transform_indices = @transform_3, window_bounds = array<i64: 1024, 1024>}, {pipeline_mode = #tpu.pipeline_mode<synchronous>, transform_indices = @transform_4, window_bounds = array<i64: 1, 1024>}, {pipeline_mode = #tpu.pipeline_mode<synchronous>, transform_indices = @transform_5, window_bounds = array<i64: 1, 1024>}, {transform_indices = @transform_6, window_bounds = array<i64: 1>}, {transform_indices = @transform_7, window_bounds = array<i64: 1, 32>}]} {
    %c0 = arith.constant 0 : index
    %c0_0 = arith.constant 0 : index
    %0 = vector.load %arg1[%c0, %c0_0] : memref<32x128xf32, #tpu.memory_space<vmem>>, vector<32x128xf32>
    %1 = arith.truncf %0 : vector<32x128xf32> to vector<32x128xbf16>
    %c0_1 = arith.constant 0 : index
    %c0_2 = arith.constant 0 : index
    %2 = vector.load %arg2[%c0_1, %c0_2] : memref<128x1024xbf16, #tpu.memory_space<vmem>>, vector<128x1024xbf16>
    %cst = arith.constant dense<0.000000e+00> : vector<32x1024xf32>
    %3 = tpu.matmul %1, %2, %cst {dimension_numbers = #tpu.dot_dimension_numbers<[1], [0], [0], [1], [0, 0, 1, 1], [], []>} : vector<32x128xbf16>, vector<128x1024xbf16>, vector<32x1024xf32> -> vector<32x1024xf32>
    %4 = arith.truncf %3 : vector<32x1024xf32> to vector<32x1024xbf16>
    %c0_3 = arith.constant 0 : index
    %c0_4 = arith.constant 0 : index
    %5 = vector.load %arg3[%c0_3, %c0_4] : memref<1x1024xbf16, #tpu.memory_space<vmem>>, vector<1x1024xbf16>
    %6 = vector.broadcast %5 : vector<1x1024xbf16> to vector<32x1024xbf16>
    %7 = arith.addf %4, %6 : vector<32x1024xbf16>
    %cst_5 = arith.constant 0.000000e+00 : bf16
    %8 = vector.broadcast %cst_5 : bf16 to vector<32x1024xbf16>
    %9 = arith.maximumf %7, %8 : vector<32x1024xbf16>
    %c0_6 = arith.constant 0 : index
    %c0_7 = arith.constant 0 : index
    %10 = vector.load %arg4[%c0_6, %c0_7] : memref<1024x1024xbf16, #tpu.memory_space<vmem>>, vector<1024x1024xbf16>
    %cst_8 = arith.constant dense<0.000000e+00> : vector<32x1024xf32>
    %11 = tpu.matmul %9, %10, %cst_8 {dimension_numbers = #tpu.dot_dimension_numbers<[1], [0], [0], [1], [0, 0, 1, 1], [], []>} : vector<32x1024xbf16>, vector<1024x1024xbf16>, vector<32x1024xf32> -> vector<32x1024xf32>
    %12 = arith.truncf %11 : vector<32x1024xf32> to vector<32x1024xbf16>
    %c0_9 = arith.constant 0 : index
    %c0_10 = arith.constant 0 : index
    %13 = vector.load %arg5[%c0_9, %c0_10] : memref<1x1024xbf16, #tpu.memory_space<vmem>>, vector<1x1024xbf16>
    %14 = vector.broadcast %13 : vector<1x1024xbf16> to vector<32x1024xbf16>
    %15 = arith.addf %12, %14 : vector<32x1024xbf16>
    %cst_11 = arith.constant 0.000000e+00 : bf16
    %16 = vector.broadcast %cst_11 : bf16 to vector<32x1024xbf16>
    %17 = arith.maximumf %15, %16 : vector<32x1024xbf16>
    %c0_12 = arith.constant 0 : index
    %c0_13 = arith.constant 0 : index
    %18 = vector.load %arg6[%c0_12, %c0_13] : memref<1x1024xbf16, #tpu.memory_space<vmem>>, vector<1x1024xbf16>
    %cst_14 = arith.constant dense<0.000000e+00> : vector<1x32xf32>
    %19 = tpu.matmul %18, %17, %cst_14 {dimension_numbers = #tpu.dot_dimension_numbers<[1], [1], [0], [0], [0, 0, 1, 0], [], []>} : vector<1x1024xbf16>, vector<32x1024xbf16>, vector<1x32xf32> -> vector<1x32xf32>
    %c0_15 = arith.constant 0 : index
    %20 = memref.load %arg7[%c0_15] : memref<1xf32, #tpu.memory_space<smem>>
    %21 = vector.broadcast %20 : f32 to vector<1x32xf32>
    %22 = arith.addf %19, %21 : vector<1x32xf32>
    %c0_16 = arith.constant 0 : index
    %c0_17 = arith.constant 0 : index
    %23 = vector.load %arg8[%c0_16, %c0_17] : memref<1x32xf32, #tpu.memory_space<vmem>>, vector<1x32xf32>
    tpu.vector_store %arg8[%c0_16, %c0_17], %22 {strides = array<i32>} : memref<1x32xf32, #tpu.memory_space<vmem>>, vector<1x32xf32>,
    return
  }
  func.func @transform_0(%arg0: i32) -> (i32, i32) {
    %c0_i32 = arith.constant 0 : i32
    %c0_i32_0 = arith.constant 0 : i32
    return %arg0, %c0_i32 : i32, i32
  }
  func.func @transform_1(%arg0: i32) -> (i32, i32) {
    %c0_i32 = arith.constant 0 : i32
    %c0_i32_0 = arith.constant 0 : i32
    %c0_i32_1 = arith.constant 0 : i32
    return %c0_i32, %c0_i32_0 : i32, i32
  }
  func.func @transform_2(%arg0: i32) -> (i32, i32) {
    %c0_i32 = arith.constant 0 : i32
    %c0_i32_0 = arith.constant 0 : i32
    %c0_i32_1 = arith.constant 0 : i32
    return %c0_i32, %c0_i32_0 : i32, i32
  }
  func.func @transform_3(%arg0: i32) -> (i32, i32) {
    %c0_i32 = arith.constant 0 : i32
    %c0_i32_0 = arith.constant 0 : i32
    %c0_i32_1 = arith.constant 0 : i32
    return %c0_i32, %c0_i32_0 : i32, i32
  }
  func.func @transform_4(%arg0: i32) -> (i32, i32) {
    %c0_i32 = arith.constant 0 : i32
    %c0_i32_0 = arith.constant 0 : i32
    %c0_i32_1 = arith.constant 0 : i32
    return %c0_i32, %c0_i32_0 : i32, i32
  }
  func.func @transform_5(%arg0: i32) -> (i32, i32) {
    %c0_i32 = arith.constant 0 : i32
    %c0_i32_0 = arith.constant 0 : i32
    %c0_i32_1 = arith.constant 0 : i32
    return %c0_i32, %c0_i32_0 : i32, i32
  }
  func.func @transform_6(%arg0: i32) -> i32 {
    %c0_i32 = arith.constant 0 : i32
    %c0_i32_0 = arith.constant 0 : i32
    return %c0_i32 : i32
  }
  func.func @transform_7(%arg0: i32) -> (i32, i32) {
    %c0_i32 = arith.constant 0 : i32
    %c0_i32_0 = arith.constant 0 : i32
    return %c0_i32, %arg0 : i32, i32
  }
}

</mosaic_0001>

<llo_original>
// kernel: tpu_custom_call.1
$region0: #{tpu_custom_call.1}
  #allocation0 [shape = 'u32[]', space=smem, size = 0x4, offset = 0x4, fixed_abs, tag = 'smem constant byte address 0x4 - core index']
  #allocation1 [shape = 'u32[144,128]{1,0:T(1,128)}', space=vmem, size = 0x12000, scoped, tag = 'internal scratch']
  #allocation2 [shape = 'f32[1]{0:T(128)S(6)}', space=smem, size = 0x200, scoped, tag = 'scoped memory for tpu_custom_call.1']
  %s0 = inlined_call_operand.hbm [shape: f32[32,128], index: 0, kind: input, shape index: {}]
  %s1 = inlined_call_operand.hbm [shape: bf16[128,1024], index: 1, kind: input, shape index: {}]
  %s2 = inlined_call_operand.hbm [shape: bf16[1,1024], index: 2, kind: input, shape index: {}]
  %s3 = inlined_call_operand.hbm [shape: bf16[1024,1024], index: 3, kind: input, shape index: {}]
  %s4 = inlined_call_operand.hbm [shape: bf16[1,1024], index: 4, kind: input, shape index: {}]
  %s5 = inlined_call_operand.hbm [shape: bf16[1,1024], index: 5, kind: input, shape index: {}]
  %s6 = inlined_call_operand.<no memory space> [shape: f32[1], index: 6, kind: input, shape index: {}]
  %s7 = inlined_call_operand.hbm [shape: f32[1,32], index: 7, kind: output, shape index: {}]
  %s8 = sld [smem:[#allocation0]]
  $region62: #{tpu_custom_call.1} parent=0
    _
  %s10 = ssub.s32 1, %s8
  %s11 = scalar_select 0, %s10, %s8
  %12 = sst [smem:[#allocation2]] %s6
  $region1: #{tpu_custom_call.1} parent=0
    #allocation3 [shape = 'u8[16384]{0}', space=vmem, size = 0x4000, scoped, tag = 'input window, operand 0, single buffered']
    #allocation4 [shape = 's32[1]{0}', space=sflag, size = 0x4, scoped, tag = 'scoped memory for tpu_custom_call.1']
    #allocation5 [shape = 's32[1]{0}', space=sflag, size = 0x4, scoped, tag = 'scoped memory for tpu_custom_call.1']
    #allocation6 [shape = 'u8[262144]{0}', space=vmem, size = 0x40000, scoped, tag = 'input window, operand 1, single buffered']
    #allocation7 [shape = 's32[1]{0}', space=sflag, size = 0x4, scoped, tag = 'scoped memory for tpu_custom_call.1']
    #allocation8 [shape = 'u8[4096]{0}', space=vmem, size = 0x1000, scoped, tag = 'input window, operand 2, single buffered']
    #allocation9 [shape = 'u8[2097152]{0}', space=vmem, size = 0x200000, scoped, tag = 'input window, operand 3, single buffered']
    #allocation10 [shape = 's32[1]{0}', space=sflag, size = 0x4, scoped, tag = 'scoped memory for tpu_custom_call.1']
    #allocation11 [shape = 'u8[4096]{0}', space=vmem, size = 0x1000, scoped, tag = 'input window, operand 4, single buffered']
    #allocation12 [shape = 'u8[4096]{0}', space=vmem, size = 0x1000, scoped, tag = 'input window, operand 5, single buffered']
    #allocation13 [shape = 's32[1]{0}', space=sflag, size = 0x4, scoped, tag = 'scoped memory for tpu_custom_call.1']
    #allocation14 [shape = 'u8[512]{0}', space=vmem, size = 0x400, scoped, tag = 'output window, operand 0, single buffered']
    %13 = vsyncpa [#allocation4], 0
    %14 = vsyncpa [#allocation7], 0
    %15 = vsyncpa [#allocation10], 0
    %16 = vsyncpa [#allocation13], 0
    %17 = vsyncpa [#allocation5], 0
    // Predicated region
    $region2: #{tpu_custom_call.1} parent=1 // pred_check
      _
    $region3: #{tpu_custom_call.1} parent=1 // pred_check_branch
      %19 = sbr.rel (0) target = $region5
    $region4: #{tpu_custom_call.1} parent=1 // pred_region
      %s21 = ssub.s32 512, 512
      %22 = vsyncadd [#allocation4], %s21
      %s23 = sshll.u32 [#allocation3], 4
      %s24 = int_to_ptr.vmem [resolvable:$true] %s23
      %29 = dma.hbm_to_vmem [thread:$0]  %s0, 512, %s24, [#allocation4], 128, 128, 8
    $region5: #{tpu_custom_call.1} parent=1 // pred_fallthru
      _
    // Predicated region
    $region6: #{tpu_custom_call.1} parent=1 // pred_check
      _
    $region7: #{tpu_custom_call.1} parent=1 // pred_check_branch
      %31 = sbr.rel (0) target = $region9
    $region8: #{tpu_custom_call.1} parent=1 // pred_region
      %s33 = ssub.s32 8192, 8192
      %34 = vsyncadd [#allocation7], %s33
      %s35 = sshll.u32 [#allocation6], 4
      %s36 = int_to_ptr.vmem [resolvable:$true] %s35
      %41 = dma.hbm_to_vmem [thread:$0]  %s1, 8192, %s36, [#allocation7], 512, 512, 32
    $region9: #{tpu_custom_call.1} parent=1 // pred_fallthru
      _
    // Predicated region
    $region10: #{tpu_custom_call.1} parent=1 // pred_check
      _
    $region11: #{tpu_custom_call.1} parent=1 // pred_check_branch
      %43 = sbr.rel (0) target = $region13
    $region12: #{tpu_custom_call.1} parent=1 // pred_region
      %s45 = ssub.s32 128, 128
      %46 = vsyncadd [#allocation7], %s45
      %s48 = sshll.u32 [#allocation8], 4
      %s49 = int_to_ptr.vmem [resolvable:$true] %s48
      %51 = dma.hbm_to_vmem [thread:$0]  %s2, 128, %s49, [#allocation7]
    $region13: #{tpu_custom_call.1} parent=1 // pred_fallthru
      _
    // Predicated region
    $region14: #{tpu_custom_call.1} parent=1 // pred_check
      _
    $region15: #{tpu_custom_call.1} parent=1 // pred_check_branch
      %53 = sbr.rel (0) target = $region17
    $region16: #{tpu_custom_call.1} parent=1 // pred_region
      %s55 = ssub.s32 65536, 65536
      %56 = vsyncadd [#allocation10], %s55
      %s57 = sshll.u32 [#allocation9], 4
      %s58 = int_to_ptr.vmem [resolvable:$true] %s57
      %63 = dma.hbm_to_vmem [thread:$0]  %s3, 65536, %s58, [#allocation10], 512, 512, 32
    $region17: #{tpu_custom_call.1} parent=1 // pred_fallthru
      _
    // Predicated region
    $region18: #{tpu_custom_call.1} parent=1 // pred_check
      _
    $region19: #{tpu_custom_call.1} parent=1 // pred_check_branch
      %65 = sbr.rel (0) target = $region21
    $region20: #{tpu_custom_call.1} parent=1 // pred_region
      %s67 = ssub.s32 128, 128
      %68 = vsyncadd [#allocation10], %s67
      %s70 = sshll.u32 [#allocation11], 4
      %s71 = int_to_ptr.vmem [resolvable:$true] %s70
      %73 = dma.hbm_to_vmem [thread:$0]  %s4, 128, %s71, [#allocation10]
    $region21: #{tpu_custom_call.1} parent=1 // pred_fallthru
      _
    // Predicated region
    $region22: #{tpu_custom_call.1} parent=1 // pred_check
      _
    $region23: #{tpu_custom_call.1} parent=1 // pred_check_branch
      %75 = sbr.rel (0) target = $region25
    $region24: #{tpu_custom_call.1} parent=1 // pred_region
      %s77 = ssub.s32 128, 128
      %78 = vsyncadd [#allocation13], %s77
      %s80 = sshll.u32 [#allocation12], 4
      %s81 = int_to_ptr.vmem [resolvable:$true] %s80
      %83 = dma.hbm_to_vmem [thread:$0]  %s5, 128, %s81, [#allocation13]
    $region25: #{tpu_custom_call.1} parent=1 // pred_fallthru
      _
    // Predicated region
    $region26: #{tpu_custom_call.1} parent=1 // pred_check
      _
    $region27: #{tpu_custom_call.1} parent=1 // pred_check_branch
      %85 = sbr.rel (0) target = $region29
    $region28: #{tpu_custom_call.1} parent=1 // pred_region
      _
    $region29: #{tpu_custom_call.1} parent=1 // pred_fallthru
      _
    // Predicated region
    $region30: #{tpu_custom_call.1} parent=1 // pred_check
      _
    $region31: #{tpu_custom_call.1} parent=1 // pred_check_branch
      %87 = sbr.rel (0) target = $region33
    $region32: #{tpu_custom_call.1} parent=1 // pred_region
      %88 = dma.done [#allocation4], 512
    $region33: #{tpu_custom_call.1} parent=1 // pred_fallthru
      _
    // Predicated region
    $region34: #{tpu_custom_call.1} parent=1 // pred_check
      _
    $region35: #{tpu_custom_call.1} parent=1 // pred_check_branch
      %90 = sbr.rel (0) target = $region37
    $region36: #{tpu_custom_call.1} parent=1 // pred_region
      %91 = dma.done [#allocation7], 8192
    $region37: #{tpu_custom_call.1} parent=1 // pred_fallthru
      _
    // Predicated region
    $region38: #{tpu_custom_call.1} parent=1 // pred_check
      _
    $region39: #{tpu_custom_call.1} parent=1 // pred_check_branch
      %93 = sbr.rel (0) target = $region41
    $region40: #{tpu_custom_call.1} parent=1 // pred_region
      %94 = dma.done [#allocation7], 128
    $region41: #{tpu_custom_call.1} parent=1 // pred_fallthru
      _
    // Predicated region
    $region42: #{tpu_custom_call.1} parent=1 // pred_check
      _
    $region43: #{tpu_custom_call.1} parent=1 // pred_check_branch
      %96 = sbr.rel (0) target = $region45
    $region44: #{tpu_custom_call.1} parent=1 // pred_region
      %97 = dma.done [#allocation10], 65536
    $region45: #{tpu_custom_call.1} parent=1 // pred_fallthru
      _
    // Predicated region
    $region46: #{tpu_custom_call.1} parent=1 // pred_check
      _
    $region47: #{tpu_custom_call.1} parent=1 // pred_check_branch
      %99 = sbr.rel (0) target = $region49
    $region48: #{tpu_custom_call.1} parent=1 // pred_region
      %100 = dma.done [#allocation10], 128
    $region49: #{tpu_custom_call.1} parent=1 // pred_fallthru
      _
    // Predicated region
    $region50: #{tpu_custom_call.1} parent=1 // pred_check
      _
    $region51: #{tpu_custom_call.1} parent=1 // pred_check_branch
      %102 = sbr.rel (0) target = $region53
    $region52: #{tpu_custom_call.1} parent=1 // pred_region
      %103 = dma.done [#allocation13], 128
    $region53: #{tpu_custom_call.1} parent=1 // pred_fallthru
      _
    %v105 = vld [vmem:[#allocation3] sm:$0xff]
    %v106 = vld [vmem:[#allocation3 + $0x8] sm:$0xff]
    %v107 = vld [vmem:[#allocation3 + $0x10] sm:$0xff]
    %v108 = vld [vmem:[#allocation3 + $0x18] sm:$0xff]
    %v109 = vpack.c.bf16 %v106, %v105
    %v110 = vpack.c.bf16 %v108, %v107
    %v111 = vld [vmem:[#allocation6] sm:$0xff]
    %v112 = vld [vmem:[#allocation6 + $0x8] sm:$0xff]
    %v113 = vld [vmem:[#allocation6 + $0x10] sm:$0xff]
    %v114 = vld [vmem:[#allocation6 + $0x18] sm:$0xff]
    %v115 = vld [vmem:[#allocation6 + $0x20] sm:$0xff]
    %v116 = vld [vmem:[#allocation6 + $0x28] sm:$0xff]
    %v117 = vld [vmem:[#allocation6 + $0x30] sm:$0xff]
    %v118 = vld [vmem:[#allocation6 + $0x38] sm:$0xff]
    %v119 = vld [vmem:[#allocation6 + $0x40] sm:$0xff]
    %v120 = vld [vmem:[#allocation6 + $0x48] sm:$0xff]
    %v121 = vld [vmem:[#allocation6 + $0x50] sm:$0xff]
    %v122 = vld [vmem:[#allocation6 + $0x58] sm:$0xff]
    %v123 = vld [vmem:[#allocation6 + $0x60] sm:$0xff]
    %v124 = vld [vmem:[#allocation6 + $0x68] sm:$0xff]
    %v125 = vld [vmem:[#allocation6 + $0x70] sm:$0xff]
    %v126 = vld [vmem:[#allocation6 + $0x78] sm:$0xff]
    %v127 = vld [vmem:[#allocation6 + $0x80] sm:$0xff]
    %v128 = vld [vmem:[#allocation6 + $0x88] sm:$0xff]
    %v129 = vld [vmem:[#allocation6 + $0x90] sm:$0xff]
    %v130 = vld [vmem:[#allocation6 + $0x98] sm:$0xff]
    %v131 = vld [vmem:[#allocation6 + $0xa0] sm:$0xff]
    %v132 = vld [vmem:[#allocation6 + $0xa8] sm:$0xff]
    %v133 = vld [vmem:[#allocation6 + $0xb0] sm:$0xff]
    %v134 = vld [vmem:[#allocation6 + $0xb8] sm:$0xff]
    %v135 = vld [vmem:[#allocation6 + $0xc0] sm:$0xff]
    %v136 = vld [vmem:[#allocation6 + $0xc8] sm:$0xff]
    %v137 = vld [vmem:[#allocation6 + $0xd0] sm:$0xff]
    %v138 = vld [vmem:[#allocation6 + $0xd8] sm:$0xff]
    %v139 = vld [vmem:[#allocation6 + $0xe0] sm:$0xff]
    %v140 = vld [vmem:[#allocation6 + $0xe8] sm:$0xff]
    %v141 = vld [vmem:[#allocation6 + $0xf0] sm:$0xff]
    %v142 = vld [vmem:[#allocation6 + $0xf8] sm:$0xff]
    %v143 = vld [vmem:[#allocation6 + $0x100] sm:$0xff]
    %v144 = vld [vmem:[#allocation6 + $0x108] sm:$0xff]
    %v145 = vld [vmem:[#allocation6 + $0x110] sm:$0xff]
    %v146 = vld [vmem:[#allocation6 + $0x118] sm:$0xff]
    %v147 = vld [vmem:[#allocation6 + $0x120] sm:$0xff]
    %v148 = vld [vmem:[#allocation6 + $0x128] sm:$0xff]
    %v149 = vld [vmem:[#allocation6 + $0x130] sm:$0xff]
    %v150 = vld [vmem:[#allocation6 + $0x138] sm:$0xff]
    %v151 = vld [vmem:[#allocation6 + $0x140] sm:$0xff]
    %v152 = vld [vmem:[#allocation6 + $0x148] sm:$0xff]
    %v153 = vld [vmem:[#allocation6 + $0x150] sm:$0xff]
    %v154 = vld [vmem:[#allocation6 + $0x158] sm:$0xff]
    %v155 = vld [vmem:[#allocation6 + $0x160] sm:$0xff]
    %v156 = vld [vmem:[#allocation6 + $0x168] sm:$0xff]
    %v157 = vld [vmem:[#allocation6 + $0x170] sm:$0xff]
    %v158 = vld [vmem:[#allocation6 + $0x178] sm:$0xff]
    %v159 = vld [vmem:[#allocation6 + $0x180] sm:$0xff]
    %v160 = vld [vmem:[#allocation6 + $0x188] sm:$0xff]
    %v161 = vld [vmem:[#allocation6 + $0x190] sm:$0xff]
    %v162 = vld [vmem:[#allocation6 + $0x198] sm:$0xff]
    %v163 = vld [vmem:[#allocation6 + $0x1a0] sm:$0xff]
    %v164 = vld [vmem:[#allocation6 + $0x1a8] sm:$0xff]
    %v165 = vld [vmem:[#allocation6 + $0x1b0] sm:$0xff]
    %v166 = vld [vmem:[#allocation6 + $0x1b8] sm:$0xff]
    %v167 = vld [vmem:[#allocation6 + $0x1c0] sm:$0xff]
    %v168 = vld [vmem:[#allocation6 + $0x1c8] sm:$0xff]
    %v169 = vld [vmem:[#allocation6 + $0x1d0] sm:$0xff]
    %v170 = vld [vmem:[#allocation6 + $0x1d8] sm:$0xff]
    %v171 = vld [vmem:[#allocation6 + $0x1e0] sm:$0xff]
    %v172 = vld [vmem:[#allocation6 + $0x1e8] sm:$0xff]
    %v173 = vld [vmem:[#allocation6 + $0x1f0] sm:$0xff]
    %v174 = vld [vmem:[#allocation6 + $0x1f8] sm:$0xff]
    %v239 = vunpack.c.l.b16 %v111
    %v240 = vunpack.c.h.b16 %v111
    %v241 = vunpack.c.l.b16 %v112
    %v242 = vunpack.c.h.b16 %v112
    %v243 = vunpack.c.l.b16 %v113
    %v244 = vunpack.c.h.b16 %v113
    %v245 = vunpack.c.l.b16 %v114
    %v246 = vunpack.c.h.b16 %v114
    %v247 = vunpack.c.l.b16 %v115
    %v248 = vunpack.c.h.b16 %v115
    %v249 = vunpack.c.l.b16 %v116
    %v250 = vunpack.c.h.b16 %v116
    %v251 = vunpack.c.l.b16 %v117
    %v252 = vunpack.c.h.b16 %v117
    %v253 = vunpack.c.l.b16 %v118
    %v254 = vunpack.c.h.b16 %v118
    %v255 = vunpack.c.l.b16 %v119
    %v256 = vunpack.c.h.b16 %v119
    %v257 = vunpack.c.l.b16 %v120
    %v258 = vunpack.c.h.b16 %v120
    %v259 = vunpack.c.l.b16 %v121
    %v260 = vunpack.c.h.b16 %v121
    %v261 = vunpack.c.l.b16 %v122
    %v262 = vunpack.c.h.b16 %v122
    %v263 = vunpack.c.l.b16 %v123
    %v264 = vunpack.c.h.b16 %v123
    %v265 = vunpack.c.l.b16 %v124
    %v266 = vunpack.c.h.b16 %v124
    %v267 = vunpack.c.l.b16 %v125
    %v268 = vunpack.c.h.b16 %v125
    %v269 = vunpack.c.l.b16 %v126
    %v270 = vunpack.c.h.b16 %v126
    %v271 = vunpack.c.l.b16 %v127
    %v272 = vunpack.c.h.b16 %v127
    %v273 = vunpack.c.l.b16 %v128
    %v274 = vunpack.c.h.b16 %v128
    %v275 = vunpack.c.l.b16 %v129
    %v276 = vunpack.c.h.b16 %v129
    %v277 = vunpack.c.l.b16 %v130
    %v278 = vunpack.c.h.b16 %v130
    %v279 = vunpack.c.l.b16 %v131
    %v280 = vunpack.c.h.b16 %v131
    %v281 = vunpack.c.l.b16 %v132
    %v282 = vunpack.c.h.b16 %v132
    %v283 = vunpack.c.l.b16 %v133
    %v284 = vunpack.c.h.b16 %v133
    %v285 = vunpack.c.l.b16 %v134
    %v286 = vunpack.c.h.b16 %v134
    %v287 = vunpack.c.l.b16 %v135
    %v288 = vunpack.c.h.b16 %v135
    %v289 = vunpack.c.l.b16 %v136
    %v290 = vunpack.c.h.b16 %v136
    %v291 = vunpack.c.l.b16 %v137
    %v292 = vunpack.c.h.b16 %v137
    %v293 = vunpack.c.l.b16 %v138
    %v294 = vunpack.c.h.b16 %v138
    %v295 = vunpack.c.l.b16 %v139
    %v296 = vunpack.c.h.b16 %v139
    %v297 = vunpack.c.l.b16 %v140
    %v298 = vunpack.c.h.b16 %v140
    %v299 = vunpack.c.l.b16 %v141
    %v300 = vunpack.c.h.b16 %v141
    %v301 = vunpack.c.l.b16 %v142
    %v302 = vunpack.c.h.b16 %v142
    %v303 = vunpack.c.l.b16 %v143
    %v304 = vunpack.c.h.b16 %v143
    %v305 = vunpack.c.l.b16 %v144
    %v306 = vunpack.c.h.b16 %v144
    %v307 = vunpack.c.l.b16 %v145
    %v308 = vunpack.c.h.b16 %v145
    %v309 = vunpack.c.l.b16 %v146
    %v310 = vunpack.c.h.b16 %v146
    %v311 = vunpack.c.l.b16 %v147
    %v312 = vunpack.c.h.b16 %v147
    %v313 = vunpack.c.l.b16 %v148
    %v314 = vunpack.c.h.b16 %v148
    %v315 = vunpack.c.l.b16 %v149
    %v316 = vunpack.c.h.b16 %v149
    %v317 = vunpack.c.l.b16 %v150
    %v318 = vunpack.c.h.b16 %v150
    %v319 = vunpack.c.l.b16 %v151
    %v320 = vunpack.c.h.b16 %v151
    %v321 = vunpack.c.l.b16 %v152
    %v322 = vunpack.c.h.b16 %v152
    %v323 = vunpack.c.l.b16 %v153
    %v324 = vunpack.c.h.b16 %v153
    %v325 = vunpack.c.l.b16 %v154
    %v326 = vunpack.c.h.b16 %v154
    %v327 = vunpack.c.l.b16 %v155
    %v328 = vunpack.c.h.b16 %v155
    %v329 = vunpack.c.l.b16 %v156
    %v330 = vunpack.c.h.b16 %v156
    %v331 = vunpack.c.l.b16 %v157
    %v332 = vunpack.c.h.b16 %v157
    %v333 = vunpack.c.l.b16 %v158
    %v334 = vunpack.c.h.b16 %v158
    %v335 = vunpack.c.l.b16 %v159
    %v336 = vunpack.c.h.b16 %v159
    %v337 = vunpack.c.l.b16 %v160
    %v338 = vunpack.c.h.b16 %v160
    %v339 = vunpack.c.l.b16 %v161
    %v340 = vunpack.c.h.b16 %v161
    %v341 = vunpack.c.l.b16 %v162
    %v342 = vunpack.c.h.b16 %v162
    %v343 = vunpack.c.l.b16 %v163
    %v344 = vunpack.c.h.b16 %v163
    %v345 = vunpack.c.l.b16 %v164
    %v346 = vunpack.c.h.b16 %v164
    %v347 = vunpack.c.l.b16 %v165
    %v348 = vunpack.c.h.b16 %v165
    %v349 = vunpack.c.l.b16 %v166
    %v350 = vunpack.c.h.b16 %v166
    %v351 = vunpack.c.l.b16 %v167
    %v352 = vunpack.c.h.b16 %v167
    %v353 = vunpack.c.l.b16 %v168
    %v354 = vunpack.c.h.b16 %v168
    %v355 = vunpack.c.l.b16 %v169
    %v356 = vunpack.c.h.b16 %v169
    %v357 = vunpack.c.l.b16 %v170
    %v358 = vunpack.c.h.b16 %v170
    %v359 = vunpack.c.l.b16 %v171
    %v360 = vunpack.c.h.b16 %v171
    %v361 = vunpack.c.l.b16 %v172
    %v362 = vunpack.c.h.b16 %v172
    %v363 = vunpack.c.l.b16 %v173
    %v364 = vunpack.c.h.b16 %v173
    %v365 = vunpack.c.l.b16 %v174
    %v366 = vunpack.c.h.b16 %v174
    %v367 = vpack.c.b16 %v247, %v239
    %v368 = vpack.c.b16 %v248, %v240
    %v369 = vpack.c.b16 %v249, %v241
    %v370 = vpack.c.b16 %v250, %v242
    %v371 = vpack.c.b16 %v251, %v243
    %v372 = vpack.c.b16 %v252, %v244
    %v373 = vpack.c.b16 %v253, %v245
    %v374 = vpack.c.b16 %v254, %v246
    %v375 = vpack.c.b16 %v263, %v255
    %v376 = vpack.c.b16 %v264, %v256
    %v377 = vpack.c.b16 %v265, %v257
    %v378 = vpack.c.b16 %v266, %v258
    %v379 = vpack.c.b16 %v267, %v259
    %v380 = vpack.c.b16 %v268, %v260
    %v381 = vpack.c.b16 %v269, %v261
    %v382 = vpack.c.b16 %v270, %v262
    %v383 = vpack.c.b16 %v279, %v271
    %v384 = vpack.c.b16 %v280, %v272
    %v385 = vpack.c.b16 %v281, %v273
    %v386 = vpack.c.b16 %v282, %v274
    %v387 = vpack.c.b16 %v283, %v275
    %v388 = vpack.c.b16 %v284, %v276
    %v389 = vpack.c.b16 %v285, %v277
    %v390 = vpack.c.b16 %v286, %v278
    %v391 = vpack.c.b16 %v295, %v287
    %v392 = vpack.c.b16 %v296, %v288
    %v393 = vpack.c.b16 %v297, %v289
    %v394 = vpack.c.b16 %v298, %v290
    %v395 = vpack.c.b16 %v299, %v291
    %v396 = vpack.c.b16 %v300, %v292
    %v397 = vpack.c.b16 %v301, %v293
    %v398 = vpack.c.b16 %v302, %v294
    %v399 = vpack.c.b16 %v311, %v303
    %v400 = vpack.c.b16 %v312, %v304
    %v401 = vpack.c.b16 %v313, %v305
    %v402 = vpack.c.b16 %v314, %v306
    %v403 = vpack.c.b16 %v315, %v307
    %v404 = vpack.c.b16 %v316, %v308
    %v405 = vpack.c.b16 %v317, %v309
    %v406 = vpack.c.b16 %v318, %v310
    %v407 = vpack.c.b16 %v327, %v319
    %v408 = vpack.c.b16 %v328, %v320
    %v409 = vpack.c.b16 %v329, %v321
    %v410 = vpack.c.b16 %v330, %v322
    %v411 = vpack.c.b16 %v331, %v323
    %v412 = vpack.c.b16 %v332, %v324
    %v413 = vpack.c.b16 %v333, %v325
    %v414 = vpack.c.b16 %v334, %v326
    %v415 = vpack.c.b16 %v343, %v335
    %v416 = vpack.c.b16 %v344, %v336
    %v417 = vpack.c.b16 %v345, %v337
    %v418 = vpack.c.b16 %v346, %v338
    %v419 = vpack.c.b16 %v347, %v339
    %v420 = vpack.c.b16 %v348, %v340
    %v421 = vpack.c.b16 %v349, %v341
    %v422 = vpack.c.b16 %v350, %v342
    %v423 = vpack.c.b16 %v359, %v351
    %v424 = vpack.c.b16 %v360, %v352
    %v425 = vpack.c.b16 %v361, %v353
    %v426 = vpack.c.b16 %v362, %v354
    %v427 = vpack.c.b16 %v363, %v355
    %v428 = vpack.c.b16 %v364, %v356
    %v429 = vpack.c.b16 %v365, %v357
    %v430 = vpack.c.b16 %v366, %v358
    %495 = vmatprep.subr.bf16.mxu0 %v368
    %496 = vmatpush1.bf16.msra.mxu0 %v367
    %497 = vmatprep.subr.bf16.mxu0 %v376
    %498 = vmatpush1.bf16.msra.mxu0 %v375
    %499 = vmatprep.subr.bf16.mxu0 %v384
    %500 = vmatpush1.bf16.msra.mxu0 %v383
    %501 = vmatprep.subr.bf16.mxu0 %v392
    %502 = vmatpush1.bf16.msra.mxu0 %v391
    %503 = vmatprep.subr.bf16.mxu0 %v400
    %504 = vmatpush1.bf16.msra.mxu0 %v399
    %505 = vmatprep.subr.bf16.mxu0 %v408
    %506 = vmatpush1.bf16.msra.mxu0 %v407
    %507 = vmatprep.subr.bf16.mxu0 %v416
    %508 = vmatpush1.bf16.msra.mxu0 %v415
    %509 = vmatprep.subr.bf16.mxu0 %v424
    %510 = vmatpush1.bf16.msra.mxu0 %v423
    %511 = vmatprep.subr.bf16.mxu0 0
    %512 = vmatpush1.bf16.msra.mxu0 0
    %513 = vmatprep.subr.bf16.mxu0 0
    %514 = vmatpush1.bf16.msra.mxu0 0
    %515 = vmatprep.subr.bf16.mxu0 0
    %516 = vmatpush1.bf16.msra.mxu0 0
    %517 = vmatprep.subr.bf16.mxu0 0
    %518 = vmatpush1.bf16.msra.mxu0 0
    %519 = vmatprep.subr.bf16.mxu0 0
    %520 = vmatpush1.bf16.msra.mxu0 0
    %521 = vmatprep.subr.bf16.mxu0 0
    %522 = vmatpush1.bf16.msra.mxu0 0
    %523 = vmatprep.subr.bf16.mxu0 0
    %524 = vmatpush1.bf16.msra.mxu0 0
    %525 = vmatprep.subr.bf16.mxu0 0
    %526 = vmatpush1.bf16.msra.mxu0 0
    %527 = vmatprep.mubr.bf16.mxu0 0
    %528 = vmatmul.mubr.bf16.gmra.mrb[0].mxu0 %v109
    %v529 = vpop.f32.mrb[0].mxu0
    %v530 = vadd.f32 0.0, %v529
    %v531 = vpop.f32.mrb[0].mxu0
    %v532 = vadd.f32 0.0, %v531
    %v533 = vpop.f32.mrb[0].mxu0
    %v534 = vadd.f32 0.0, %v533
    %v535 = vpop.f32.mrb[0].mxu0
    %v536 = vadd.f32 0.0, %v535
    %537 = vmatprep.mubr.bf16.mxu0 0
    %538 = vmatmul.mubr.bf16.gmra.mrb[0].mxu0 %v110
    %v539 = vpop.f32.mrb[0].mxu0
    %v540 = vadd.f32 0.0, %v539
    %v541 = vpop.f32.mrb[0].mxu0
    %v542 = vadd.f32 0.0, %v541
    %v543 = vpop.f32.mrb[0].mxu0
    %v544 = vadd.f32 0.0, %v543
    %v545 = vpop.f32.mrb[0].mxu0
    %v546 = vadd.f32 0.0, %v545
    %547 = vdwg.mxu0
    %548 = vmatprep.subr.bf16.mxu0 %v370
    %549 = vmatpush1.bf16.msra.mxu0 %v369
    %550 = vmatprep.subr.bf16.mxu0 %v378
    %551 = vmatpush1.bf16.msra.mxu0 %v377
    %552 = vmatprep.subr.bf16.mxu0 %v386
    %553 = vmatpush1.bf16.msra.mxu0 %v385
    %554 = vmatprep.subr.bf16.mxu0 %v394
    %555 = vmatpush1.bf16.msra.mxu0 %v393
    %556 = vmatprep.subr.bf16.mxu0 %v402
    %557 = vmatpush1.bf16.msra.mxu0 %v401
    %558 = vmatprep.subr.bf16.mxu0 %v410
    %559 = vmatpush1.bf16.msra.mxu0 %v409
    %560 = vmatprep.subr.bf16.mxu0 %v418
    %561 = vmatpush1.bf16.msra.mxu0 %v417
    %562 = vmatprep.subr.bf16.mxu0 %v426
    %563 = vmatpush1.bf16.msra.mxu0 %v425
    %564 = vmatprep.subr.bf16.mxu0 0
    %565 = vmatpush1.bf16.msra.mxu0 0
    %566 = vmatprep.subr.bf16.mxu0 0
    %567 = vmatpush1.bf16.msra.mxu0 0
    %568 = vmatprep.subr.bf16.mxu0 0
    %569 = vmatpush1.bf16.msra.mxu0 0
    %570 = vmatprep.subr.bf16.mxu0 0
    %571 = vmatpush1.bf16.msra.mxu0 0
    %572 = vmatprep.subr.bf16.mxu0 0
    %573 = vmatpush1.bf16.msra.mxu0 0
    %574 = vmatprep.subr.bf16.mxu0 0
    %575 = vmatpush1.bf16.msra.mxu0 0
    %576 = vmatprep.subr.bf16.mxu0 0
    %577 = vmatpush1.bf16.msra.mxu0 0
    %578 = vmatprep.subr.bf16.mxu0 0
    %579 = vmatpush1.bf16.msra.mxu0 0
    %580 = vmatprep.mubr.bf16.mxu0 0
    %581 = vmatmul.mubr.bf16.gmra.mrb[0].mxu0 %v109
    %v582 = vpop.f32.mrb[0].mxu0
    %v583 = vadd.f32 0.0, %v582
    %v584 = vpop.f32.mrb[0].mxu0
    %v585 = vadd.f32 0.0, %v584
    %v586 = vpop.f32.mrb[0].mxu0
    %v587 = vadd.f32 0.0, %v586
    %v588 = vpop.f32.mrb[0].mxu0
    %v589 = vadd.f32 0.0, %v588
    %590 = vmatprep.mubr.bf16.mxu0 0
    %591 = vmatmul.mubr.bf16.gmra.mrb[0].mxu0 %v110
    %v592 = vpop.f32.mrb[0].mxu0
    %v593 = vadd.f32 0.0, %v592
    %v594 = vpop.f32.mrb[0].mxu0
    %v595 = vadd.f32 0.0, %v594
    %v596 = vpop.f32.mrb[0].mxu0
    %v597 = vadd.f32 0.0, %v596
    %v598 = vpop.f32.mrb[0].mxu0
    %v599 = vadd.f32 0.0, %v598
    %600 = vdwg.mxu0
    %601 = vmatprep.subr.bf16.mxu0 %v372
    %602 = vmatpush1.bf16.msra.mxu0 %v371
    %603 = vmatprep.subr.bf16.mxu0 %v380
    %604 = vmatpush1.bf16.msra.mxu0 %v379
    %605 = vmatprep.subr.bf16.mxu0 %v388
    %606 = vmatpush1.bf16.msra.mxu0 %v387
    %607 = vmatprep.subr.bf16.mxu0 %v396
    %608 = vmatpush1.bf16.msra.mxu0 %v395
    %609 = vmatprep.subr.bf16.mxu0 %v404
    %610 = vmatpush1.bf16.msra.mxu0 %v403
    %611 = vmatprep.subr.bf16.mxu0 %v412
    %612 = vmatpush1.bf16.msra.mxu0 %v411
    %613 = vmatprep.subr.bf16.mxu0 %v420
    %614 = vmatpush1.bf16.msra.mxu0 %v419
    %615 = vmatprep.subr.bf16.mxu0 %v428
    %616 = vmatpush1.bf16.msra.mxu0 %v427
    %617 = vmatprep.subr.bf16.mxu0 0
    %618 = vmatpush1.bf16.msra.mxu0 0
    %619 = vmatprep.subr.bf16.mxu0 0
    %620 = vmatpush1.bf16.msra.mxu0 0
    %621 = vmatprep.subr.bf16.mxu0 0
    %622 = vmatpush1.bf16.msra.mxu0 0
    %623 = vmatprep.subr.bf16.mxu0 0
    %624 = vmatpush1.bf16.msra.mxu0 0
    %625 = vmatprep.subr.bf16.mxu0 0
    %626 = vmatpush1.bf16.msra.mxu0 0
    %627 = vmatprep.subr.bf16.mxu0 0
    %628 = vmatpush1.bf16.msra.mxu0 0
    %629 = vmatprep.subr.bf16.mxu0 0
    %630 = vmatpush1.bf16.msra.mxu0 0
    %631 = vmatprep.subr.bf16.mxu0 0
    %632 = vmatpush1.bf16.msra.mxu0 0
    %633 = vmatprep.mubr.bf16.mxu0 0
    %634 = vmatmul.mubr.bf16.gmra.mrb[0].mxu0 %v109
    %v635 = vpop.f32.mrb[0].mxu0
    %v636 = vadd.f32 0.0, %v635
    %v637 = vpop.f32.mrb[0].mxu0
    %v638 = vadd.f32 0.0, %v637
    %v639 = vpop.f32.mrb[0].mxu0
    %v640 = vadd.f32 0.0, %v639
    %v641 = vpop.f32.mrb[0].mxu0
    %v642 = vadd.f32 0.0, %v641
    %643 = vmatprep.mubr.bf16.mxu0 0
    %644 = vmatmul.mubr.bf16.gmra.mrb[0].mxu0 %v110
    %v645 = vpop.f32.mrb[0].mxu0
    %v646 = vadd.f32 0.0, %v645
    %v647 = vpop.f32.mrb[0].mxu0
    %v648 = vadd.f32 0.0, %v647
    %v649 = vpop.f32.mrb[0].mxu0
    %v650 = vadd.f32 0.0, %v649
    %v651 = vpop.f32.mrb[0].mxu0
    %v652 = vadd.f32 0.0, %v651
    %653 = vdwg.mxu0
    %654 = vmatprep.subr.bf16.mxu0 %v374
    %655 = vmatpush1.bf16.msra.mxu0 %v373
    %656 = vmatprep.subr.bf16.mxu0 %v382
    %657 = vmatpush1.bf16.msra.mxu0 %v381
    %658 = vmatprep.subr.bf16.mxu0 %v390
    %659 = vmatpush1.bf16.msra.mxu0 %v389
    %660 = vmatprep.subr.bf16.mxu0 %v398
    %661 = vmatpush1.bf16.msra.mxu0 %v397
    %662 = vmatprep.subr.bf16.mxu0 %v406
    %663 = vmatpush1.bf16.msra.mxu0 %v405
    %664 = vmatprep.subr.bf16.mxu0 %v414
    %665 = vmatpush1.bf16.msra.mxu0 %v413
    %666 = vmatprep.subr.bf16.mxu0 %v422
    %667 = vmatpush1.bf16.msra.mxu0 %v421
    %668 = vmatprep.subr.bf16.mxu0 %v430
    %669 = vmatpush1.bf16.msra.mxu0 %v429
    %670 = vmatprep.subr.bf16.mxu0 0
    %671 = vmatpush1.bf16.msra.mxu0 0
    %672 = vmatprep.subr.bf16.mxu0 0
    %673 = vmatpush1.bf16.msra.mxu0 0
    %674 = vmatprep.subr.bf16.mxu0 0
    %675 = vmatpush1.bf16.msra.mxu0 0
    %676 = vmatprep.subr.bf16.mxu0 0
    %677 = vmatpush1.bf16.msra.mxu0 0
    %678 = vmatprep.subr.bf16.mxu0 0
    %679 = vmatpush1.bf16.msra.mxu0 0
    %680 = vmatprep.subr.bf16.mxu0 0
    %681 = vmatpush1.bf16.msra.mxu0 0
    %682 = vmatprep.subr.bf16.mxu0 0
    %683 = vmatpush1.bf16.msra.mxu0 0
    %684 = vmatprep.subr.bf16.mxu0 0
    %685 = vmatpush1.bf16.msra.mxu0 0
    %686 = vmatprep.mubr.bf16.mxu0 0
    %687 = vmatmul.mubr.bf16.gmra.mrb[0].mxu0 %v109
    %v688 = vpop.f32.mrb[0].mxu0
    %v689 = vadd.f32 0.0, %v688
    %v690 = vpop.f32.mrb[0].mxu0
    %v691 = vadd.f32 0.0, %v690
    %v692 = vpop.f32.mrb[0].mxu0
    %v693 = vadd.f32 0.0, %v692
    %v694 = vpop.f32.mrb[0].mxu0
    %v695 = vadd.f32 0.0, %v694
    %696 = vmatprep.mubr.bf16.mxu0 0
    %697 = vmatmul.mubr.bf16.gmra.mrb[0].mxu0 %v110
    %v698 = vpop.f32.mrb[0].mxu0
    %v699 = vadd.f32 0.0, %v698
    %v700 = vpop.f32.mrb[0].mxu0
    %v701 = vadd.f32 0.0, %v700
    %v702 = vpop.f32.mrb[0].mxu0
    %v703 = vadd.f32 0.0, %v702
    %v704 = vpop.f32.mrb[0].mxu0
    %v705 = vadd.f32 0.0, %v704
    %706 = vdwg.mxu0
    %v707 = vpack.c.bf16 %v534, %v530
    %v708 = vpack.c.bf16 %v536, %v532
    %v709 = vpack.c.bf16 %v587, %v583
    %v710 = vpack.c.bf16 %v589, %v585
    %v711 = vpack.c.bf16 %v640, %v636
    %v712 = vpack.c.bf16 %v642, %v638
    %v713 = vpack.c.bf16 %v693, %v689
    %v714 = vpack.c.bf16 %v695, %v691
    %v715 = vpack.c.bf16 %v544, %v540
    %v716 = vpack.c.bf16 %v546, %v542
    %v717 = vpack.c.bf16 %v597, %v593
    %v718 = vpack.c.bf16 %v599, %v595
    %v719 = vpack.c.bf16 %v650, %v646
    %v720 = vpack.c.bf16 %v652, %v648
    %v721 = vpack.c.bf16 %v703, %v699
    %v722 = vpack.c.bf16 %v705, %v701
    %v723 = vld [vmem:[#allocation8] sm:$0xff]
    %v725 = vcombine.high %v723, %v723
    %v727 = vunpack.c.l.s4 1966171168
    %v728 = vunpack.c.0.s8 %v727
    %v729 = vlaneseq
    %v730 = vshrl.u32 %v729, 7
    %v731 = vsub.s32 %v728, %v730
    %v732 = vrot.slane %v723, %v731
    %v734 = vunpack.c.l.s4 1966171168
    %v735 = vunpack.c.0.s8 %v734
    %v736 = vlaneseq
    %v737 = vshrl.u32 %v736, 7
    %v738 = vsub.s32 %v735, %v737
    %v739 = vrot.slane %v725, %v738
    %v740 = vcombine.high %v732, %v732
    %v741 = vcombine.high %v739, %v739
    %v743 = vunpack.c.l.s4 1966171168
    %v744 = vunpack.c.0.s8 %v743
    %v745 = vlaneseq
    %v746 = vshrl.u32 %v745, 7
    %v747 = vsub.s32 %v744, %v746
    %v748 = vrot.slane %v732, %v747
    %v750 = vunpack.c.l.s4 1966171168
    %v751 = vunpack.c.0.s8 %v750
    %v752 = vlaneseq
    %v753 = vshrl.u32 %v752, 7
    %v754 = vsub.s32 %v751, %v753
    %v755 = vrot.slane %v739, %v754
    %v757 = vunpack.c.l.s4 1966171168
    %v758 = vunpack.c.0.s8 %v757
    %v759 = vlaneseq
    %v760 = vshrl.u32 %v759, 7
    %v761 = vsub.s32 %v758, %v760
    %v762 = vrot.slane %v740, %v761
    %v764 = vunpack.c.l.s4 1966171168
    %v765 = vunpack.c.0.s8 %v764
    %v766 = vlaneseq
    %v767 = vshrl.u32 %v766, 7
    %v768 = vsub.s32 %v765, %v767
    %v769 = vrot.slane %v741, %v768
    %v770 = vcombine.high %v748, %v748
    %v771 = vcombine.high %v755, %v755
    %v772 = vcombine.high %v762, %v762
    %v773 = vcombine.high %v769, %v769
    %v775 = vpack.i.b16 %v748, %v748
    %v777 = vlaneseq
    %v778 = vshrl.u32 %v777, 7
    %v779 = vsub.s32 0, %v778
    %v780 = vrot.slane %v775, %v779
    %v782 = vpack.i.b16 %v762, %v762
    %v784 = vlaneseq
    %v785 = vshrl.u32 %v784, 7
    %v786 = vsub.s32 0, %v785
    %v787 = vrot.slane %v782, %v786
    %v789 = vpack.i.b16 %v770, %v770
    %v791 = vlaneseq
    %v792 = vshrl.u32 %v791, 7
    %v793 = vsub.s32 0, %v792
    %v794 = vrot.slane %v789, %v793
    %v796 = vpack.i.b16 %v772, %v772
    %v798 = vlaneseq
    %v799 = vshrl.u32 %v798, 7
    %v800 = vsub.s32 0, %v799
    %v801 = vrot.slane %v796, %v800
    %v803 = vpack.i.b16 %v755, %v755
    %v805 = vlaneseq
    %v806 = vshrl.u32 %v805, 7
    %v807 = vsub.s32 0, %v806
    %v808 = vrot.slane %v803, %v807
    %v810 = vpack.i.b16 %v769, %v769
    %v812 = vlaneseq
    %v813 = vshrl.u32 %v812, 7
    %v814 = vsub.s32 0, %v813
    %v815 = vrot.slane %v810, %v814
    %v817 = vpack.i.b16 %v771, %v771
    %v819 = vlaneseq
    %v820 = vshrl.u32 %v819, 7
    %v821 = vsub.s32 0, %v820
    %v822 = vrot.slane %v817, %v821
    %v824 = vpack.i.b16 %v773, %v773
    %v826 = vlaneseq
    %v827 = vshrl.u32 %v826, 7
    %v828 = vsub.s32 0, %v827
    %v829 = vrot.slane %v824, %v828
    %v830 = vadd.bf16 %v707, %v780
    %v831 = vadd.bf16 %v708, %v787
    %v832 = vadd.bf16 %v709, %v794
    %v833 = vadd.bf16 %v710, %v801
    %v834 = vadd.bf16 %v711, %v808
    %v835 = vadd.bf16 %v712, %v815
    %v836 = vadd.bf16 %v713, %v822
    %v837 = vadd.bf16 %v714, %v829
    %v838 = vadd.bf16 %v715, %v780
    %v839 = vadd.bf16 %v716, %v787
    %v840 = vadd.bf16 %v717, %v794
    %v841 = vadd.bf16 %v718, %v801
    %v842 = vadd.bf16 %v719, %v808
    %v843 = vadd.bf16 %v720, %v815
    %v844 = vadd.bf16 %v721, %v822
    %v845 = vadd.bf16 %v722, %v829
    %v846 = vmax.bf16 %v830, 0
    %v847 = vmax.bf16 %v831, 0
    %v848 = vmax.bf16 %v832, 0
    %v849 = vmax.bf16 %v833, 0
    %v850 = vmax.bf16 %v834, 0
    %v851 = vmax.bf16 %v835, 0
    %v852 = vmax.bf16 %v836, 0
    %v853 = vmax.bf16 %v837, 0
    %v854 = vmax.bf16 %v838, 0
    %v855 = vmax.bf16 %v839, 0
    %v856 = vmax.bf16 %v840, 0
    %v857 = vmax.bf16 %v841, 0
    %v858 = vmax.bf16 %v842, 0
    %v859 = vmax.bf16 %v843, 0
    %v860 = vmax.bf16 %v844, 0
    %v861 = vmax.bf16 %v845, 0
    %v862 = vld [vmem:[#allocation9] sm:$0xff]
    %v863 = vld [vmem:[#allocation9 + $0x8] sm:$0xff]
    %v864 = vld [vmem:[#allocation9 + $0x10] sm:$0xff]
    %v865 = vld [vmem:[#allocation9 + $0x18] sm:$0xff]
    %v866 = vld [vmem:[#allocation9 + $0x20] sm:$0xff]
    %v867 = vld [vmem:[#allocation9 + $0x28] sm:$0xff]
    %v868 = vld [vmem:[#allocation9 + $0x30] sm:$0xff]
    %v869 = vld [vmem:[#allocation9 + $0x38] sm:$0xff]
    %v870 = vld [vmem:[#allocation9 + $0x40] sm:$0xff]
    %v871 = vld [vmem:[#allocation9 + $0x48] sm:$0xff]
    %v872 = vld [vmem:[#allocation9 + $0x50] sm:$0xff]
    %v873 = vld [vmem:[#allocation9 + $0x58] sm:$0xff]
    %v874 = vld [vmem:[#allocation9 + $0x60] sm:$0xff]
    %v875 = vld [vmem:[#allocation9 + $0x68] sm:$0xff]
    %v876 = vld [vmem:[#allocation9 + $0x70] sm:$0xff]
    %v877 = vld [vmem:[#allocation9 + $0x78] sm:$0xff]
    %v878 = vld [vmem:[#allocation9 + $0x80] sm:$0xff]
    %v879 = vld [vmem:[#allocation9 + $0x88] sm:$0xff]
    %v880 = vld [vmem:[#allocation9 + $0x90] sm:$0xff]
    %v881 = vld [vmem:[#allocation9 + $0x98] sm:$0xff]
    %v882 = vld [vmem:[#allocation9 + $0xa0] sm:$0xff]
    %v883 = vld [vmem:[#allocation9 + $0xa8] sm:$0xff]
    %v884 = vld [vmem:[#allocation9 + $0xb0] sm:$0xff]
    %v885 = vld [vmem:[#allocation9 + $0xb8] sm:$0xff]
    %v886 = vld [vmem:[#allocation9 + $0xc0] sm:$0xff]
    %v887 = vld [vmem:[#allocation9 + $0xc8] sm:$0xff]
    %v888 = vld [vmem:[#allocation9 + $0xd0] sm:$0xff]
    %v889 = vld [vmem:[#allocation9 + $0xd8] sm:$0xff]
    %v890 = vld [vmem:[#allocation9 + $0xe0] sm:$0xff]
    %v891 = vld [vmem:[#allocation9 + $0xe8] sm:$0xff]
    %v892 = vld [vmem:[#allocation9 + $0xf0] sm:$0xff]
    %v893 = vld [vmem:[#allocation9 + $0xf8] sm:$0xff]
    %v894 = vld [vmem:[#allocation9 + $0x100] sm:$0xff]
    %v895 = vld [vmem:[#allocation9 + $0x108] sm:$0xff]
    %v896 = vld [vmem:[#allocation9 + $0x110] sm:$0xff]
    %v897 = vld [vmem:[#allocation9 + $0x118] sm:$0xff]
    %v898 = vld [vmem:[#allocation9 + $0x120] sm:$0xff]
    %v899 = vld [vmem:[#allocation9 + $0x128] sm:$0xff]
    %v900 = vld [vmem:[#allocation9 + $0x130] sm:$0xff]
    %v901 = vld [vmem:[#allocation9 + $0x138] sm:$0xff]
    %v902 = vld [vmem:[#allocation9 + $0x140] sm:$0xff]
    %v903 = vld [vmem:[#allocation9 + $0x148] sm:$0xff]
    %v904 = vld [vmem:[#allocation9 + $0x150] sm:$0xff]
    %v905 = vld [vmem:[#allocation9 + $0x158] sm:$0xff]
    %v906 = vld [vmem:[#allocation9 + $0x160] sm:$0xff]
    %v907 = vld [vmem:[#allocation9 + $0x168] sm:$0xff]
    %v908 = vld [vmem:[#allocation9 + $0x170] sm:$0xff]
    %v909 = vld [vmem:[#allocation9 + $0x178] sm:$0xff]
    %v910 = vld [vmem:[#allocation9 + $0x180] sm:$0xff]
    %v911 = vld [vmem:[#allocation9 + $0x188] sm:$0xff]
    %v912 = vld [vmem:[#allocation9 + $0x190] sm:$0xff]
    %v913 = vld [vmem:[#allocation9 + $0x198] sm:$0xff]
    %v914 = vld [vmem:[#allocation9 + $0x1a0] sm:$0xff]
    %v915 = vld [vmem:[#allocation9 + $0x1a8] sm:$0xff]
    %v916 = vld [vmem:[#allocation9 + $0x1b0] sm:$0xff]
    %v917 = vld [vmem:[#allocation9 + $0x1b8] sm:$0xff]
    %v918 = vld [vmem:[#allocation9 + $0x1c0] sm:$0xff]
    %v919 = vld [vmem:[#allocation9 + $0x1c8] sm:$0xff]
    %v920 = vld [vmem:[#allocation9 + $0x1d0] sm:$0xff]
    %v921 = vld [vmem:[#allocation9 + $0x1d8] sm:$0xff]
    %v922 = vld [vmem:[#allocation9 + $0x1e0] sm:$0xff]
    %v923 = vld [vmem:[#allocation9 + $0x1e8] sm:$0xff]
    %v924 = vld [vmem:[#allocation9 + $0x1f0] sm:$0xff]
    %v925 = vld [vmem:[#allocation9 + $0x1f8] sm:$0xff]
    %v926 = vld [vmem:[#allocation9 + $0x200] sm:$0xff]
    %v927 = vld [vmem:[#allocation9 + $0x208] sm:$0xff]
    %v928 = vld [vmem:[#allocation9 + $0x210] sm:$0xff]
    %v929 = vld [vmem:[#allocation9 + $0x218] sm:$0xff]
    %v930 = vld [vmem:[#allocation9 + $0x220] sm:$0xff]
    %v931 = vld [vmem:[#allocation9 + $0x228] sm:$0xff]
    %v932 = vld [vmem:[#allocation9 + $0x230] sm:$0xff]
    %v933 = vld [vmem:[#allocation9 + $0x238] sm:$0xff]
    %v934 = vld [vmem:[#allocation9 + $0x240] sm:$0xff]
    %v935 = vld [vmem:[#allocation9 + $0x248] sm:$0xff]
    %v936 = vld [vmem:[#allocation9 + $0x250] sm:$0xff]
    %v937 = vld [vmem:[#allocation9 + $0x258] sm:$0xff]
    %v938 = vld [vmem:[#allocation9 + $0x260] sm:$0xff]
    %v939 = vld [vmem:[#allocation9 + $0x268] sm:$0xff]
    %v940 = vld [vmem:[#allocation9 + $0x270] sm:$0xff]
    %v941 = vld [vmem:[#allocation9 + $0x278] sm:$0xff]
    %v942 = vld [vmem:[#allocation9 + $0x280] sm:$0xff]
    %v943 = vld [vmem:[#allocation9 + $0x288] sm:$0xff]
    %v944 = vld [vmem:[#allocation9 + $0x290] sm:$0xff]
    %v945 = vld [vmem:[#allocation9 + $0x298] sm:$0xff]
    %v946 = vld [vmem:[#allocation9 + $0x2a0] sm:$0xff]
    %v947 = vld [vmem:[#allocation9 + $0x2a8] sm:$0xff]
    %v948 = vld [vmem:[#allocation9 + $0x2b0] sm:$0xff]
    %v949 = vld [vmem:[#allocation9 + $0x2b8] sm:$0xff]
    %v950 = vld [vmem:[#allocation9 + $0x2c0] sm:$0xff]
    %v951 = vld [vmem:[#allocation9 + $0x2c8] sm:$0xff]
    %v952 = vld [vmem:[#allocation9 + $0x2d0] sm:$0xff]
    %v953 = vld [vmem:[#allocation9 + $0x2d8] sm:$0xff]
    %v954 = vld [vmem:[#allocation9 + $0x2e0] sm:$0xff]
    %v955 = vld [vmem:[#allocation9 + $0x2e8] sm:$0xff]
    %v956 = vld [vmem:[#allocation9 + $0x2f0] sm:$0xff]
    %v957 = vld [vmem:[#allocation9 + $0x2f8] sm:$0xff]
    %v958 = vld [vmem:[#allocation9 + $0x300] sm:$0xff]
    %v959 = vld [vmem:[#allocation9 + $0x308] sm:$0xff]
    %v960 = vld [vmem:[#allocation9 + $0x310] sm:$0xff]
    %v961 = vld [vmem:[#allocation9 + $0x318] sm:$0xff]
    %v962 = vld [vmem:[#allocation9 + $0x320] sm:$0xff]
    %v963 = vld [vmem:[#allocation9 + $0x328] sm:$0xff]
    %v964 = vld [vmem:[#allocation9 + $0x330] sm:$0xff]
    %v965 = vld [vmem:[#allocation9 + $0x338] sm:$0xff]
    %v966 = vld [vmem:[#allocation9 + $0x340] sm:$0xff]
    %v967 = vld [vmem:[#allocation9 + $0x348] sm:$0xff]
    %v968 = vld [vmem:[#allocation9 + $0x350] sm:$0xff]
    %v969 = vld [vmem:[#allocation9 + $0x358] sm:$0xff]
    %v970 = vld [vmem:[#allocation9 + $0x360] sm:$0xff]
    %v971 = vld [vmem:[#allocation9 + $0x368] sm:$0xff]
    %v972 = vld [vmem:[#allocation9 + $0x370] sm:$0xff]
    %v973 = vld [vmem:[#allocation9 + $0x378] sm:$0xff]
    %v974 = vld [vmem:[#allocation9 + $0x380] sm:$0xff]
    %v975 = vld [vmem:[#allocation9 + $0x388] sm:$0xff]
    %v976 = vld [vmem:[#allocation9 + $0x390] sm:$0xff]
    %v977 = vld [vmem:[#allocation9 + $0x398] sm:$0xff]
    %v978 = vld [vmem:[#allocation9 + $0x3a0] sm:$0xff]
    %v979 = vld [vmem:[#allocation9 + $0x3a8] sm:$0xff]
    %v980 = vld [vmem:[#allocation9 + $0x3b0] sm:$0xff]
    %v981 = vld [vmem:[#allocation9 + $0x3b8] sm:$0xff]
    %v982 = vld [vmem:[#allocation9 + $0x3c0] sm:$0xff]
    %v983 = vld [vmem:[#allocation9 + $0x3c8] sm:$0xff]
    %v984 = vld [vmem:[#allocation9 + $0x3d0] sm:$0xff]
    %v985 = vld [vmem:[#allocation9 + $0x3d8] sm:$0xff]
    %v986 = vld [vmem:[#allocation9 + $0x3e0] sm:$0xff]
    %v987 = vld [vmem:[#allocation9 + $0x3e8] sm:$0xff]
    %v988 = vld [vmem:[#allocation9 + $0x3f0] sm:$0xff]
    %v989 = vld [vmem:[#allocation9 + $0x3f8] sm:$0xff]
    %v990 = vld [vmem:[#allocation9 + $0x400] sm:$0xff]
    %v991 = vld [vmem:[#allocation9 + $0x408] sm:$0xff]
    %v992 = vld [vmem:[#allocation9 + $0x410] sm:$0xff]
    %v993 = vld [vmem:[#allocation9 + $0x418] sm:$0xff]
    %v994 = vld [vmem:[#allocation9 + $0x420] sm:$0xff]
    %v995 = vld [vmem:[#allocation9 + $0x428] sm:$0xff]
    %v996 = vld [vmem:[#allocation9 + $0x430] sm:$0xff]
    %v997 = vld [vmem:[#allocation9 + $0x438] sm:$0xff]
    %v998 = vld [vmem:[#allocation9 + $0x440] sm:$0xff]
    %v999 = vld [vmem:[#allocation9 + $0x448] sm:$0xff]
    %v1000 = vld [vmem:[#allocation9 + $0x450] sm:$0xff]
    %v1001 = vld [vmem:[#allocation9 + $0x458] sm:$0xff]
    %v1002 = vld [vmem:[#allocation9 + $0x460] sm:$0xff]
    %v1003 = vld [vmem:[#allocation9 + $0x468] sm:$0xff]
    %v1004 = vld [vmem:[#allocation9 + $0x470] sm:$0xff]
    %v1005 = vld [vmem:[#allocation9 + $0x478] sm:$0xff]
    %v1006 = vld [vmem:[#allocation9 + $0x480] sm:$0xff]
    %v1007 = vld [vmem:[#allocation9 + $0x488] sm:$0xff]
    %v1008 = vld [vmem:[#allocation9 + $0x490] sm:$0xff]
    %v1009 = vld [vmem:[#allocation9 + $0x498] sm:$0xff]
    %v1010 = vld [vmem:[#allocation9 + $0x4a0] sm:$0xff]
    %v1011 = vld [vmem:[#allocation9 + $0x4a8] sm:$0xff]
    %v1012 = vld [vmem:[#allocation9 + $0x4b0] sm:$0xff]
    %v1013 = vld [vmem:[#allocation9 + $0x4b8] sm:$0xff]
    %v1014 = vld [vmem:[#allocation9 + $0x4c0] sm:$0xff]
    %v1015 = vld [vmem:[#allocation9 + $0x4c8] sm:$0xff]
    %v1016 = vld [vmem:[#allocation9 + $0x4d0] sm:$0xff]
    %v1017 = vld [vmem:[#allocation9 + $0x4d8] sm:$0xff]
    %v1018 = vld [vmem:[#allocation9 + $0x4e0] sm:$0xff]
    %v1019 = vld [vmem:[#allocation9 + $0x4e8] sm:$0xff]
    %v1020 = vld [vmem:[#allocation9 + $0x4f0] sm:$0xff]
    %v1021 = vld [vmem:[#allocation9 + $0x4f8] sm:$0xff]
    %v1022 = vld [vmem:[#allocation9 + $0x500] sm:$0xff]
    %v1023 = vld [vmem:[#allocation9 + $0x508] sm:$0xff]
    %v1024 = vld [vmem:[#allocation9 + $0x510] sm:$0xff]
    %v1025 = vld [vmem:[#allocation9 + $0x518] sm:$0xff]
    %v1026 = vld [vmem:[#allocation9 + $0x520] sm:$0xff]
    %v1027 = vld [vmem:[#allocation9 + $0x528] sm:$0xff]
    %v1028 = vld [vmem:[#allocation9 + $0x530] sm:$0xff]
    %v1029 = vld [vmem:[#allocation9 + $0x538] sm:$0xff]
    %v1030 = vld [vmem:[#allocation9 + $0x540] sm:$0xff]
    %v1031 = vld [vmem:[#allocation9 + $0x548] sm:$0xff]
    %v1032 = vld [vmem:[#allocation9 + $0x550] sm:$0xff]
    %v1033 = vld [vmem:[#allocation9 + $0x558] sm:$0xff]
    %v1034 = vld [vmem:[#allocation9 + $0x560] sm:$0xff]
    %v1035 = vld [vmem:[#allocation9 + $0x568] sm:$0xff]
    %v1036 = vld [vmem:[#allocation9 + $0x570] sm:$0xff]
    %v1037 = vld [vmem:[#allocation9 + $0x578] sm:$0xff]
    %v1038 = vld [vmem:[#allocation9 + $0x580] sm:$0xff]
    %v1039 = vld [vmem:[#allocation9 + $0x588] sm:$0xff]
    %v1040 = vld [vmem:[#allocation9 + $0x590] sm:$0xff]
    %v1041 = vld [vmem:[#allocation9 + $0x598] sm:$0xff]
    %v1042 = vld [vmem:[#allocation9 + $0x5a0] sm:$0xff]
    %v1043 = vld [vmem:[#allocation9 + $0x5a8] sm:$0xff]
    %v1044 = vld [vmem:[#allocation9 + $0x5b0] sm:$0xff]
    %v1045 = vld [vmem:[#allocation9 + $0x5b8] sm:$0xff]
    %v1046 = vld [vmem:[#allocation9 + $0x5c0] sm:$0xff]
    %v1047 = vld [vmem:[#allocation9 + $0x5c8] sm:$0xff]
    %v1048 = vld [vmem:[#allocation9 + $0x5d0] sm:$0xff]
    %v1049 = vld [vmem:[#allocation9 + $0x5d8] sm:$0xff]
    %v1050 = vld [vmem:[#allocation9 + $0x5e0] sm:$0xff]
    %v1051 = vld [vmem:[#allocation9 + $0x5e8] sm:$0xff]
    %v1052 = vld [vmem:[#allocation9 + $0x5f0] sm:$0xff]
    %v1053 = vld [vmem:[#allocation9 + $0x5f8] sm:$0xff]
    %v1054 = vld [vmem:[#allocation9 + $0x600] sm:$0xff]
    %v1055 = vld [vmem:[#allocation9 + $0x608] sm:$0xff]
    %v1056 = vld [vmem:[#allocation9 + $0x610] sm:$0xff]
    %v1057 = vld [vmem:[#allocation9 + $0x618] sm:$0xff]
    %v1058 = vld [vmem:[#allocation9 + $0x620] sm:$0xff]
    %v1059 = vld [vmem:[#allocation9 + $0x628] sm:$0xff]
    %v1060 = vld [vmem:[#allocation9 + $0x630] sm:$0xff]
    %v1061 = vld [vmem:[#allocation9 + $0x638] sm:$0xff]
    %v1062 = vld [vmem:[#allocation9 + $0x640] sm:$0xff]
    %v1063 = vld [vmem:[#allocation9 + $0x648] sm:$0xff]
    %v1064 = vld [vmem:[#allocation9 + $0x650] sm:$0xff]
    %v1065 = vld [vmem:[#allocation9 + $0x658] sm:$0xff]
    %v1066 = vld [vmem:[#allocation9 + $0x660] sm:$0xff]
    %v1067 = vld [vmem:[#allocation9 + $0x668] sm:$0xff]
    %v1068 = vld [vmem:[#allocation9 + $0x670] sm:$0xff]
    %v1069 = vld [vmem:[#allocation9 + $0x678] sm:$0xff]
    %v1070 = vld [vmem:[#allocation9 + $0x680] sm:$0xff]
    %v1071 = vld [vmem:[#allocation9 + $0x688] sm:$0xff]
    %v1072 = vld [vmem:[#allocation9 + $0x690] sm:$0xff]
    %v1073 = vld [vmem:[#allocation9 + $0x698] sm:$0xff]
    %v1074 = vld [vmem:[#allocation9 + $0x6a0] sm:$0xff]
    %v1075 = vld [vmem:[#allocation9 + $0x6a8] sm:$0xff]
    %v1076 = vld [vmem:[#allocation9 + $0x6b0] sm:$0xff]
    %v1077 = vld [vmem:[#allocation9 + $0x6b8] sm:$0xff]
    %v1078 = vld [vmem:[#allocation9 + $0x6c0] sm:$0xff]
    %v1079 = vld [vmem:[#allocation9 + $0x6c8] sm:$0xff]
    %v1080 = vld [vmem:[#allocation9 + $0x6d0] sm:$0xff]
    %v1081 = vld [vmem:[#allocation9 + $0x6d8] sm:$0xff]
    %v1082 = vld [vmem:[#allocation9 + $0x6e0] sm:$0xff]
    %v1083 = vld [vmem:[#allocation9 + $0x6e8] sm:$0xff]
    %v1084 = vld [vmem:[#allocation9 + $0x6f0] sm:$0xff]
    %v1085 = vld [vmem:[#allocation9 + $0x6f8] sm:$0xff]
    %v1086 = vld [vmem:[#allocation9 + $0x700] sm:$0xff]
    %v1087 = vld [vmem:[#allocation9 + $0x708] sm:$0xff]
    %v1088 = vld [vmem:[#allocation9 + $0x710] sm:$0xff]
    %v1089 = vld [vmem:[#allocation9 + $0x718] sm:$0xff]
    %v1090 = vld [vmem:[#allocation9 + $0x720] sm:$0xff]
    %v1091 = vld [vmem:[#allocation9 + $0x728] sm:$0xff]
    %v1092 = vld [vmem:[#allocation9 + $0x730] sm:$0xff]
    %v1093 = vld [vmem:[#allocation9 + $0x738] sm:$0xff]
    %v1094 = vld [vmem:[#allocation9 + $0x740] sm:$0xff]
    %v1095 = vld [vmem:[#allocation9 + $0x748] sm:$0xff]
    %v1096 = vld [vmem:[#allocation9 + $0x750] sm:$0xff]
    %v1097 = vld [vmem:[#allocation9 + $0x758] sm:$0xff]
    %v1098 = vld [vmem:[#allocation9 + $0x760] sm:$0xff]
    %v1099 = vld [vmem:[#allocation9 + $0x768] sm:$0xff]
    %v1100 = vld [vmem:[#allocation9 + $0x770] sm:$0xff]
    %v1101 = vld [vmem:[#allocation9 + $0x778] sm:$0xff]
    %v1102 = vld [vmem:[#allocation9 + $0x780] sm:$0xff]
    %v1103 = vld [vmem:[#allocation9 + $0x788] sm:$0xff]
    %v1104 = vld [vmem:[#allocation9 + $0x790] sm:$0xff]
    %v1105 = vld [vmem:[#allocation9 + $0x798] sm:$0xff]
    %v1106 = vld [vmem:[#allocation9 + $0x7a0] sm:$0xff]
    %v1107 = vld [vmem:[#allocation9 + $0x7a8] sm:$0xff]
    %v1108 = vld [vmem:[#allocation9 + $0x7b0] sm:$0xff]
    %v1109 = vld [vmem:[#allocation9 + $0x7b8] sm:$0xff]
    %v1110 = vld [vmem:[#allocation9 + $0x7c0] sm:$0xff]
    %v1111 = vld [vmem:[#allocation9 + $0x7c8] sm:$0xff]
    %v1112 = vld [vmem:[#allocation9 + $0x7d0] sm:$0xff]
    %v1113 = vld [vmem:[#allocation9 + $0x7d8] sm:$0xff]
    %v1114 = vld [vmem:[#allocation9 + $0x7e0] sm:$0xff]
    %v1115 = vld [vmem:[#allocation9 + $0x7e8] sm:$0xff]
    %v1116 = vld [vmem:[#allocation9 + $0x7f0] sm:$0xff]
    %v1117 = vld [vmem:[#allocation9 + $0x7f8] sm:$0xff]
    %v1118 = vld [vmem:[#allocation9 + $0x800] sm:$0xff]
    %v1119 = vld [vmem:[#allocation9 + $0x808] sm:$0xff]
    %v1120 = vld [vmem:[#allocation9 + $0x810] sm:$0xff]
    %v1121 = vld [vmem:[#allocation9 + $0x818] sm:$0xff]
    %v1122 = vld [vmem:[#allocation9 + $0x820] sm:$0xff]
    %v1123 = vld [vmem:[#allocation9 + $0x828] sm:$0xff]
    %v1124 = vld [vmem:[#allocation9 + $0x830] sm:$0xff]
    %v1125 = vld [vmem:[#allocation9 + $0x838] sm:$0xff]
    %v1126 = vld [vmem:[#allocation9 + $0x840] sm:$0xff]
    %v1127 = vld [vmem:[#allocation9 + $0x848] sm:$0xff]
    %v1128 = vld [vmem:[#allocation9 + $0x850] sm:$0xff]
    %v1129 = vld [vmem:[#allocation9 + $0x858] sm:$0xff]
    %v1130 = vld [vmem:[#allocation9 + $0x860] sm:$0xff]
    %v1131 = vld [vmem:[#allocation9 + $0x868] sm:$0xff]
    %v1132 = vld [vmem:[#allocation9 + $0x870] sm:$0xff]
    %v1133 = vld [vmem:[#allocation9 + $0x878] sm:$0xff]
    %v1134 = vld [vmem:[#allocation9 + $0x880] sm:$0xff]
    %v1135 = vld [vmem:[#allocation9 + $0x888] sm:$0xff]
    %v1136 = vld [vmem:[#allocation9 + $0x890] sm:$0xff]
    %v1137 = vld [vmem:[#allocation9 + $0x898] sm:$0xff]
    %v1138 = vld [vmem:[#allocation9 + $0x8a0] sm:$0xff]
    %v1139 = vld [vmem:[#allocation9 + $0x8a8] sm:$0xff]
    %v1140 = vld [vmem:[#allocation9 + $0x8b0] sm:$0xff]
    %v1141 = vld [vmem:[#allocation9 + $0x8b8] sm:$0xff]
    %v1142 = vld [vmem:[#allocation9 + $0x8c0] sm:$0xff]
    %v1143 = vld [vmem:[#allocation9 + $0x8c8] sm:$0xff]
    %v1144 = vld [vmem:[#allocation9 + $0x8d0] sm:$0xff]
    %v1145 = vld [vmem:[#allocation9 + $0x8d8] sm:$0xff]
    %v1146 = vld [vmem:[#allocation9 + $0x8e0] sm:$0xff]
    %v1147 = vld [vmem:[#allocation9 + $0x8e8] sm:$0xff]
    %v1148 = vld [vmem:[#allocation9 + $0x8f0] sm:$0xff]
    %v1149 = vld [vmem:[#allocation9 + $0x8f8] sm:$0xff]
    %v1150 = vld [vmem:[#allocation9 + $0x900] sm:$0xff]
    %v1151 = vld [vmem:[#allocation9 + $0x908] sm:$0xff]
    %v1152 = vld [vmem:[#allocation9 + $0x910] sm:$0xff]
    %v1153 = vld [vmem:[#allocation9 + $0x918] sm:$0xff]
    %v1154 = vld [vmem:[#allocation9 + $0x920] sm:$0xff]
    %v1155 = vld [vmem:[#allocation9 + $0x928] sm:$0xff]
    %v1156 = vld [vmem:[#allocation9 + $0x930] sm:$0xff]
    %v1157 = vld [vmem:[#allocation9 + $0x938] sm:$0xff]
    %v1158 = vld [vmem:[#allocation9 + $0x940] sm:$0xff]
    %v1159 = vld [vmem:[#allocation9 + $0x948] sm:$0xff]
    %v1160 = vld [vmem:[#allocation9 + $0x950] sm:$0xff]
    %v1161 = vld [vmem:[#allocation9 + $0x958] sm:$0xff]
    %v1162 = vld [vmem:[#allocation9 + $0x960] sm:$0xff]
    %v1163 = vld [vmem:[#allocation9 + $0x968] sm:$0xff]
    %v1164 = vld [vmem:[#allocation9 + $0x970] sm:$0xff]
    %v1165 = vld [vmem:[#allocation9 + $0x978] sm:$0xff]
    %v1166 = vld [vmem:[#allocation9 + $0x980] sm:$0xff]
    %v1167 = vld [vmem:[#allocation9 + $0x988] sm:$0xff]
    %v1168 = vld [vmem:[#allocation9 + $0x990] sm:$0xff]
    %v1169 = vld [vmem:[#allocation9 + $0x998] sm:$0xff]
    %v1170 = vld [vmem:[#allocation9 + $0x9a0] sm:$0xff]
    %v1171 = vld [vmem:[#allocation9 + $0x9a8] sm:$0xff]
    %v1172 = vld [vmem:[#allocation9 + $0x9b0] sm:$0xff]
    %v1173 = vld [vmem:[#allocation9 + $0x9b8] sm:$0xff]
    %v1174 = vld [vmem:[#allocation9 + $0x9c0] sm:$0xff]
    %v1175 = vld [vmem:[#allocation9 + $0x9c8] sm:$0xff]
    %v1176 = vld [vmem:[#allocation9 + $0x9d0] sm:$0xff]
    %v1177 = vld [vmem:[#allocation9 + $0x9d8] sm:$0xff]
    %v1178 = vld [vmem:[#allocation9 + $0x9e0] sm:$0xff]
    %v1179 = vld [vmem:[#allocation9 + $0x9e8] sm:$0xff]
    %v1180 = vld [vmem:[#allocation9 + $0x9f0] sm:$0xff]
    %v1181 = vld [vmem:[#allocation9 + $0x9f8] sm:$0xff]
    %v1182 = vld [vmem:[#allocation9 + $0xa00] sm:$0xff]
    %v1183 = vld [vmem:[#allocation9 + $0xa08] sm:$0xff]
    %v1184 = vld [vmem:[#allocation9 + $0xa10] sm:$0xff]
    %v1185 = vld [vmem:[#allocation9 + $0xa18] sm:$0xff]
    %v1186 = vld [vmem:[#allocation9 + $0xa20] sm:$0xff]
    %v1187 = vld [vmem:[#allocation9 + $0xa28] sm:$0xff]
    %v1188 = vld [vmem:[#allocation9 + $0xa30] sm:$0xff]
    %v1189 = vld [vmem:[#allocation9 + $0xa38] sm:$0xff]
    %v1190 = vld [vmem:[#allocation9 + $0xa40] sm:$0xff]
    %v1191 = vld [vmem:[#allocation9 + $0xa48] sm:$0xff]
    %v1192 = vld [vmem:[#allocation9 + $0xa50] sm:$0xff]
    %v1193 = vld [vmem:[#allocation9 + $0xa58] sm:$0xff]
    %v1194 = vld [vmem:[#allocation9 + $0xa60] sm:$0xff]
    %v1195 = vld [vmem:[#allocation9 + $0xa68] sm:$0xff]
    %v1196 = vld [vmem:[#allocation9 + $0xa70] sm:$0xff]
    %v1197 = vld [vmem:[#allocation9 + $0xa78] sm:$0xff]
    %v1198 = vld [vmem:[#allocation9 + $0xa80] sm:$0xff]
    %v1199 = vld [vmem:[#allocation9 + $0xa88] sm:$0xff]
    %v1200 = vld [vmem:[#allocation9 + $0xa90] sm:$0xff]
    %v1201 = vld [vmem:[#allocation9 + $0xa98] sm:$0xff]
    %v1202 = vld [vmem:[#allocation9 + $0xaa0] sm:$0xff]
    %v1203 = vld [vmem:[#allocation9 + $0xaa8] sm:$0xff]
    %v1204 = vld [vmem:[#allocation9 + $0xab0] sm:$0xff]
    %v1205 = vld [vmem:[#allocation9 + $0xab8] sm:$0xff]
    %v1206 = vld [vmem:[#allocation9 + $0xac0] sm:$0xff]
    %v1207 = vld [vmem:[#allocation9 + $0xac8] sm:$0xff]
    %v1208 = vld [vmem:[#allocation9 + $0xad0] sm:$0xff]
    %v1209 = vld [vmem:[#allocation9 + $0xad8] sm:$0xff]
    %v1210 = vld [vmem:[#allocation9 + $0xae0] sm:$0xff]
    %v1211 = vld [vmem:[#allocation9 + $0xae8] sm:$0xff]
    %v1212 = vld [vmem:[#allocation9 + $0xaf0] sm:$0xff]
    %v1213 = vld [vmem:[#allocation9 + $0xaf8] sm:$0xff]
    %v1214 = vld [vmem:[#allocation9 + $0xb00] sm:$0xff]
    %v1215 = vld [vmem:[#allocation9 + $0xb08] sm:$0xff]
    %v1216 = vld [vmem:[#allocation9 + $0xb10] sm:$0xff]
    %v1217 = vld [vmem:[#allocation9 + $0xb18] sm:$0xff]
    %v1218 = vld [vmem:[#allocation9 + $0xb20] sm:$0xff]
    %v1219 = vld [vmem:[#allocation9 + $0xb28] sm:$0xff]
    %v1220 = vld [vmem:[#allocation9 + $0xb30] sm:$0xff]
    %v1221 = vld [vmem:[#allocation9 + $0xb38] sm:$0xff]
    %v1222 = vld [vmem:[#allocation9 + $0xb40] sm:$0xff]
    %v1223 = vld [vmem:[#allocation9 + $0xb48] sm:$0xff]
    %v1224 = vld [vmem:[#allocation9 + $0xb50] sm:$0xff]
    %v1225 = vld [vmem:[#allocation9 + $0xb58] sm:$0xff]
    %v1226 = vld [vmem:[#allocation9 + $0xb60] sm:$0xff]
    %v1227 = vld [vmem:[#allocation9 + $0xb68] sm:$0xff]
    %v1228 = vld [vmem:[#allocation9 + $0xb70] sm:$0xff]
    %v1229 = vld [vmem:[#allocation9 + $0xb78] sm:$0xff]
    %v1230 = vld [vmem:[#allocation9 + $0xb80] sm:$0xff]
    %v1231 = vld [vmem:[#allocation9 + $0xb88] sm:$0xff]
    %v1232 = vld [vmem:[#allocation9 + $0xb90] sm:$0xff]
    %v1233 = vld [vmem:[#allocation9 + $0xb98] sm:$0xff]
    %v1234 = vld [vmem:[#allocation9 + $0xba0] sm:$0xff]
    %v1235 = vld [vmem:[#allocation9 + $0xba8] sm:$0xff]
    %v1236 = vld [vmem:[#allocation9 + $0xbb0] sm:$0xff]
    %v1237 = vld [vmem:[#allocation9 + $0xbb8] sm:$0xff]
    %v1238 = vld [vmem:[#allocation9 + $0xbc0] sm:$0xff]
    %v1239 = vld [vmem:[#allocation9 + $0xbc8] sm:$0xff]
    %v1240 = vld [vmem:[#allocation9 + $0xbd0] sm:$0xff]
    %v1241 = vld [vmem:[#allocation9 + $0xbd8] sm:$0xff]
    %v1242 = vld [vmem:[#allocation9 + $0xbe0] sm:$0xff]
    %v1243 = vld [vmem:[#allocation9 + $0xbe8] sm:$0xff]
    %v1244 = vld [vmem:[#allocation9 + $0xbf0] sm:$0xff]
    %v1245 = vld [vmem:[#allocation9 + $0xbf8] sm:$0xff]
    %v1246 = vld [vmem:[#allocation9 + $0xc00] sm:$0xff]
    %v1247 = vld [vmem:[#allocation9 + $0xc08] sm:$0xff]
    %v1248 = vld [vmem:[#allocation9 + $0xc10] sm:$0xff]
    %v1249 = vld [vmem:[#allocation9 + $0xc18] sm:$0xff]
    %v1250 = vld [vmem:[#allocation9 + $0xc20] sm:$0xff]
    %v1251 = vld [vmem:[#allocation9 + $0xc28] sm:$0xff]
    %v1252 = vld [vmem:[#allocation9 + $0xc30] sm:$0xff]
    %v1253 = vld [vmem:[#allocation9 + $0xc38] sm:$0xff]
    %v1254 = vld [vmem:[#allocation9 + $0xc40] sm:$0xff]
    %v1255 = vld [vmem:[#allocation9 + $0xc48] sm:$0xff]
    %v1256 = vld [vmem:[#allocation9 + $0xc50] sm:$0xff]
    %v1257 = vld [vmem:[#allocation9 + $0xc58] sm:$0xff]
    %v1258 = vld [vmem:[#allocation9 + $0xc60] sm:$0xff]
    %v1259 = vld [vmem:[#allocation9 + $0xc68] sm:$0xff]
    %v1260 = vld [vmem:[#allocation9 + $0xc70] sm:$0xff]
    %v1261 = vld [vmem:[#allocation9 + $0xc78] sm:$0xff]
    %v1262 = vld [vmem:[#allocation9 + $0xc80] sm:$0xff]
    %v1263 = vld [vmem:[#allocation9 + $0xc88] sm:$0xff]
    %v1264 = vld [vmem:[#allocation9 + $0xc90] sm:$0xff]
    %v1265 = vld [vmem:[#allocation9 + $0xc98] sm:$0xff]
    %v1266 = vld [vmem:[#allocation9 + $0xca0] sm:$0xff]
    %v1267 = vld [vmem:[#allocation9 + $0xca8] sm:$0xff]
    %v1268 = vld [vmem:[#allocation9 + $0xcb0] sm:$0xff]
    %v1269 = vld [vmem:[#allocation9 + $0xcb8] sm:$0xff]
    %v1270 = vld [vmem:[#allocation9 + $0xcc0] sm:$0xff]
    %v1271 = vld [vmem:[#allocation9 + $0xcc8] sm:$0xff]
    %v1272 = vld [vmem:[#allocation9 + $0xcd0] sm:$0xff]
    %v1273 = vld [vmem:[#allocation9 + $0xcd8] sm:$0xff]
    %v1274 = vld [vmem:[#allocation9 + $0xce0] sm:$0xff]
    %v1275 = vld [vmem:[#allocation9 + $0xce8] sm:$0xff]
    %v1276 = vld [vmem:[#allocation9 + $0xcf0] sm:$0xff]
    %v1277 = vld [vmem:[#allocation9 + $0xcf8] sm:$0xff]
    %v1278 = vld [vmem:[#allocation9 + $0xd00] sm:$0xff]
    %v1279 = vld [vmem:[#allocation9 + $0xd08] sm:$0xff]
    %v1280 = vld [vmem:[#allocation9 + $0xd10] sm:$0xff]
    %v1281 = vld [vmem:[#allocation9 + $0xd18] sm:$0xff]
    %v1282 = vld [vmem:[#allocation9 + $0xd20] sm:$0xff]
    %v1283 = vld [vmem:[#allocation9 + $0xd28] sm:$0xff]
    %v1284 = vld [vmem:[#allocation9 + $0xd30] sm:$0xff]
    %v1285 = vld [vmem:[#allocation9 + $0xd38] sm:$0xff]
    %v1286 = vld [vmem:[#allocation9 + $0xd40] sm:$0xff]
    %v1287 = vld [vmem:[#allocation9 + $0xd48] sm:$0xff]
    %v1288 = vld [vmem:[#allocation9 + $0xd50] sm:$0xff]
    %v1289 = vld [vmem:[#allocation9 + $0xd58] sm:$0xff]
    %v1290 = vld [vmem:[#allocation9 + $0xd60] sm:$0xff]
    %v1291 = vld [vmem:[#allocation9 + $0xd68] sm:$0xff]
    %v1292 = vld [vmem:[#allocation9 + $0xd70] sm:$0xff]
    %v1293 = vld [vmem:[#allocation9 + $0xd78] sm:$0xff]
    %v1294 = vld [vmem:[#allocation9 + $0xd80] sm:$0xff]
    %v1295 = vld [vmem:[#allocation9 + $0xd88] sm:$0xff]
    %v1296 = vld [vmem:[#allocation9 + $0xd90] sm:$0xff]
    %v1297 = vld [vmem:[#allocation9 + $0xd98] sm:$0xff]
    %v1298 = vld [vmem:[#allocation9 + $0xda0] sm:$0xff]
    %v1299 = vld [vmem:[#allocation9 + $0xda8] sm:$0xff]
    %v1300 = vld [vmem:[#allocation9 + $0xdb0] sm:$0xff]
    %v1301 = vld [vmem:[#allocation9 + $0xdb8] sm:$0xff]
    %v1302 = vld [vmem:[#allocation9 + $0xdc0] sm:$0xff]
    %v1303 = vld [vmem:[#allocation9 + $0xdc8] sm:$0xff]
    %v1304 = vld [vmem:[#allocation9 + $0xdd0] sm:$0xff]
    %v1305 = vld [vmem:[#allocation9 + $0xdd8] sm:$0xff]
    %v1306 = vld [vmem:[#allocation9 + $0xde0] sm:$0xff]
    %v1307 = vld [vmem:[#allocation9 + $0xde8] sm:$0xff]
    %v1308 = vld [vmem:[#allocation9 + $0xdf0] sm:$0xff]
    %v1309 = vld [vmem:[#allocation9 + $0xdf8] sm:$0xff]
    %v1310 = vld [vmem:[#allocation9 + $0xe00] sm:$0xff]
    %v1311 = vld [vmem:[#allocation9 + $0xe08] sm:$0xff]
    %v1312 = vld [vmem:[#allocation9 + $0xe10] sm:$0xff]
    %v1313 = vld [vmem:[#allocation9 + $0xe18] sm:$0xff]
    %v1314 = vld [vmem:[#allocation9 + $0xe20] sm:$0xff]
    %v1315 = vld [vmem:[#allocation9 + $0xe28] sm:$0xff]
    %v1316 = vld [vmem:[#allocation9 + $0xe30] sm:$0xff]
    %v1317 = vld [vmem:[#allocation9 + $0xe38] sm:$0xff]
    %v1318 = vld [vmem:[#allocation9 + $0xe40] sm:$0xff]
    %v1319 = vld [vmem:[#allocation9 + $0xe48] sm:$0xff]
    %v1320 = vld [vmem:[#allocation9 + $0xe50] sm:$0xff]
    %v1321 = vld [vmem:[#allocation9 + $0xe58] sm:$0xff]
    %v1322 = vld [vmem:[#allocation9 + $0xe60] sm:$0xff]
    %v1323 = vld [vmem:[#allocation9 + $0xe68] sm:$0xff]
    %v1324 = vld [vmem:[#allocation9 + $0xe70] sm:$0xff]
    %v1325 = vld [vmem:[#allocation9 + $0xe78] sm:$0xff]
    %v1326 = vld [vmem:[#allocation9 + $0xe80] sm:$0xff]
    %v1327 = vld [vmem:[#allocation9 + $0xe88] sm:$0xff]
    %v1328 = vld [vmem:[#allocation9 + $0xe90] sm:$0xff]
    %v1329 = vld [vmem:[#allocation9 + $0xe98] sm:$0xff]
    %v1330 = vld [vmem:[#allocation9 + $0xea0] sm:$0xff]
    %v1331 = vld [vmem:[#allocation9 + $0xea8] sm:$0xff]
    %v1332 = vld [vmem:[#allocation9 + $0xeb0] sm:$0xff]
    %v1333 = vld [vmem:[#allocation9 + $0xeb8] sm:$0xff]
    %v1334 = vld [vmem:[#allocation9 + $0xec0] sm:$0xff]
    %v1335 = vld [vmem:[#allocation9 + $0xec8] sm:$0xff]
    %v1336 = vld [vmem:[#allocation9 + $0xed0] sm:$0xff]
    %v1337 = vld [vmem:[#allocation9 + $0xed8] sm:$0xff]
    %v1338 = vld [vmem:[#allocation9 + $0xee0] sm:$0xff]
    %v1339 = vld [vmem:[#allocation9 + $0xee8] sm:$0xff]
    %v1340 = vld [vmem:[#allocation9 + $0xef0] sm:$0xff]
    %v1341 = vld [vmem:[#allocation9 + $0xef8] sm:$0xff]
    %v1342 = vld [vmem:[#allocation9 + $0xf00] sm:$0xff]
    %v1343 = vld [vmem:[#allocation9 + $0xf08] sm:$0xff]
    %v1344 = vld [vmem:[#allocation9 + $0xf10] sm:$0xff]
    %v1345 = vld [vmem:[#allocation9 + $0xf18] sm:$0xff]
    %v1346 = vld [vmem:[#allocation9 + $0xf20] sm:$0xff]
    %v1347 = vld [vmem:[#allocation9 + $0xf28] sm:$0xff]
    %v1348 = vld [vmem:[#allocation9 + $0xf30] sm:$0xff]
    %v1349 = vld [vmem:[#allocation9 + $0xf38] sm:$0xff]
    %v1350 = vld [vmem:[#allocation9 + $0xf40] sm:$0xff]
    %v1351 = vld [vmem:[#allocation9 + $0xf48] sm:$0xff]
    %v1352 = vld [vmem:[#allocation9 + $0xf50] sm:$0xff]
    %v1353 = vld [vmem:[#allocation9 + $0xf58] sm:$0xff]
    %v1354 = vld [vmem:[#allocation9 + $0xf60] sm:$0xff]
    %v1355 = vld [vmem:[#allocation9 + $0xf68] sm:$0xff]
    %v1356 = vld [vmem:[#allocation9 + $0xf70] sm:$0xff]
    %v1357 = vld [vmem:[#allocation9 + $0xf78] sm:$0xff]
    %v1358 = vld [vmem:[#allocation9 + $0xf80] sm:$0xff]
    %v1359 = vld [vmem:[#allocation9 + $0xf88] sm:$0xff]
    %v1360 = vld [vmem:[#allocation9 + $0xf90] sm:$0xff]
    %v1361 = vld [vmem:[#allocation9 + $0xf98] sm:$0xff]
    %v1362 = vld [vmem:[#allocation9 + $0xfa0] sm:$0xff]
    %v1363 = vld [vmem:[#allocation9 + $0xfa8] sm:$0xff]
    %v1364 = vld [vmem:[#allocation9 + $0xfb0] sm:$0xff]
    %v1365 = vld [vmem:[#allocation9 + $0xfb8] sm:$0xff]
    %v1366 = vld [vmem:[#allocation9 + $0xfc0] sm:$0xff]
    %v1367 = vld [vmem:[#allocation9 + $0xfc8] sm:$0xff]
    %v1368 = vld [vmem:[#allocation9 + $0xfd0] sm:$0xff]
    %v1369 = vld [vmem:[#allocation9 + $0xfd8] sm:$0xff]
    %v1370 = vld [vmem:[#allocation9 + $0xfe0] sm:$0xff]
    %v1371 = vld [vmem:[#allocation9 + $0xfe8] sm:$0xff]
    %v1372 = vld [vmem:[#allocation9 + $0xff0] sm:$0xff]
    %v1373 = vld [vmem:[#allocation9 + $0xff8] sm:$0xff]
    %v1886 = vunpack.c.l.b16 %v862
    %v1887 = vunpack.c.h.b16 %v862
    %v1888 = vunpack.c.l.b16 %v863
    %v1889 = vunpack.c.h.b16 %v863
    %v1890 = vunpack.c.l.b16 %v864
    %v1891 = vunpack.c.h.b16 %v864
    %v1892 = vunpack.c.l.b16 %v865
    %v1893 = vunpack.c.h.b16 %v865
    %v1894 = vunpack.c.l.b16 %v866
    %v1895 = vunpack.c.h.b16 %v866
    %v1896 = vunpack.c.l.b16 %v867
    %v1897 = vunpack.c.h.b16 %v867
    %v1898 = vunpack.c.l.b16 %v868
    %v1899 = vunpack.c.h.b16 %v868
    %v1900 = vunpack.c.l.b16 %v869
    %v1901 = vunpack.c.h.b16 %v869
    %v1902 = vunpack.c.l.b16 %v870
    %v1903 = vunpack.c.h.b16 %v870
    %v1904 = vunpack.c.l.b16 %v871
    %v1905 = vunpack.c.h.b16 %v871
    %v1906 = vunpack.c.l.b16 %v872
    %v1907 = vunpack.c.h.b16 %v872
    %v1908 = vunpack.c.l.b16 %v873
    %v1909 = vunpack.c.h.b16 %v873
    %v1910 = vunpack.c.l.b16 %v874
    %v1911 = vunpack.c.h.b16 %v874
    %v1912 = vunpack.c.l.b16 %v875
    %v1913 = vunpack.c.h.b16 %v875
    %v1914 = vunpack.c.l.b16 %v876
    %v1915 = vunpack.c.h.b16 %v876
    %v1916 = vunpack.c.l.b16 %v877
    %v1917 = vunpack.c.h.b16 %v877
    %v1918 = vunpack.c.l.b16 %v878
    %v1919 = vunpack.c.h.b16 %v878
    %v1920 = vunpack.c.l.b16 %v879
    %v1921 = vunpack.c.h.b16 %v879
    %v1922 = vunpack.c.l.b16 %v880
    %v1923 = vunpack.c.h.b16 %v880
    %v1924 = vunpack.c.l.b16 %v881
    %v1925 = vunpack.c.h.b16 %v881
    %v1926 = vunpack.c.l.b16 %v882
    %v1927 = vunpack.c.h.b16 %v882
    %v1928 = vunpack.c.l.b16 %v883
    %v1929 = vunpack.c.h.b16 %v883
    %v1930 = vunpack.c.l.b16 %v884
    %v1931 = vunpack.c.h.b16 %v884
    %v1932 = vunpack.c.l.b16 %v885
    %v1933 = vunpack.c.h.b16 %v885
    %v1934 = vunpack.c.l.b16 %v886
    %v1935 = vunpack.c.h.b16 %v886
    %v1936 = vunpack.c.l.b16 %v887
    %v1937 = vunpack.c.h.b16 %v887
    %v1938 = vunpack.c.l.b16 %v888
    %v1939 = vunpack.c.h.b16 %v888
    %v1940 = vunpack.c.l.b16 %v889
    %v1941 = vunpack.c.h.b16 %v889
    %v1942 = vunpack.c.l.b16 %v890
    %v1943 = vunpack.c.h.b16 %v890
    %v1944 = vunpack.c.l.b16 %v891
    %v1945 = vunpack.c.h.b16 %v891
    %v1946 = vunpack.c.l.b16 %v892
    %v1947 = vunpack.c.h.b16 %v892
    %v1948 = vunpack.c.l.b16 %v893
    %v1949 = vunpack.c.h.b16 %v893
    %v1950 = vunpack.c.l.b16 %v894
    %v1951 = vunpack.c.h.b16 %v894
    %v1952 = vunpack.c.l.b16 %v895
    %v1953 = vunpack.c.h.b16 %v895
    %v1954 = vunpack.c.l.b16 %v896
    %v1955 = vunpack.c.h.b16 %v896
    %v1956 = vunpack.c.l.b16 %v897
    %v1957 = vunpack.c.h.b16 %v897
    %v1958 = vunpack.c.l.b16 %v898
    %v1959 = vunpack.c.h.b16 %v898
    %v1960 = vunpack.c.l.b16 %v899
    %v1961 = vunpack.c.h.b16 %v899
    %v1962 = vunpack.c.l.b16 %v900
    %v1963 = vunpack.c.h.b16 %v900
    %v1964 = vunpack.c.l.b16 %v901
    %v1965 = vunpack.c.h.b16 %v901
    %v1966 = vunpack.c.l.b16 %v902
    %v1967 = vunpack.c.h.b16 %v902
    %v1968 = vunpack.c.l.b16 %v903
    %v1969 = vunpack.c.h.b16 %v903
    %v1970 = vunpack.c.l.b16 %v904
    %v1971 = vunpack.c.h.b16 %v904
    %v1972 = vunpack.c.l.b16 %v905
    %v1973 = vunpack.c.h.b16 %v905
    %v1974 = vunpack.c.l.b16 %v906
    %v1975 = vunpack.c.h.b16 %v906
    %v1976 = vunpack.c.l.b16 %v907
    %v1977 = vunpack.c.h.b16 %v907
    %v1978 = vunpack.c.l.b16 %v908
    %v1979 = vunpack.c.h.b16 %v908
    %v1980 = vunpack.c.l.b16 %v909
    %v1981 = vunpack.c.h.b16 %v909
    %v1982 = vunpack.c.l.b16 %v910
    %v1983 = vunpack.c.h.b16 %v910
    %v1984 = vunpack.c.l.b16 %v911
    %v1985 = vunpack.c.h.b16 %v911
    %v1986 = vunpack.c.l.b16 %v912
    %v1987 = vunpack.c.h.b16 %v912
    %v1988 = vunpack.c.l.b16 %v913
    %v1989 = vunpack.c.h.b16 %v913
    %v1990 = vunpack.c.l.b16 %v914
    %v1991 = vunpack.c.h.b16 %v914
    %v1992 = vunpack.c.l.b16 %v915
    %v1993 = vunpack.c.h.b16 %v915
    %v1994 = vunpack.c.l.b16 %v916
    %v1995 = vunpack.c.h.b16 %v916
    %v1996 = vunpack.c.l.b16 %v917
    %v1997 = vunpack.c.h.b16 %v917
    %v1998 = vunpack.c.l.b16 %v918
    %v1999 = vunpack.c.h.b16 %v918
    %v2000 = vunpack.c.l.b16 %v919
    %v2001 = vunpack.c.h.b16 %v919
    %v2002 = vunpack.c.l.b16 %v920
    %v2003 = vunpack.c.h.b16 %v920
    %v2004 = vunpack.c.l.b16 %v921
    %v2005 = vunpack.c.h.b16 %v921
    %v2006 = vunpack.c.l.b16 %v922
    %v2007 = vunpack.c.h.b16 %v922
    %v2008 = vunpack.c.l.b16 %v923
    %v2009 = vunpack.c.h.b16 %v923
    %v2010 = vunpack.c.l.b16 %v924
    %v2011 = vunpack.c.h.b16 %v924
    %v2012 = vunpack.c.l.b16 %v925
    %v2013 = vunpack.c.h.b16 %v925
    %v2014 = vunpack.c.l.b16 %v926
    %v2015 = vunpack.c.h.b16 %v926
    %v2016 = vunpack.c.l.b16 %v927
    %v2017 = vunpack.c.h.b16 %v927
    %v2018 = vunpack.c.l.b16 %v928
    %v2019 = vunpack.c.h.b16 %v928
    %v2020 = vunpack.c.l.b16 %v929
    %v2021 = vunpack.c.h.b16 %v929
    %v2022 = vunpack.c.l.b16 %v930
    %v2023 = vunpack.c.h.b16 %v930
    %v2024 = vunpack.c.l.b16 %v931
    %v2025 = vunpack.c.h.b16 %v931
    %v2026 = vunpack.c.l.b16 %v932
    %v2027 = vunpack.c.h.b16 %v932
    %v2028 = vunpack.c.l.b16 %v933
    %v2029 = vunpack.c.h.b16 %v933
    %v2030 = vunpack.c.l.b16 %v934
    %v2031 = vunpack.c.h.b16 %v934
    %v2032 = vunpack.c.l.b16 %v935
    %v2033 = vunpack.c.h.b16 %v935
    %v2034 = vunpack.c.l.b16 %v936
    %v2035 = vunpack.c.h.b16 %v936
    %v2036 = vunpack.c.l.b16 %v937
    %v2037 = vunpack.c.h.b16 %v937
    %v2038 = vunpack.c.l.b16 %v938
    %v2039 = vunpack.c.h.b16 %v938
    %v2040 = vunpack.c.l.b16 %v939
    %v2041 = vunpack.c.h.b16 %v939
    %v2042 = vunpack.c.l.b16 %v940
    %v2043 = vunpack.c.h.b16 %v940
    %v2044 = vunpack.c.l.b16 %v941
    %v2045 = vunpack.c.h.b16 %v941
    %v2046 = vunpack.c.l.b16 %v942
    %v2047 = vunpack.c.h.b16 %v942
    %v2048 = vunpack.c.l.b16 %v943
    %v2049 = vunpack.c.h.b16 %v943
    %v2050 = vunpack.c.l.b16 %v944
    %v2051 = vunpack.c.h.b16 %v944
    %v2052 = vunpack.c.l.b16 %v945
    %v2053 = vunpack.c.h.b16 %v945
    %v2054 = vunpack.c.l.b16 %v946
    %v2055 = vunpack.c.h.b16 %v946
    %v2056 = vunpack.c.l.b16 %v947
    %v2057 = vunpack.c.h.b16 %v947
    %v2058 = vunpack.c.l.b16 %v948
    %v2059 = vunpack.c.h.b16 %v948
    %v2060 = vunpack.c.l.b16 %v949
    %v2061 = vunpack.c.h.b16 %v949
    %v2062 = vunpack.c.l.b16 %v950
    %v2063 = vunpack.c.h.b16 %v950
    %v2064 = vunpack.c.l.b16 %v951
    %v2065 = vunpack.c.h.b16 %v951
    %v2066 = vunpack.c.l.b16 %v952
    %v2067 = vunpack.c.h.b16 %v952
    %v2068 = vunpack.c.l.b16 %v953
    %v2069 = vunpack.c.h.b16 %v953
    %v2070 = vunpack.c.l.b16 %v954
    %v2071 = vunpack.c.h.b16 %v954
    %v2072 = vunpack.c.l.b16 %v955
    %v2073 = vunpack.c.h.b16 %v955
    %v2074 = vunpack.c.l.b16 %v956
    %v2075 = vunpack.c.h.b16 %v956
    %v2076 = vunpack.c.l.b16 %v957
    %v2077 = vunpack.c.h.b16 %v957
    %v2078 = vunpack.c.l.b16 %v958
    %v2079 = vunpack.c.h.b16 %v958
    %v2080 = vunpack.c.l.b16 %v959
    %v2081 = vunpack.c.h.b16 %v959
    %v2082 = vunpack.c.l.b16 %v960
    %v2083 = vunpack.c.h.b16 %v960
    %v2084 = vunpack.c.l.b16 %v961
    %v2085 = vunpack.c.h.b16 %v961
    %v2086 = vunpack.c.l.b16 %v962
    %v2087 = vunpack.c.h.b16 %v962
    %v2088 = vunpack.c.l.b16 %v963
    %v2089 = vunpack.c.h.b16 %v963
    %v2090 = vunpack.c.l.b16 %v964
    %v2091 = vunpack.c.h.b16 %v964
    %v2092 = vunpack.c.l.b16 %v965
    %v2093 = vunpack.c.h.b16 %v965
    %v2094 = vunpack.c.l.b16 %v966
    %v2095 = vunpack.c.h.b16 %v966
    %v2096 = vunpack.c.l.b16 %v967
    %v2097 = vunpack.c.h.b16 %v967
    %v2098 = vunpack.c.l.b16 %v968
    %v2099 = vunpack.c.h.b16 %v968
    %v2100 = vunpack.c.l.b16 %v969
    %v2101 = vunpack.c.h.b16 %v969
    %v2102 = vunpack.c.l.b16 %v970
    %v2103 = vunpack.c.h.b16 %v970
    %v2104 = vunpack.c.l.b16 %v971
    %v2105 = vunpack.c.h.b16 %v971
    %v2106 = vunpack.c.l.b16 %v972
    %v2107 = vunpack.c.h.b16 %v972
    %v2108 = vunpack.c.l.b16 %v973
    %v2109 = vunpack.c.h.b16 %v973
    %v2110 = vunpack.c.l.b16 %v974
    %v2111 = vunpack.c.h.b16 %v974
    %v2112 = vunpack.c.l.b16 %v975
    %v2113 = vunpack.c.h.b16 %v975
    %v2114 = vunpack.c.l.b16 %v976
    %v2115 = vunpack.c.h.b16 %v976
    %v2116 = vunpack.c.l.b16 %v977
    %v2117 = vunpack.c.h.b16 %v977
    %v2118 = vunpack.c.l.b16 %v978
    %v2119 = vunpack.c.h.b16 %v978
    %v2120 = vunpack.c.l.b16 %v979
    %v2121 = vunpack.c.h.b16 %v979
    %v2122 = vunpack.c.l.b16 %v980
    %v2123 = vunpack.c.h.b16 %v980
    %v2124 = vunpack.c.l.b16 %v981
    %v2125 = vunpack.c.h.b16 %v981
    %v2126 = vunpack.c.l.b16 %v982
    %v2127 = vunpack.c.h.b16 %v982
    %v2128 = vunpack.c.l.b16 %v983
    %v2129 = vunpack.c.h.b16 %v983
    %v2130 = vunpack.c.l.b16 %v984
    %v2131 = vunpack.c.h.b16 %v984
    %v2132 = vunpack.c.l.b16 %v985
    %v2133 = vunpack.c.h.b16 %v985
    %v2134 = vunpack.c.l.b16 %v986
    %v2135 = vunpack.c.h.b16 %v986
    %v2136 = vunpack.c.l.b16 %v987
    %v2137 = vunpack.c.h.b16 %v987
    %v2138 = vunpack.c.l.b16 %v988
    %v2139 = vunpack.c.h.b16 %v988
    %v2140 = vunpack.c.l.b16 %v989
    %v2141 = vunpack.c.h.b16 %v989
    %v2142 = vunpack.c.l.b16 %v990
    %v2143 = vunpack.c.h.b16 %v990
    %v2144 = vunpack.c.l.b16 %v991
    %v2145 = vunpack.c.h.b16 %v991
    %v2146 = vunpack.c.l.b16 %v992
    %v2147 = vunpack.c.h.b16 %v992
    %v2148 = vunpack.c.l.b16 %v993
    %v2149 = vunpack.c.h.b16 %v993
    %v2150 = vunpack.c.l.b16 %v994
    %v2151 = vunpack.c.h.b16 %v994
    %v2152 = vunpack.c.l.b16 %v995
    %v2153 = vunpack.c.h.b16 %v995
    %v2154 = vunpack.c.l.b16 %v996
    %v2155 = vunpack.c.h.b16 %v996
    %v2156 = vunpack.c.l.b16 %v997
    %v2157 = vunpack.c.h.b16 %v997
    %v2158 = vunpack.c.l.b16 %v998
    %v2159 = vunpack.c.h.b16 %v998
    %v2160 = vunpack.c.l.b16 %v999
    %v2161 = vunpack.c.h.b16 %v999
    %v2162 = vunpack.c.l.b16 %v1000
    %v2163 = vunpack.c.h.b16 %v1000
    %v2164 = vunpack.c.l.b16 %v1001
    %v2165 = vunpack.c.h.b16 %v1001
    %v2166 = vunpack.c.l.b16 %v1002
    %v2167 = vunpack.c.h.b16 %v1002
    %v2168 = vunpack.c.l.b16 %v1003
    %v2169 = vunpack.c.h.b16 %v1003
    %v2170 = vunpack.c.l.b16 %v1004
    %v2171 = vunpack.c.h.b16 %v1004
    %v2172 = vunpack.c.l.b16 %v1005
    %v2173 = vunpack.c.h.b16 %v1005
    %v2174 = vunpack.c.l.b16 %v1006
    %v2175 = vunpack.c.h.b16 %v1006
    %v2176 = vunpack.c.l.b16 %v1007
    %v2177 = vunpack.c.h.b16 %v1007
    %v2178 = vunpack.c.l.b16 %v1008
    %v2179 = vunpack.c.h.b16 %v1008
    %v2180 = vunpack.c.l.b16 %v1009
    %v2181 = vunpack.c.h.b16 %v1009
    %v2182 = vunpack.c.l.b16 %v1010
    %v2183 = vunpack.c.h.b16 %v1010
    %v2184 = vunpack.c.l.b16 %v1011
    %v2185 = vunpack.c.h.b16 %v1011
    %v2186 = vunpack.c.l.b16 %v1012
    %v2187 = vunpack.c.h.b16 %v1012
    %v2188 = vunpack.c.l.b16 %v1013
    %v2189 = vunpack.c.h.b16 %v1013
    %v2190 = vunpack.c.l.b16 %v1014
    %v2191 = vunpack.c.h.b16 %v1014
    %v2192 = vunpack.c.l.b16 %v1015
    %v2193 = vunpack.c.h.b16 %v1015
    %v2194 = vunpack.c.l.b16 %v1016
    %v2195 = vunpack.c.h.b16 %v1016
    %v2196 = vunpack.c.l.b16 %v1017
    %v2197 = vunpack.c.h.b16 %v1017
    %v2198 = vunpack.c.l.b16 %v1018
    %v2199 = vunpack.c.h.b16 %v1018
    %v2200 = vunpack.c.l.b16 %v1019
    %v2201 = vunpack.c.h.b16 %v1019
    %v2202 = vunpack.c.l.b16 %v1020
    %v2203 = vunpack.c.h.b16 %v1020
    %v2204 = vunpack.c.l.b16 %v1021
    %v2205 = vunpack.c.h.b16 %v1021
    %v2206 = vunpack.c.l.b16 %v1022
    %v2207 = vunpack.c.h.b16 %v1022
    %v2208 = vunpack.c.l.b16 %v1023
    %v2209 = vunpack.c.h.b16 %v1023
    %v2210 = vunpack.c.l.b16 %v1024
    %v2211 = vunpack.c.h.b16 %v1024
    %v2212 = vunpack.c.l.b16 %v1025
    %v2213 = vunpack.c.h.b16 %v1025
    %v2214 = vunpack.c.l.b16 %v1026
    %v2215 = vunpack.c.h.b16 %v1026
    %v2216 = vunpack.c.l.b16 %v1027
    %v2217 = vunpack.c.h.b16 %v1027
    %v2218 = vunpack.c.l.b16 %v1028
    %v2219 = vunpack.c.h.b16 %v1028
    %v2220 = vunpack.c.l.b16 %v1029
    %v2221 = vunpack.c.h.b16 %v1029
    %v2222 = vunpack.c.l.b16 %v1030
    %v2223 = vunpack.c.h.b16 %v1030
    %v2224 = vunpack.c.l.b16 %v1031
    %v2225 = vunpack.c.h.b16 %v1031
    %v2226 = vunpack.c.l.b16 %v1032
    %v2227 = vunpack.c.h.b16 %v1032
    %v2228 = vunpack.c.l.b16 %v1033
    %v2229 = vunpack.c.h.b16 %v1033
    %v2230 = vunpack.c.l.b16 %v1034
    %v2231 = vunpack.c.h.b16 %v1034
    %v2232 = vunpack.c.l.b16 %v1035
    %v2233 = vunpack.c.h.b16 %v1035
    %v2234 = vunpack.c.l.b16 %v1036
    %v2235 = vunpack.c.h.b16 %v1036
    %v2236 = vunpack.c.l.b16 %v1037
    %v2237 = vunpack.c.h.b16 %v1037
    %v2238 = vunpack.c.l.b16 %v1038
    %v2239 = vunpack.c.h.b16 %v1038
    %v2240 = vunpack.c.l.b16 %v1039
    %v2241 = vunpack.c.h.b16 %v1039
    %v2242 = vunpack.c.l.b16 %v1040
    %v2243 = vunpack.c.h.b16 %v1040
    %v2244 = vunpack.c.l.b16 %v1041
    %v2245 = vunpack.c.h.b16 %v1041
    %v2246 = vunpack.c.l.b16 %v1042
    %v2247 = vunpack.c.h.b16 %v1042
    %v2248 = vunpack.c.l.b16 %v1043
    %v2249 = vunpack.c.h.b16 %v1043
    %v2250 = vunpack.c.l.b16 %v1044
    %v2251 = vunpack.c.h.b16 %v1044
    %v2252 = vunpack.c.l.b16 %v1045
    %v2253 = vunpack.c.h.b16 %v1045
    %v2254 = vunpack.c.l.b16 %v1046
    %v2255 = vunpack.c.h.b16 %v1046
    %v2256 = vunpack.c.l.b16 %v1047
    %v2257 = vunpack.c.h.b16 %v1047
    %v2258 = vunpack.c.l.b16 %v1048
    %v2259 = vunpack.c.h.b16 %v1048
    %v2260 = vunpack.c.l.b16 %v1049
    %v2261 = vunpack.c.h.b16 %v1049
    %v2262 = vunpack.c.l.b16 %v1050
    %v2263 = vunpack.c.h.b16 %v1050
    %v2264 = vunpack.c.l.b16 %v1051
    %v2265 = vunpack.c.h.b16 %v1051
    %v2266 = vunpack.c.l.b16 %v1052
    %v2267 = vunpack.c.h.b16 %v1052
    %v2268 = vunpack.c.l.b16 %v1053
    %v2269 = vunpack.c.h.b16 %v1053
    %v2270 = vunpack.c.l.b16 %v1054
    %v2271 = vunpack.c.h.b16 %v1054
    %v2272 = vunpack.c.l.b16 %v1055
    %v2273 = vunpack.c.h.b16 %v1055
    %v2274 = vunpack.c.l.b16 %v1056
    %v2275 = vunpack.c.h.b16 %v1056
    %v2276 = vunpack.c.l.b16 %v1057
    %v2277 = vunpack.c.h.b16 %v1057
    %v2278 = vunpack.c.l.b16 %v1058
    %v2279 = vunpack.c.h.b16 %v1058
    %v2280 = vunpack.c.l.b16 %v1059
    %v2281 = vunpack.c.h.b16 %v1059
    %v2282 = vunpack.c.l.b16 %v1060
    %v2283 = vunpack.c.h.b16 %v1060
    %v2284 = vunpack.c.l.b16 %v1061
    %v2285 = vunpack.c.h.b16 %v1061
    %v2286 = vunpack.c.l.b16 %v1062
    %v2287 = vunpack.c.h.b16 %v1062
    %v2288 = vunpack.c.l.b16 %v1063
    %v2289 = vunpack.c.h.b16 %v1063
    %v2290 = vunpack.c.l.b16 %v1064
    %v2291 = vunpack.c.h.b16 %v1064
    %v2292 = vunpack.c.l.b16 %v1065
    %v2293 = vunpack.c.h.b16 %v1065
    %v2294 = vunpack.c.l.b16 %v1066
    %v2295 = vunpack.c.h.b16 %v1066
    %v2296 = vunpack.c.l.b16 %v1067
    %v2297 = vunpack.c.h.b16 %v1067
    %v2298 = vunpack.c.l.b16 %v1068
    %v2299 = vunpack.c.h.b16 %v1068
    %v2300 = vunpack.c.l.b16 %v1069
    %v2301 = vunpack.c.h.b16 %v1069
    %v2302 = vunpack.c.l.b16 %v1070
    %v2303 = vunpack.c.h.b16 %v1070
    %v2304 = vunpack.c.l.b16 %v1071
    %v2305 = vunpack.c.h.b16 %v1071
    %v2306 = vunpack.c.l.b16 %v1072
    %v2307 = vunpack.c.h.b16 %v1072
    %v2308 = vunpack.c.l.b16 %v1073
    %v2309 = vunpack.c.h.b16 %v1073
    %v2310 = vunpack.c.l.b16 %v1074
    %v2311 = vunpack.c.h.b16 %v1074
    %v2312 = vunpack.c.l.b16 %v1075
    %v2313 = vunpack.c.h.b16 %v1075
    %v2314 = vunpack.c.l.b16 %v1076
    %v2315 = vunpack.c.h.b16 %v1076
    %v2316 = vunpack.c.l.b16 %v1077
    %v2317 = vunpack.c.h.b16 %v1077
    %v2318 = vunpack.c.l.b16 %v1078
    %v2319 = vunpack.c.h.b16 %v1078
    %v2320 = vunpack.c.l.b16 %v1079
    %v2321 = vunpack.c.h.b16 %v1079
    %v2322 = vunpack.c.l.b16 %v1080
    %v2323 = vunpack.c.h.b16 %v1080
    %v2324 = vunpack.c.l.b16 %v1081
    %v2325 = vunpack.c.h.b16 %v1081
    %v2326 = vunpack.c.l.b16 %v1082
    %v2327 = vunpack.c.h.b16 %v1082
    %v2328 = vunpack.c.l.b16 %v1083
    %v2329 = vunpack.c.h.b16 %v1083
    %v2330 = vunpack.c.l.b16 %v1084
    %v2331 = vunpack.c.h.b16 %v1084
    %v2332 = vunpack.c.l.b16 %v1085
    %v2333 = vunpack.c.h.b16 %v1085
    %v2334 = vunpack.c.l.b16 %v1086
    %v2335 = vunpack.c.h.b16 %v1086
    %v2336 = vunpack.c.l.b16 %v1087
    %v2337 = vunpack.c.h.b16 %v1087
    %v2338 = vunpack.c.l.b16 %v1088
    %v2339 = vunpack.c.h.b16 %v1088
    %v2340 = vunpack.c.l.b16 %v1089
    %v2341 = vunpack.c.h.b16 %v1089
    %v2342 = vunpack.c.l.b16 %v1090
    %v2343 = vunpack.c.h.b16 %v1090
    %v2344 = vunpack.c.l.b16 %v1091
    %v2345 = vunpack.c.h.b16 %v1091
    %v2346 = vunpack.c.l.b16 %v1092
    %v2347 = vunpack.c.h.b16 %v1092
    %v2348 = vunpack.c.l.b16 %v1093
    %v2349 = vunpack.c.h.b16 %v1093
    %v2350 = vunpack.c.l.b16 %v1094
    %v2351 = vunpack.c.h.b16 %v1094
    %v2352 = vunpack.c.l.b16 %v1095
    %v2353 = vunpack.c.h.b16 %v1095
    %v2354 = vunpack.c.l.b16 %v1096
    %v2355 = vunpack.c.h.b16 %v1096
    %v2356 = vunpack.c.l.b16 %v1097
    %v2357 = vunpack.c.h.b16 %v1097
    %v2358 = vunpack.c.l.b16 %v1098
    %v2359 = vunpack.c.h.b16 %v1098
    %v2360 = vunpack.c.l.b16 %v1099
    %v2361 = vunpack.c.h.b16 %v1099
    %v2362 = vunpack.c.l.b16 %v1100
    %v2363 = vunpack.c.h.b16 %v1100
    %v2364 = vunpack.c.l.b16 %v1101
    %v2365 = vunpack.c.h.b16 %v1101
    %v2366 = vunpack.c.l.b16 %v1102
    %v2367 = vunpack.c.h.b16 %v1102
    %v2368 = vunpack.c.l.b16 %v1103
    %v2369 = vunpack.c.h.b16 %v1103
    %v2370 = vunpack.c.l.b16 %v1104
    %v2371 = vunpack.c.h.b16 %v1104
    %v2372 = vunpack.c.l.b16 %v1105
    %v2373 = vunpack.c.h.b16 %v1105
    %v2374 = vunpack.c.l.b16 %v1106
    %v2375 = vunpack.c.h.b16 %v1106
    %v2376 = vunpack.c.l.b16 %v1107
    %v2377 = vunpack.c.h.b16 %v1107
    %v2378 = vunpack.c.l.b16 %v1108
    %v2379 = vunpack.c.h.b16 %v1108
    %v2380 = vunpack.c.l.b16 %v1109
    %v2381 = vunpack.c.h.b16 %v1109
    %v2382 = vunpack.c.l.b16 %v1110
    %v2383 = vunpack.c.h.b16 %v1110
    %v2384 = vunpack.c.l.b16 %v1111
    %v2385 = vunpack.c.h.b16 %v1111
    %v2386 = vunpack.c.l.b16 %v1112
    %v2387 = vunpack.c.h.b16 %v1112
    %v2388 = vunpack.c.l.b16 %v1113
    %v2389 = vunpack.c.h.b16 %v1113
    %v2390 = vunpack.c.l.b16 %v1114
    %v2391 = vunpack.c.h.b16 %v1114
    %v2392 = vunpack.c.l.b16 %v1115
    %v2393 = vunpack.c.h.b16 %v1115
    %v2394 = vunpack.c.l.b16 %v1116
    %v2395 = vunpack.c.h.b16 %v1116
    %v2396 = vunpack.c.l.b16 %v1117
    %v2397 = vunpack.c.h.b16 %v1117
    %v2398 = vunpack.c.l.b16 %v1118
    %v2399 = vunpack.c.h.b16 %v1118
    %v2400 = vunpack.c.l.b16 %v1119
    %v2401 = vunpack.c.h.b16 %v1119
    %v2402 = vunpack.c.l.b16 %v1120
    %v2403 = vunpack.c.h.b16 %v1120
    %v2404 = vunpack.c.l.b16 %v1121
    %v2405 = vunpack.c.h.b16 %v1121
    %v2406 = vunpack.c.l.b16 %v1122
    %v2407 = vunpack.c.h.b16 %v1122
    %v2408 = vunpack.c.l.b16 %v1123
    %v2409 = vunpack.c.h.b16 %v1123
    %v2410 = vunpack.c.l.b16 %v1124
    %v2411 = vunpack.c.h.b16 %v1124
    %v2412 = vunpack.c.l.b16 %v1125
    %v2413 = vunpack.c.h.b16 %v1125
    %v2414 = vunpack.c.l.b16 %v1126
    %v2415 = vunpack.c.h.b16 %v1126
    %v2416 = vunpack.c.l.b16 %v1127
    %v2417 = vunpack.c.h.b16 %v1127
    %v2418 = vunpack.c.l.b16 %v1128
    %v2419 = vunpack.c.h.b16 %v1128
    %v2420 = vunpack.c.l.b16 %v1129
    %v2421 = vunpack.c.h.b16 %v1129
    %v2422 = vunpack.c.l.b16 %v1130
    %v2423 = vunpack.c.h.b16 %v1130
    %v2424 = vunpack.c.l.b16 %v1131
    %v2425 = vunpack.c.h.b16 %v1131
    %v2426 = vunpack.c.l.b16 %v1132
    %v2427 = vunpack.c.h.b16 %v1132
    %v2428 = vunpack.c.l.b16 %v1133
    %v2429 = vunpack.c.h.b16 %v1133
    %v2430 = vunpack.c.l.b16 %v1134
    %v2431 = vunpack.c.h.b16 %v1134
    %v2432 = vunpack.c.l.b16 %v1135
    %v2433 = vunpack.c.h.b16 %v1135
    %v2434 = vunpack.c.l.b16 %v1136
    %v2435 = vunpack.c.h.b16 %v1136
    %v2436 = vunpack.c.l.b16 %v1137
    %v2437 = vunpack.c.h.b16 %v1137
    %v2438 = vunpack.c.l.b16 %v1138
    %v2439 = vunpack.c.h.b16 %v1138
    %v2440 = vunpack.c.l.b16 %v1139
    %v2441 = vunpack.c.h.b16 %v1139
    %v2442 = vunpack.c.l.b16 %v1140
    %v2443 = vunpack.c.h.b16 %v1140
    %v2444 = vunpack.c.l.b16 %v1141
    %v2445 = vunpack.c.h.b16 %v1141
    %v2446 = vunpack.c.l.b16 %v1142
    %v2447 = vunpack.c.h.b16 %v1142
    %v2448 = vunpack.c.l.b16 %v1143
    %v2449 = vunpack.c.h.b16 %v1143
    %v2450 = vunpack.c.l.b16 %v1144
    %v2451 = vunpack.c.h.b16 %v1144
    %v2452 = vunpack.c.l.b16 %v1145
    %v2453 = vunpack.c.h.b16 %v1145
    %v2454 = vunpack.c.l.b16 %v1146
    %v2455 = vunpack.c.h.b16 %v1146
    %v2456 = vunpack.c.l.b16 %v1147
    %v2457 = vunpack.c.h.b16 %v1147
    %v2458 = vunpack.c.l.b16 %v1148
    %v2459 = vunpack.c.h.b16 %v1148
    %v2460 = vunpack.c.l.b16 %v1149
    %v2461 = vunpack.c.h.b16 %v1149
    %v2462 = vunpack.c.l.b16 %v1150
    %v2463 = vunpack.c.h.b16 %v1150
    %v2464 = vunpack.c.l.b16 %v1151
    %v2465 = vunpack.c.h.b16 %v1151
    %v2466 = vunpack.c.l.b16 %v1152
    %v2467 = vunpack.c.h.b16 %v1152
    %v2468 = vunpack.c.l.b16 %v1153
    %v2469 = vunpack.c.h.b16 %v1153
    %v2470 = vunpack.c.l.b16 %v1154
    %v2471 = vunpack.c.h.b16 %v1154
    %v2472 = vunpack.c.l.b16 %v1155
    %v2473 = vunpack.c.h.b16 %v1155
    %v2474 = vunpack.c.l.b16 %v1156
    %v2475 = vunpack.c.h.b16 %v1156
    %v2476 = vunpack.c.l.b16 %v1157
    %v2477 = vunpack.c.h.b16 %v1157
    %v2478 = vunpack.c.l.b16 %v1158
    %v2479 = vunpack.c.h.b16 %v1158
    %v2480 = vunpack.c.l.b16 %v1159
    %v2481 = vunpack.c.h.b16 %v1159
    %v2482 = vunpack.c.l.b16 %v1160
    %v2483 = vunpack.c.h.b16 %v1160
    %v2484 = vunpack.c.l.b16 %v1161
    %v2485 = vunpack.c.h.b16 %v1161
    %v2486 = vunpack.c.l.b16 %v1162
    %v2487 = vunpack.c.h.b16 %v1162
    %v2488 = vunpack.c.l.b16 %v1163
    %v2489 = vunpack.c.h.b16 %v1163
    %v2490 = vunpack.c.l.b16 %v1164
    %v2491 = vunpack.c.h.b16 %v1164
    %v2492 = vunpack.c.l.b16 %v1165
    %v2493 = vunpack.c.h.b16 %v1165
    %v2494 = vunpack.c.l.b16 %v1166
    %v2495 = vunpack.c.h.b16 %v1166
    %v2496 = vunpack.c.l.b16 %v1167
    %v2497 = vunpack.c.h.b16 %v1167
    %v2498 = vunpack.c.l.b16 %v1168
    %v2499 = vunpack.c.h.b16 %v1168
    %v2500 = vunpack.c.l.b16 %v1169
    %v2501 = vunpack.c.h.b16 %v1169
    %v2502 = vunpack.c.l.b16 %v1170
    %v2503 = vunpack.c.h.b16 %v1170
    %v2504 = vunpack.c.l.b16 %v1171
    %v2505 = vunpack.c.h.b16 %v1171
    %v2506 = vunpack.c.l.b16 %v1172
    %v2507 = vunpack.c.h.b16 %v1172
    %v2508 = vunpack.c.l.b16 %v1173
    %v2509 = vunpack.c.h.b16 %v1173
    %v2510 = vunpack.c.l.b16 %v1174
    %v2511 = vunpack.c.h.b16 %v1174
    %v2512 = vunpack.c.l.b16 %v1175
    %v2513 = vunpack.c.h.b16 %v1175
    %v2514 = vunpack.c.l.b16 %v1176
    %v2515 = vunpack.c.h.b16 %v1176
    %v2516 = vunpack.c.l.b16 %v1177
    %v2517 = vunpack.c.h.b16 %v1177
    %v2518 = vunpack.c.l.b16 %v1178
    %v2519 = vunpack.c.h.b16 %v1178
    %v2520 = vunpack.c.l.b16 %v1179
    %v2521 = vunpack.c.h.b16 %v1179
    %v2522 = vunpack.c.l.b16 %v1180
    %v2523 = vunpack.c.h.b16 %v1180
    %v2524 = vunpack.c.l.b16 %v1181
    %v2525 = vunpack.c.h.b16 %v1181
    %v2526 = vunpack.c.l.b16 %v1182
    %v2527 = vunpack.c.h.b16 %v1182
    %v2528 = vunpack.c.l.b16 %v1183
    %v2529 = vunpack.c.h.b16 %v1183
    %v2530 = vunpack.c.l.b16 %v1184
    %v2531 = vunpack.c.h.b16 %v1184
    %v2532 = vunpack.c.l.b16 %v1185
    %v2533 = vunpack.c.h.b16 %v1185
    %v2534 = vunpack.c.l.b16 %v1186
    %v2535 = vunpack.c.h.b16 %v1186
    %v2536 = vunpack.c.l.b16 %v1187
    %v2537 = vunpack.c.h.b16 %v1187
    %v2538 = vunpack.c.l.b16 %v1188
    %v2539 = vunpack.c.h.b16 %v1188
    %v2540 = vunpack.c.l.b16 %v1189
    %v2541 = vunpack.c.h.b16 %v1189
    %v2542 = vunpack.c.l.b16 %v1190
    %v2543 = vunpack.c.h.b16 %v1190
    %v2544 = vunpack.c.l.b16 %v1191
    %v2545 = vunpack.c.h.b16 %v1191
    %v2546 = vunpack.c.l.b16 %v1192
    %v2547 = vunpack.c.h.b16 %v1192
    %v2548 = vunpack.c.l.b16 %v1193
    %v2549 = vunpack.c.h.b16 %v1193
    %v2550 = vunpack.c.l.b16 %v1194
    %v2551 = vunpack.c.h.b16 %v1194
    %v2552 = vunpack.c.l.b16 %v1195
    %v2553 = vunpack.c.h.b16 %v1195
    %v2554 = vunpack.c.l.b16 %v1196
    %v2555 = vunpack.c.h.b16 %v1196
    %v2556 = vunpack.c.l.b16 %v1197
    %v2557 = vunpack.c.h.b16 %v1197
    %v2558 = vunpack.c.l.b16 %v1198
    %v2559 = vunpack.c.h.b16 %v1198
    %v2560 = vunpack.c.l.b16 %v1199
    %v2561 = vunpack.c.h.b16 %v1199
    %v2562 = vunpack.c.l.b16 %v1200
    %v2563 = vunpack.c.h.b16 %v1200
    %v2564 = vunpack.c.l.b16 %v1201
    %v2565 = vunpack.c.h.b16 %v1201
    %v2566 = vunpack.c.l.b16 %v1202
    %v2567 = vunpack.c.h.b16 %v1202
    %v2568 = vunpack.c.l.b16 %v1203
    %v2569 = vunpack.c.h.b16 %v1203
    %v2570 = vunpack.c.l.b16 %v1204
    %v2571 = vunpack.c.h.b16 %v1204
    %v2572 = vunpack.c.l.b16 %v1205
    %v2573 = vunpack.c.h.b16 %v1205
    %v2574 = vunpack.c.l.b16 %v1206
    %v2575 = vunpack.c.h.b16 %v1206
    %v2576 = vunpack.c.l.b16 %v1207
    %v2577 = vunpack.c.h.b16 %v1207
    %v2578 = vunpack.c.l.b16 %v1208
    %v2579 = vunpack.c.h.b16 %v1208
    %v2580 = vunpack.c.l.b16 %v1209
    %v2581 = vunpack.c.h.b16 %v1209
    %v2582 = vunpack.c.l.b16 %v1210
    %v2583 = vunpack.c.h.b16 %v1210
    %v2584 = vunpack.c.l.b16 %v1211
    %v2585 = vunpack.c.h.b16 %v1211
    %v2586 = vunpack.c.l.b16 %v1212
    %v2587 = vunpack.c.h.b16 %v1212
    %v2588 = vunpack.c.l.b16 %v1213
    %v2589 = vunpack.c.h.b16 %v1213
    %v2590 = vunpack.c.l.b16 %v1214
    %v2591 = vunpack.c.h.b16 %v1214
    %v2592 = vunpack.c.l.b16 %v1215
    %v2593 = vunpack.c.h.b16 %v1215
    %v2594 = vunpack.c.l.b16 %v1216
    %v2595 = vunpack.c.h.b16 %v1216
    %v2596 = vunpack.c.l.b16 %v1217
    %v2597 = vunpack.c.h.b16 %v1217
    %v2598 = vunpack.c.l.b16 %v1218
    %v2599 = vunpack.c.h.b16 %v1218
    %v2600 = vunpack.c.l.b16 %v1219
    %v2601 = vunpack.c.h.b16 %v1219
    %v2602 = vunpack.c.l.b16 %v1220
    %v2603 = vunpack.c.h.b16 %v1220
    %v2604 = vunpack.c.l.b16 %v1221
    %v2605 = vunpack.c.h.b16 %v1221
    %v2606 = vunpack.c.l.b16 %v1222
    %v2607 = vunpack.c.h.b16 %v1222
    %v2608 = vunpack.c.l.b16 %v1223
    %v2609 = vunpack.c.h.b16 %v1223
    %v2610 = vunpack.c.l.b16 %v1224
    %v2611 = vunpack.c.h.b16 %v1224
    %v2612 = vunpack.c.l.b16 %v1225
    %v2613 = vunpack.c.h.b16 %v1225
    %v2614 = vunpack.c.l.b16 %v1226
    %v2615 = vunpack.c.h.b16 %v1226
    %v2616 = vunpack.c.l.b16 %v1227
    %v2617 = vunpack.c.h.b16 %v1227
    %v2618 = vunpack.c.l.b16 %v1228
    %v2619 = vunpack.c.h.b16 %v1228
    %v2620 = vunpack.c.l.b16 %v1229
    %v2621 = vunpack.c.h.b16 %v1229
    %v2622 = vunpack.c.l.b16 %v1230
    %v2623 = vunpack.c.h.b16 %v1230
    %v2624 = vunpack.c.l.b16 %v1231
    %v2625 = vunpack.c.h.b16 %v1231
    %v2626 = vunpack.c.l.b16 %v1232
    %v2627 = vunpack.c.h.b16 %v1232
    %v2628 = vunpack.c.l.b16 %v1233
    %v2629 = vunpack.c.h.b16 %v1233
    %v2630 = vunpack.c.l.b16 %v1234
    %v2631 = vunpack.c.h.b16 %v1234
    %v2632 = vunpack.c.l.b16 %v1235
    %v2633 = vunpack.c.h.b16 %v1235
    %v2634 = vunpack.c.l.b16 %v1236
    %v2635 = vunpack.c.h.b16 %v1236
    %v2636 = vunpack.c.l.b16 %v1237
    %v2637 = vunpack.c.h.b16 %v1237
    %v2638 = vunpack.c.l.b16 %v1238
    %v2639 = vunpack.c.h.b16 %v1238
    %v2640 = vunpack.c.l.b16 %v1239
    %v2641 = vunpack.c.h.b16 %v1239
    %v2642 = vunpack.c.l.b16 %v1240
    %v2643 = vunpack.c.h.b16 %v1240
    %v2644 = vunpack.c.l.b16 %v1241
    %v2645 = vunpack.c.h.b16 %v1241
    %v2646 = vunpack.c.l.b16 %v1242
    %v2647 = vunpack.c.h.b16 %v1242
    %v2648 = vunpack.c.l.b16 %v1243
    %v2649 = vunpack.c.h.b16 %v1243
    %v2650 = vunpack.c.l.b16 %v1244
    %v2651 = vunpack.c.h.b16 %v1244
    %v2652 = vunpack.c.l.b16 %v1245
    %v2653 = vunpack.c.h.b16 %v1245
    %v2654 = vunpack.c.l.b16 %v1246
    %v2655 = vunpack.c.h.b16 %v1246
    %v2656 = vunpack.c.l.b16 %v1247
    %v2657 = vunpack.c.h.b16 %v1247
    %v2658 = vunpack.c.l.b16 %v1248
    %v2659 = vunpack.c.h.b16 %v1248
    %v2660 = vunpack.c.l.b16 %v1249
    %v2661 = vunpack.c.h.b16 %v1249
    %v2662 = vunpack.c.l.b16 %v1250
    %v2663 = vunpack.c.h.b16 %v1250
    %v2664 = vunpack.c.l.b16 %v1251
    %v2665 = vunpack.c.h.b16 %v1251
    %v2666 = vunpack.c.l.b16 %v1252
    %v2667 = vunpack.c.h.b16 %v1252
    %v2668 = vunpack.c.l.b16 %v1253
    %v2669 = vunpack.c.h.b16 %v1253
    %v2670 = vunpack.c.l.b16 %v1254
    %v2671 = vunpack.c.h.b16 %v1254
    %v2672 = vunpack.c.l.b16 %v1255
    %v2673 = vunpack.c.h.b16 %v1255
    %v2674 = vunpack.c.l.b16 %v1256
    %v2675 = vunpack.c.h.b16 %v1256
    %v2676 = vunpack.c.l.b16 %v1257
    %v2677 = vunpack.c.h.b16 %v1257
    %v2678 = vunpack.c.l.b16 %v1258
    %v2679 = vunpack.c.h.b16 %v1258
    %v2680 = vunpack.c.l.b16 %v1259
    %v2681 = vunpack.c.h.b16 %v1259
    %v2682 = vunpack.c.l.b16 %v1260
    %v2683 = vunpack.c.h.b16 %v1260
    %v2684 = vunpack.c.l.b16 %v1261
    %v2685 = vunpack.c.h.b16 %v1261
    %v2686 = vunpack.c.l.b16 %v1262
    %v2687 = vunpack.c.h.b16 %v1262
    %v2688 = vunpack.c.l.b16 %v1263
    %v2689 = vunpack.c.h.b16 %v1263
    %v2690 = vunpack.c.l.b16 %v1264
    %v2691 = vunpack.c.h.b16 %v1264
    %v2692 = vunpack.c.l.b16 %v1265
    %v2693 = vunpack.c.h.b16 %v1265
    %v2694 = vunpack.c.l.b16 %v1266
    %v2695 = vunpack.c.h.b16 %v1266
    %v2696 = vunpack.c.l.b16 %v1267
    %v2697 = vunpack.c.h.b16 %v1267
    %v2698 = vunpack.c.l.b16 %v1268
    %v2699 = vunpack.c.h.b16 %v1268
    %v2700 = vunpack.c.l.b16 %v1269
    %v2701 = vunpack.c.h.b16 %v1269
    %v2702 = vunpack.c.l.b16 %v1270
    %v2703 = vunpack.c.h.b16 %v1270
    %v2704 = vunpack.c.l.b16 %v1271
    %v2705 = vunpack.c.h.b16 %v1271
    %v2706 = vunpack.c.l.b16 %v1272
    %v2707 = vunpack.c.h.b16 %v1272
    %v2708 = vunpack.c.l.b16 %v1273
    %v2709 = vunpack.c.h.b16 %v1273
    %v2710 = vunpack.c.l.b16 %v1274
    %v2711 = vunpack.c.h.b16 %v1274
    %v2712 = vunpack.c.l.b16 %v1275
    %v2713 = vunpack.c.h.b16 %v1275
    %v2714 = vunpack.c.l.b16 %v1276
    %v2715 = vunpack.c.h.b16 %v1276
    %v2716 = vunpack.c.l.b16 %v1277
    %v2717 = vunpack.c.h.b16 %v1277
    %v2718 = vunpack.c.l.b16 %v1278
    %v2719 = vunpack.c.h.b16 %v1278
    %v2720 = vunpack.c.l.b16 %v1279
    %v2721 = vunpack.c.h.b16 %v1279
    %v2722 = vunpack.c.l.b16 %v1280
    %v2723 = vunpack.c.h.b16 %v1280
    %v2724 = vunpack.c.l.b16 %v1281
    %v2725 = vunpack.c.h.b16 %v1281
    %v2726 = vunpack.c.l.b16 %v1282
    %v2727 = vunpack.c.h.b16 %v1282
    %v2728 = vunpack.c.l.b16 %v1283
    %v2729 = vunpack.c.h.b16 %v1283
    %v2730 = vunpack.c.l.b16 %v1284
    %v2731 = vunpack.c.h.b16 %v1284
    %v2732 = vunpack.c.l.b16 %v1285
    %v2733 = vunpack.c.h.b16 %v1285
    %v2734 = vunpack.c.l.b16 %v1286
    %v2735 = vunpack.c.h.b16 %v1286
    %v2736 = vunpack.c.l.b16 %v1287
    %v2737 = vunpack.c.h.b16 %v1287
    %v2738 = vunpack.c.l.b16 %v1288
    %v2739 = vunpack.c.h.b16 %v1288
    %v2740 = vunpack.c.l.b16 %v1289
    %v2741 = vunpack.c.h.b16 %v1289
    %v2742 = vunpack.c.l.b16 %v1290
    %v2743 = vunpack.c.h.b16 %v1290
    %v2744 = vunpack.c.l.b16 %v1291
    %v2745 = vunpack.c.h.b16 %v1291
    %v2746 = vunpack.c.l.b16 %v1292
    %v2747 = vunpack.c.h.b16 %v1292
    %v2748 = vunpack.c.l.b16 %v1293
    %v2749 = vunpack.c.h.b16 %v1293
    %v2750 = vunpack.c.l.b16 %v1294
    %v2751 = vunpack.c.h.b16 %v1294
    %v2752 = vunpack.c.l.b16 %v1295
    %v2753 = vunpack.c.h.b16 %v1295
    %v2754 = vunpack.c.l.b16 %v1296
    %v2755 = vunpack.c.h.b16 %v1296
    %v2756 = vunpack.c.l.b16 %v1297
    %v2757 = vunpack.c.h.b16 %v1297
    %v2758 = vunpack.c.l.b16 %v1298
    %v2759 = vunpack.c.h.b16 %v1298
    %v2760 = vunpack.c.l.b16 %v1299
    %v2761 = vunpack.c.h.b16 %v1299
    %v2762 = vunpack.c.l.b16 %v1300
    %v2763 = vunpack.c.h.b16 %v1300
    %v2764 = vunpack.c.l.b16 %v1301
    %v2765 = vunpack.c.h.b16 %v1301
    %v2766 = vunpack.c.l.b16 %v1302
    %v2767 = vunpack.c.h.b16 %v1302
    %v2768 = vunpack.c.l.b16 %v1303
    %v2769 = vunpack.c.h.b16 %v1303
    %v2770 = vunpack.c.l.b16 %v1304
    %v2771 = vunpack.c.h.b16 %v1304
    %v2772 = vunpack.c.l.b16 %v1305
    %v2773 = vunpack.c.h.b16 %v1305
    %v2774 = vunpack.c.l.b16 %v1306
    %v2775 = vunpack.c.h.b16 %v1306
    %v2776 = vunpack.c.l.b16 %v1307
    %v2777 = vunpack.c.h.b16 %v1307
    %v2778 = vunpack.c.l.b16 %v1308
    %v2779 = vunpack.c.h.b16 %v1308
    %v2780 = vunpack.c.l.b16 %v1309
    %v2781 = vunpack.c.h.b16 %v1309
    %v2782 = vunpack.c.l.b16 %v1310
    %v2783 = vunpack.c.h.b16 %v1310
    %v2784 = vunpack.c.l.b16 %v1311
    %v2785 = vunpack.c.h.b16 %v1311
    %v2786 = vunpack.c.l.b16 %v1312
    %v2787 = vunpack.c.h.b16 %v1312
    %v2788 = vunpack.c.l.b16 %v1313
    %v2789 = vunpack.c.h.b16 %v1313
    %v2790 = vunpack.c.l.b16 %v1314
    %v2791 = vunpack.c.h.b16 %v1314
    %v2792 = vunpack.c.l.b16 %v1315
    %v2793 = vunpack.c.h.b16 %v1315
    %v2794 = vunpack.c.l.b16 %v1316
    %v2795 = vunpack.c.h.b16 %v1316
    %v2796 = vunpack.c.l.b16 %v1317
    %v2797 = vunpack.c.h.b16 %v1317
    %v2798 = vunpack.c.l.b16 %v1318
    %v2799 = vunpack.c.h.b16 %v1318
    %v2800 = vunpack.c.l.b16 %v1319
    %v2801 = vunpack.c.h.b16 %v1319
    %v2802 = vunpack.c.l.b16 %v1320
    %v2803 = vunpack.c.h.b16 %v1320
    %v2804 = vunpack.c.l.b16 %v1321
    %v2805 = vunpack.c.h.b16 %v1321
    %v2806 = vunpack.c.l.b16 %v1322
    %v2807 = vunpack.c.h.b16 %v1322
    %v2808 = vunpack.c.l.b16 %v1323
    %v2809 = vunpack.c.h.b16 %v1323
    %v2810 = vunpack.c.l.b16 %v1324
    %v2811 = vunpack.c.h.b16 %v1324
    %v2812 = vunpack.c.l.b16 %v1325
    %v2813 = vunpack.c.h.b16 %v1325
    %v2814 = vunpack.c.l.b16 %v1326
    %v2815 = vunpack.c.h.b16 %v1326
    %v2816 = vunpack.c.l.b16 %v1327
    %v2817 = vunpack.c.h.b16 %v1327
    %v2818 = vunpack.c.l.b16 %v1328
    %v2819 = vunpack.c.h.b16 %v1328
    %v2820 = vunpack.c.l.b16 %v1329
    %v2821 = vunpack.c.h.b16 %v1329
    %v2822 = vunpack.c.l.b16 %v1330
    %v2823 = vunpack.c.h.b16 %v1330
    %v2824 = vunpack.c.l.b16 %v1331
    %v2825 = vunpack.c.h.b16 %v1331
    %v2826 = vunpack.c.l.b16 %v1332
    %v2827 = vunpack.c.h.b16 %v1332
    %v2828 = vunpack.c.l.b16 %v1333
    %v2829 = vunpack.c.h.b16 %v1333
    %v2830 = vunpack.c.l.b16 %v1334
    %v2831 = vunpack.c.h.b16 %v1334
    %v2832 = vunpack.c.l.b16 %v1335
    %v2833 = vunpack.c.h.b16 %v1335
    %v2834 = vunpack.c.l.b16 %v1336
    %v2835 = vunpack.c.h.b16 %v1336
    %v2836 = vunpack.c.l.b16 %v1337
    %v2837 = vunpack.c.h.b16 %v1337
    %v2838 = vunpack.c.l.b16 %v1338
    %v2839 = vunpack.c.h.b16 %v1338
    %v2840 = vunpack.c.l.b16 %v1339
    %v2841 = vunpack.c.h.b16 %v1339
    %v2842 = vunpack.c.l.b16 %v1340
    %v2843 = vunpack.c.h.b16 %v1340
    %v2844 = vunpack.c.l.b16 %v1341
    %v2845 = vunpack.c.h.b16 %v1341
    %v2846 = vunpack.c.l.b16 %v1342
    %v2847 = vunpack.c.h.b16 %v1342
    %v2848 = vunpack.c.l.b16 %v1343
    %v2849 = vunpack.c.h.b16 %v1343
    %v2850 = vunpack.c.l.b16 %v1344
    %v2851 = vunpack.c.h.b16 %v1344
    %v2852 = vunpack.c.l.b16 %v1345
    %v2853 = vunpack.c.h.b16 %v1345
    %v2854 = vunpack.c.l.b16 %v1346
    %v2855 = vunpack.c.h.b16 %v1346
    %v2856 = vunpack.c.l.b16 %v1347
    %v2857 = vunpack.c.h.b16 %v1347
    %v2858 = vunpack.c.l.b16 %v1348
    %v2859 = vunpack.c.h.b16 %v1348
    %v2860 = vunpack.c.l.b16 %v1349
    %v2861 = vunpack.c.h.b16 %v1349
    %v2862 = vunpack.c.l.b16 %v1350
    %v2863 = vunpack.c.h.b16 %v1350
    %v2864 = vunpack.c.l.b16 %v1351
    %v2865 = vunpack.c.h.b16 %v1351
    %v2866 = vunpack.c.l.b16 %v1352
    %v2867 = vunpack.c.h.b16 %v1352
    %v2868 = vunpack.c.l.b16 %v1353
    %v2869 = vunpack.c.h.b16 %v1353
    %v2870 = vunpack.c.l.b16 %v1354
    %v2871 = vunpack.c.h.b16 %v1354
    %v2872 = vunpack.c.l.b16 %v1355
    %v2873 = vunpack.c.h.b16 %v1355
    %v2874 = vunpack.c.l.b16 %v1356
    %v2875 = vunpack.c.h.b16 %v1356
    %v2876 = vunpack.c.l.b16 %v1357
    %v2877 = vunpack.c.h.b16 %v1357
    %v2878 = vunpack.c.l.b16 %v1358
    %v2879 = vunpack.c.h.b16 %v1358
    %v2880 = vunpack.c.l.b16 %v1359
    %v2881 = vunpack.c.h.b16 %v1359
    %v2882 = vunpack.c.l.b16 %v1360
    %v2883 = vunpack.c.h.b16 %v1360
    %v2884 = vunpack.c.l.b16 %v1361
    %v2885 = vunpack.c.h.b16 %v1361
    %v2886 = vunpack.c.l.b16 %v1362
    %v2887 = vunpack.c.h.b16 %v1362
    %v2888 = vunpack.c.l.b16 %v1363
    %v2889 = vunpack.c.h.b16 %v1363
    %v2890 = vunpack.c.l.b16 %v1364
    %v2891 = vunpack.c.h.b16 %v1364
    %v2892 = vunpack.c.l.b16 %v1365
    %v2893 = vunpack.c.h.b16 %v1365
    %v2894 = vunpack.c.l.b16 %v1366
    %v2895 = vunpack.c.h.b16 %v1366
    %v2896 = vunpack.c.l.b16 %v1367
    %v2897 = vunpack.c.h.b16 %v1367
    %v2898 = vunpack.c.l.b16 %v1368
    %v2899 = vunpack.c.h.b16 %v1368
    %v2900 = vunpack.c.l.b16 %v1369
    %v2901 = vunpack.c.h.b16 %v1369
    %v2902 = vunpack.c.l.b16 %v1370
    %v2903 = vunpack.c.h.b16 %v1370
    %v2904 = vunpack.c.l.b16 %v1371
    %v2905 = vunpack.c.h.b16 %v1371
    %v2906 = vunpack.c.l.b16 %v1372
    %v2907 = vunpack.c.h.b16 %v1372
    %v2908 = vunpack.c.l.b16 %v1373
    %v2909 = vunpack.c.h.b16 %v1373
    %v2910 = vpack.c.b16 %v1894, %v1886
    %v2911 = vpack.c.b16 %v1895, %v1887
    %v2912 = vpack.c.b16 %v1896, %v1888
    %v2913 = vpack.c.b16 %v1897, %v1889
    %v2914 = vpack.c.b16 %v1898, %v1890
    %v2915 = vpack.c.b16 %v1899, %v1891
    %v2916 = vpack.c.b16 %v1900, %v1892
    %v2917 = vpack.c.b16 %v1901, %v1893
    %v2918 = vpack.c.b16 %v1910, %v1902
    %v2919 = vpack.c.b16 %v1911, %v1903
    %v2920 = vpack.c.b16 %v1912, %v1904
    %v2921 = vpack.c.b16 %v1913, %v1905
    %v2922 = vpack.c.b16 %v1914, %v1906
    %v2923 = vpack.c.b16 %v1915, %v1907
    %v2924 = vpack.c.b16 %v1916, %v1908
    %v2925 = vpack.c.b16 %v1917, %v1909
    %v2926 = vpack.c.b16 %v1926, %v1918
    %v2927 = vpack.c.b16 %v1927, %v1919
    %v2928 = vpack.c.b16 %v1928, %v1920
    %v2929 = vpack.c.b16 %v1929, %v1921
    %v2930 = vpack.c.b16 %v1930, %v1922
    %v2931 = vpack.c.b16 %v1931, %v1923
    %v2932 = vpack.c.b16 %v1932, %v1924
    %v2933 = vpack.c.b16 %v1933, %v1925
    %v2934 = vpack.c.b16 %v1942, %v1934
    %v2935 = vpack.c.b16 %v1943, %v1935
    %v2936 = vpack.c.b16 %v1944, %v1936
    %v2937 = vpack.c.b16 %v1945, %v1937
    %v2938 = vpack.c.b16 %v1946, %v1938
    %v2939 = vpack.c.b16 %v1947, %v1939
    %v2940 = vpack.c.b16 %v1948, %v1940
    %v2941 = vpack.c.b16 %v1949, %v1941
    %v2942 = vpack.c.b16 %v1958, %v1950
    %v2943 = vpack.c.b16 %v1959, %v1951
    %v2944 = vpack.c.b16 %v1960, %v1952
    %v2945 = vpack.c.b16 %v1961, %v1953
    %v2946 = vpack.c.b16 %v1962, %v1954
    %v2947 = vpack.c.b16 %v1963, %v1955
    %v2948 = vpack.c.b16 %v1964, %v1956
    %v2949 = vpack.c.b16 %v1965, %v1957
    %v2950 = vpack.c.b16 %v1974, %v1966
    %v2951 = vpack.c.b16 %v1975, %v1967
    %v2952 = vpack.c.b16 %v1976, %v1968
    %v2953 = vpack.c.b16 %v1977, %v1969
    %v2954 = vpack.c.b16 %v1978, %v1970
    %v2955 = vpack.c.b16 %v1979, %v1971
    %v2956 = vpack.c.b16 %v1980, %v1972
    %v2957 = vpack.c.b16 %v1981, %v1973
    %v2958 = vpack.c.b16 %v1990, %v1982
    %v2959 = vpack.c.b16 %v1991, %v1983
    %v2960 = vpack.c.b16 %v1992, %v1984
    %v2961 = vpack.c.b16 %v1993, %v1985
    %v2962 = vpack.c.b16 %v1994, %v1986
    %v2963 = vpack.c.b16 %v1995, %v1987
    %v2964 = vpack.c.b16 %v1996, %v1988
    %v2965 = vpack.c.b16 %v1997, %v1989
    %v2966 = vpack.c.b16 %v2006, %v1998
    %v2967 = vpack.c.b16 %v2007, %v1999
    %v2968 = vpack.c.b16 %v2008, %v2000
    %v2969 = vpack.c.b16 %v2009, %v2001
    %v2970 = vpack.c.b16 %v2010, %v2002
    %v2971 = vpack.c.b16 %v2011, %v2003
    %v2972 = vpack.c.b16 %v2012, %v2004
    %v2973 = vpack.c.b16 %v2013, %v2005
    %v2974 = vpack.c.b16 %v2022, %v2014
    %v2975 = vpack.c.b16 %v2023, %v2015
    %v2976 = vpack.c.b16 %v2024, %v2016
    %v2977 = vpack.c.b16 %v2025, %v2017
    %v2978 = vpack.c.b16 %v2026, %v2018
    %v2979 = vpack.c.b16 %v2027, %v2019
    %v2980 = vpack.c.b16 %v2028, %v2020
    %v2981 = vpack.c.b16 %v2029, %v2021
    %v2982 = vpack.c.b16 %v2038, %v2030
    %v2983 = vpack.c.b16 %v2039, %v2031
    %v2984 = vpack.c.b16 %v2040, %v2032
    %v2985 = vpack.c.b16 %v2041, %v2033
    %v2986 = vpack.c.b16 %v2042, %v2034
    %v2987 = vpack.c.b16 %v2043, %v2035
    %v2988 = vpack.c.b16 %v2044, %v2036
    %v2989 = vpack.c.b16 %v2045, %v2037
    %v2990 = vpack.c.b16 %v2054, %v2046
    %v2991 = vpack.c.b16 %v2055, %v2047
    %v2992 = vpack.c.b16 %v2056, %v2048
    %v2993 = vpack.c.b16 %v2057, %v2049
    %v2994 = vpack.c.b16 %v2058, %v2050
    %v2995 = vpack.c.b16 %v2059, %v2051
    %v2996 = vpack.c.b16 %v2060, %v2052
    %v2997 = vpack.c.b16 %v2061, %v2053
    %v2998 = vpack.c.b16 %v2070, %v2062
    %v2999 = vpack.c.b16 %v2071, %v2063
    %v3000 = vpack.c.b16 %v2072, %v2064
    %v3001 = vpack.c.b16 %v2073, %v2065
    %v3002 = vpack.c.b16 %v2074, %v2066
    %v3003 = vpack.c.b16 %v2075, %v2067
    %v3004 = vpack.c.b16 %v2076, %v2068
    %v3005 = vpack.c.b16 %v2077, %v2069
    %v3006 = vpack.c.b16 %v2086, %v2078
    %v3007 = vpack.c.b16 %v2087, %v2079
    %v3008 = vpack.c.b16 %v2088, %v2080
    %v3009 = vpack.c.b16 %v2089, %v2081
    %v3010 = vpack.c.b16 %v2090, %v2082
    %v3011 = vpack.c.b16 %v2091, %v2083
    %v3012 = vpack.c.b16 %v2092, %v2084
    %v3013 = vpack.c.b16 %v2093, %v2085
    %v3014 = vpack.c.b16 %v2102, %v2094
    %v3015 = vpack.c.b16 %v2103, %v2095
    %v3016 = vpack.c.b16 %v2104, %v2096
    %v3017 = vpack.c.b16 %v2105, %v2097
    %v3018 = vpack.c.b16 %v2106, %v2098
    %v3019 = vpack.c.b16 %v2107, %v2099
    %v3020 = vpack.c.b16 %v2108, %v2100
    %v3021 = vpack.c.b16 %v2109, %v2101
    %v3022 = vpack.c.b16 %v2118, %v2110
    %v3023 = vpack.c.b16 %v2119, %v2111
    %v3024 = vpack.c.b16 %v2120, %v2112
    %v3025 = vpack.c.b16 %v2121, %v2113
    %v3026 = vpack.c.b16 %v2122, %v2114
    %v3027 = vpack.c.b16 %v2123, %v2115
    %v3028 = vpack.c.b16 %v2124, %v2116
    %v3029 = vpack.c.b16 %v2125, %v2117
    %v3030 = vpack.c.b16 %v2134, %v2126
    %v3031 = vpack.c.b16 %v2135, %v2127
    %v3032 = vpack.c.b16 %v2136, %v2128
    %v3033 = vpack.c.b16 %v2137, %v2129
    %v3034 = vpack.c.b16 %v2138, %v2130
    %v3035 = vpack.c.b16 %v2139, %v2131
    %v3036 = vpack.c.b16 %v2140, %v2132
    %v3037 = vpack.c.b16 %v2141, %v2133
    %v3038 = vpack.c.b16 %v2150, %v2142
    %v3039 = vpack.c.b16 %v2151, %v2143
    %v3040 = vpack.c.b16 %v2152, %v2144
    %v3041 = vpack.c.b16 %v2153, %v2145
    %v3042 = vpack.c.b16 %v2154, %v2146
    %v3043 = vpack.c.b16 %v2155, %v2147
    %v3044 = vpack.c.b16 %v2156, %v2148
    %v3045 = vpack.c.b16 %v2157, %v2149
    %v3046 = vpack.c.b16 %v2166, %v2158
    %v3047 = vpack.c.b16 %v2167, %v2159
    %v3048 = vpack.c.b16 %v2168, %v2160
    %v3049 = vpack.c.b16 %v2169, %v2161
    %v3050 = vpack.c.b16 %v2170, %v2162
    %v3051 = vpack.c.b16 %v2171, %v2163
    %v3052 = vpack.c.b16 %v2172, %v2164
    %v3053 = vpack.c.b16 %v2173, %v2165
    %v3054 = vpack.c.b16 %v2182, %v2174
    %v3055 = vpack.c.b16 %v2183, %v2175
    %v3056 = vpack.c.b16 %v2184, %v2176
    %v3057 = vpack.c.b16 %v2185, %v2177
    %v3058 = vpack.c.b16 %v2186, %v2178
    %v3059 = vpack.c.b16 %v2187, %v2179
    %v3060 = vpack.c.b16 %v2188, %v2180
    %v3061 = vpack.c.b16 %v2189, %v2181
    %v3062 = vpack.c.b16 %v2198, %v2190
    %v3063 = vpack.c.b16 %v2199, %v2191
    %v3064 = vpack.c.b16 %v2200, %v2192
    %v3065 = vpack.c.b16 %v2201, %v2193
    %v3066 = vpack.c.b16 %v2202, %v2194
    %v3067 = vpack.c.b16 %v2203, %v2195
    %v3068 = vpack.c.b16 %v2204, %v2196
    %v3069 = vpack.c.b16 %v2205, %v2197
    %v3070 = vpack.c.b16 %v2214, %v2206
    %v3071 = vpack.c.b16 %v2215, %v2207
    %v3072 = vpack.c.b16 %v2216, %v2208
    %v3073 = vpack.c.b16 %v2217, %v2209
    %v3074 = vpack.c.b16 %v2218, %v2210
    %v3075 = vpack.c.b16 %v2219, %v2211
    %v3076 = vpack.c.b16 %v2220, %v2212
    %v3077 = vpack.c.b16 %v2221, %v2213
    %v3078 = vpack.c.b16 %v2230, %v2222
    %v3079 = vpack.c.b16 %v2231, %v2223
    %v3080 = vpack.c.b16 %v2232, %v2224
    %v3081 = vpack.c.b16 %v2233, %v2225
    %v3082 = vpack.c.b16 %v2234, %v2226
    %v3083 = vpack.c.b16 %v2235, %v2227
    %v3084 = vpack.c.b16 %v2236, %v2228
    %v3085 = vpack.c.b16 %v2237, %v2229
    %v3086 = vpack.c.b16 %v2246, %v2238
    %v3087 = vpack.c.b16 %v2247, %v2239
    %v3088 = vpack.c.b16 %v2248, %v2240
    %v3089 = vpack.c.b16 %v2249, %v2241
    %v3090 = vpack.c.b16 %v2250, %v2242
    %v3091 = vpack.c.b16 %v2251, %v2243
    %v3092 = vpack.c.b16 %v2252, %v2244
    %v3093 = vpack.c.b16 %v2253, %v2245
    %v3094 = vpack.c.b16 %v2262, %v2254
    %v3095 = vpack.c.b16 %v2263, %v2255
    %v3096 = vpack.c.b16 %v2264, %v2256
    %v3097 = vpack.c.b16 %v2265, %v2257
    %v3098 = vpack.c.b16 %v2266, %v2258
    %v3099 = vpack.c.b16 %v2267, %v2259
    %v3100 = vpack.c.b16 %v2268, %v2260
    %v3101 = vpack.c.b16 %v2269, %v2261
    %v3102 = vpack.c.b16 %v2278, %v2270
    %v3103 = vpack.c.b16 %v2279, %v2271
    %v3104 = vpack.c.b16 %v2280, %v2272
    %v3105 = vpack.c.b16 %v2281, %v2273
    %v3106 = vpack.c.b16 %v2282, %v2274
    %v3107 = vpack.c.b16 %v2283, %v2275
    %v3108 = vpack.c.b16 %v2284, %v2276
    %v3109 = vpack.c.b16 %v2285, %v2277
    %v3110 = vpack.c.b16 %v2294, %v2286
    %v3111 = vpack.c.b16 %v2295, %v2287
    %v3112 = vpack.c.b16 %v2296, %v2288
    %v3113 = vpack.c.b16 %v2297, %v2289
    %v3114 = vpack.c.b16 %v2298, %v2290
    %v3115 = vpack.c.b16 %v2299, %v2291
    %v3116 = vpack.c.b16 %v2300, %v2292
    %v3117 = vpack.c.b16 %v2301, %v2293
    %v3118 = vpack.c.b16 %v2310, %v2302
    %v3119 = vpack.c.b16 %v2311, %v2303
    %v3120 = vpack.c.b16 %v2312, %v2304
    %v3121 = vpack.c.b16 %v2313, %v2305
    %v3122 = vpack.c.b16 %v2314, %v2306
    %v3123 = vpack.c.b16 %v2315, %v2307
    %v3124 = vpack.c.b16 %v2316, %v2308
    %v3125 = vpack.c.b16 %v2317, %v2309
    %v3126 = vpack.c.b16 %v2326, %v2318
    %v3127 = vpack.c.b16 %v2327, %v2319
    %v3128 = vpack.c.b16 %v2328, %v2320
    %v3129 = vpack.c.b16 %v2329, %v2321
    %v3130 = vpack.c.b16 %v2330, %v2322
    %v3131 = vpack.c.b16 %v2331, %v2323
    %v3132 = vpack.c.b16 %v2332, %v2324
    %v3133 = vpack.c.b16 %v2333, %v2325
    %v3134 = vpack.c.b16 %v2342, %v2334
    %v3135 = vpack.c.b16 %v2343, %v2335
    %v3136 = vpack.c.b16 %v2344, %v2336
    %v3137 = vpack.c.b16 %v2345, %v2337
    %v3138 = vpack.c.b16 %v2346, %v2338
    %v3139 = vpack.c.b16 %v2347, %v2339
    %v3140 = vpack.c.b16 %v2348, %v2340
    %v3141 = vpack.c.b16 %v2349, %v2341
    %v3142 = vpack.c.b16 %v2358, %v2350
    %v3143 = vpack.c.b16 %v2359, %v2351
    %v3144 = vpack.c.b16 %v2360, %v2352
    %v3145 = vpack.c.b16 %v2361, %v2353
    %v3146 = vpack.c.b16 %v2362, %v2354
    %v3147 = vpack.c.b16 %v2363, %v2355
    %v3148 = vpack.c.b16 %v2364, %v2356
    %v3149 = vpack.c.b16 %v2365, %v2357
    %v3150 = vpack.c.b16 %v2374, %v2366
    %v3151 = vpack.c.b16 %v2375, %v2367
    %v3152 = vpack.c.b16 %v2376, %v2368
    %v3153 = vpack.c.b16 %v2377, %v2369
    %v3154 = vpack.c.b16 %v2378, %v2370
    %v3155 = vpack.c.b16 %v2379, %v2371
    %v3156 = vpack.c.b16 %v2380, %v2372
    %v3157 = vpack.c.b16 %v2381, %v2373
    %v3158 = vpack.c.b16 %v2390, %v2382
    %v3159 = vpack.c.b16 %v2391, %v2383
    %v3160 = vpack.c.b16 %v2392, %v2384
    %v3161 = vpack.c.b16 %v2393, %v2385
    %v3162 = vpack.c.b16 %v2394, %v2386
    %v3163 = vpack.c.b16 %v2395, %v2387
    %v3164 = vpack.c.b16 %v2396, %v2388
    %v3165 = vpack.c.b16 %v2397, %v2389
    %v3166 = vpack.c.b16 %v2406, %v2398
    %v3167 = vpack.c.b16 %v2407, %v2399
    %v3168 = vpack.c.b16 %v2408, %v2400
    %v3169 = vpack.c.b16 %v2409, %v2401
    %v3170 = vpack.c.b16 %v2410, %v2402
    %v3171 = vpack.c.b16 %v2411, %v2403
    %v3172 = vpack.c.b16 %v2412, %v2404
    %v3173 = vpack.c.b16 %v2413, %v2405
    %v3174 = vpack.c.b16 %v2422, %v2414
    %v3175 = vpack.c.b16 %v2423, %v2415
    %v3176 = vpack.c.b16 %v2424, %v2416
    %v3177 = vpack.c.b16 %v2425, %v2417
    %v3178 = vpack.c.b16 %v2426, %v2418
    %v3179 = vpack.c.b16 %v2427, %v2419
    %v3180 = vpack.c.b16 %v2428, %v2420
    %v3181 = vpack.c.b16 %v2429, %v2421
    %v3182 = vpack.c.b16 %v2438, %v2430
    %v3183 = vpack.c.b16 %v2439, %v2431
    %v3184 = vpack.c.b16 %v2440, %v2432
    %v3185 = vpack.c.b16 %v2441, %v2433
    %v3186 = vpack.c.b16 %v2442, %v2434
    %v3187 = vpack.c.b16 %v2443, %v2435
    %v3188 = vpack.c.b16 %v2444, %v2436
    %v3189 = vpack.c.b16 %v2445, %v2437
    %v3190 = vpack.c.b16 %v2454, %v2446
    %v3191 = vpack.c.b16 %v2455, %v2447
    %v3192 = vpack.c.b16 %v2456, %v2448
    %v3193 = vpack.c.b16 %v2457, %v2449
    %v3194 = vpack.c.b16 %v2458, %v2450
    %v3195 = vpack.c.b16 %v2459, %v2451
    %v3196 = vpack.c.b16 %v2460, %v2452
    %v3197 = vpack.c.b16 %v2461, %v2453
    %v3198 = vpack.c.b16 %v2470, %v2462
    %v3199 = vpack.c.b16 %v2471, %v2463
    %v3200 = vpack.c.b16 %v2472, %v2464
    %v3201 = vpack.c.b16 %v2473, %v2465
    %v3202 = vpack.c.b16 %v2474, %v2466
    %v3203 = vpack.c.b16 %v2475, %v2467
    %v3204 = vpack.c.b16 %v2476, %v2468
    %v3205 = vpack.c.b16 %v2477, %v2469
    %v3206 = vpack.c.b16 %v2486, %v2478
    %v3207 = vpack.c.b16 %v2487, %v2479
    %v3208 = vpack.c.b16 %v2488, %v2480
    %v3209 = vpack.c.b16 %v2489, %v2481
    %v3210 = vpack.c.b16 %v2490, %v2482
    %v3211 = vpack.c.b16 %v2491, %v2483
    %v3212 = vpack.c.b16 %v2492, %v2484
    %v3213 = vpack.c.b16 %v2493, %v2485
    %v3214 = vpack.c.b16 %v2502, %v2494
    %v3215 = vpack.c.b16 %v2503, %v2495
    %v3216 = vpack.c.b16 %v2504, %v2496
    %v3217 = vpack.c.b16 %v2505, %v2497
    %v3218 = vpack.c.b16 %v2506, %v2498
    %v3219 = vpack.c.b16 %v2507, %v2499
    %v3220 = vpack.c.b16 %v2508, %v2500
    %v3221 = vpack.c.b16 %v2509, %v2501
    %v3222 = vpack.c.b16 %v2518, %v2510
    %v3223 = vpack.c.b16 %v2519, %v2511
    %v3224 = vpack.c.b16 %v2520, %v2512
    %v3225 = vpack.c.b16 %v2521, %v2513
    %v3226 = vpack.c.b16 %v2522, %v2514
    %v3227 = vpack.c.b16 %v2523, %v2515
    %v3228 = vpack.c.b16 %v2524, %v2516
    %v3229 = vpack.c.b16 %v2525, %v2517
    %v3230 = vpack.c.b16 %v2534, %v2526
    %v3231 = vpack.c.b16 %v2535, %v2527
    %v3232 = vpack.c.b16 %v2536, %v2528
    %v3233 = vpack.c.b16 %v2537, %v2529
    %v3234 = vpack.c.b16 %v2538, %v2530
    %v3235 = vpack.c.b16 %v2539, %v2531
    %v3236 = vpack.c.b16 %v2540, %v2532
    %v3237 = vpack.c.b16 %v2541, %v2533
    %v3238 = vpack.c.b16 %v2550, %v2542
    %v3239 = vpack.c.b16 %v2551, %v2543
    %v3240 = vpack.c.b16 %v2552, %v2544
    %v3241 = vpack.c.b16 %v2553, %v2545
    %v3242 = vpack.c.b16 %v2554, %v2546
    %v3243 = vpack.c.b16 %v2555, %v2547
    %v3244 = vpack.c.b16 %v2556, %v2548
    %v3245 = vpack.c.b16 %v2557, %v2549
    %v3246 = vpack.c.b16 %v2566, %v2558
    %v3247 = vpack.c.b16 %v2567, %v2559
    %v3248 = vpack.c.b16 %v2568, %v2560
    %v3249 = vpack.c.b16 %v2569, %v2561
    %v3250 = vpack.c.b16 %v2570, %v2562
    %v3251 = vpack.c.b16 %v2571, %v2563
    %v3252 = vpack.c.b16 %v2572, %v2564
    %v3253 = vpack.c.b16 %v2573, %v2565
    %v3254 = vpack.c.b16 %v2582, %v2574
    %v3255 = vpack.c.b16 %v2583, %v2575
    %v3256 = vpack.c.b16 %v2584, %v2576
    %v3257 = vpack.c.b16 %v2585, %v2577
    %v3258 = vpack.c.b16 %v2586, %v2578
    %v3259 = vpack.c.b16 %v2587, %v2579
    %v3260 = vpack.c.b16 %v2588, %v2580
    %v3261 = vpack.c.b16 %v2589, %v2581
    %v3262 = vpack.c.b16 %v2598, %v2590
    %v3263 = vpack.c.b16 %v2599, %v2591
    %v3264 = vpack.c.b16 %v2600, %v2592
    %v3265 = vpack.c.b16 %v2601, %v2593
    %v3266 = vpack.c.b16 %v2602, %v2594
    %v3267 = vpack.c.b16 %v2603, %v2595
    %v3268 = vpack.c.b16 %v2604, %v2596
    %v3269 = vpack.c.b16 %v2605, %v2597
    %v3270 = vpack.c.b16 %v2614, %v2606
    %v3271 = vpack.c.b16 %v2615, %v2607
    %v3272 = vpack.c.b16 %v2616, %v2608
    %v3273 = vpack.c.b16 %v2617, %v2609
    %v3274 = vpack.c.b16 %v2618, %v2610
    %v3275 = vpack.c.b16 %v2619, %v2611
    %v3276 = vpack.c.b16 %v2620, %v2612
    %v3277 = vpack.c.b16 %v2621, %v2613
    %v3278 = vpack.c.b16 %v2630, %v2622
    %v3279 = vpack.c.b16 %v2631, %v2623
    %v3280 = vpack.c.b16 %v2632, %v2624
    %v3281 = vpack.c.b16 %v2633, %v2625
    %v3282 = vpack.c.b16 %v2634, %v2626
    %v3283 = vpack.c.b16 %v2635, %v2627
    %v3284 = vpack.c.b16 %v2636, %v2628
    %v3285 = vpack.c.b16 %v2637, %v2629
    %v3286 = vpack.c.b16 %v2646, %v2638
    %v3287 = vpack.c.b16 %v2647, %v2639
    %v3288 = vpack.c.b16 %v2648, %v2640
    %v3289 = vpack.c.b16 %v2649, %v2641
    %v3290 = vpack.c.b16 %v2650, %v2642
    %v3291 = vpack.c.b16 %v2651, %v2643
    %v3292 = vpack.c.b16 %v2652, %v2644
    %v3293 = vpack.c.b16 %v2653, %v2645
    %v3294 = vpack.c.b16 %v2662, %v2654
    %v3295 = vpack.c.b16 %v2663, %v2655
    %v3296 = vpack.c.b16 %v2664, %v2656
    %v3297 = vpack.c.b16 %v2665, %v2657
    %v3298 = vpack.c.b16 %v2666, %v2658
    %v3299 = vpack.c.b16 %v2667, %v2659
    %v3300 = vpack.c.b16 %v2668, %v2660
    %v3301 = vpack.c.b16 %v2669, %v2661
    %v3302 = vpack.c.b16 %v2678, %v2670
    %v3303 = vpack.c.b16 %v2679, %v2671
    %v3304 = vpack.c.b16 %v2680, %v2672
    %v3305 = vpack.c.b16 %v2681, %v2673
    %v3306 = vpack.c.b16 %v2682, %v2674
    %v3307 = vpack.c.b16 %v2683, %v2675
    %v3308 = vpack.c.b16 %v2684, %v2676
    %v3309 = vpack.c.b16 %v2685, %v2677
    %v3310 = vpack.c.b16 %v2694, %v2686
    %v3311 = vpack.c.b16 %v2695, %v2687
    %v3312 = vpack.c.b16 %v2696, %v2688
    %v3313 = vpack.c.b16 %v2697, %v2689
    %v3314 = vpack.c.b16 %v2698, %v2690
    %v3315 = vpack.c.b16 %v2699, %v2691
    %v3316 = vpack.c.b16 %v2700, %v2692
    %v3317 = vpack.c.b16 %v2701, %v2693
    %v3318 = vpack.c.b16 %v2710, %v2702
    %v3319 = vpack.c.b16 %v2711, %v2703
    %v3320 = vpack.c.b16 %v2712, %v2704
    %v3321 = vpack.c.b16 %v2713, %v2705
    %v3322 = vpack.c.b16 %v2714, %v2706
    %v3323 = vpack.c.b16 %v2715, %v2707
    %v3324 = vpack.c.b16 %v2716, %v2708
    %v3325 = vpack.c.b16 %v2717, %v2709
    %v3326 = vpack.c.b16 %v2726, %v2718
    %v3327 = vpack.c.b16 %v2727, %v2719
    %v3328 = vpack.c.b16 %v2728, %v2720
    %v3329 = vpack.c.b16 %v2729, %v2721
    %v3330 = vpack.c.b16 %v2730, %v2722
    %v3331 = vpack.c.b16 %v2731, %v2723
    %v3332 = vpack.c.b16 %v2732, %v2724
    %v3333 = vpack.c.b16 %v2733, %v2725
    %v3334 = vpack.c.b16 %v2742, %v2734
    %v3335 = vpack.c.b16 %v2743, %v2735
    %v3336 = vpack.c.b16 %v2744, %v2736
    %v3337 = vpack.c.b16 %v2745, %v2737
    %v3338 = vpack.c.b16 %v2746, %v2738
    %v3339 = vpack.c.b16 %v2747, %v2739
    %v3340 = vpack.c.b16 %v2748, %v2740
    %v3341 = vpack.c.b16 %v2749, %v2741
    %v3342 = vpack.c.b16 %v2758, %v2750
    %v3343 = vpack.c.b16 %v2759, %v2751
    %v3344 = vpack.c.b16 %v2760, %v2752
    %v3345 = vpack.c.b16 %v2761, %v2753
    %v3346 = vpack.c.b16 %v2762, %v2754
    %v3347 = vpack.c.b16 %v2763, %v2755
    %v3348 = vpack.c.b16 %v2764, %v2756
    %v3349 = vpack.c.b16 %v2765, %v2757
    %v3350 = vpack.c.b16 %v2774, %v2766
    %v3351 = vpack.c.b16 %v2775, %v2767
    %v3352 = vpack.c.b16 %v2776, %v2768
    %v3353 = vpack.c.b16 %v2777, %v2769
    %v3354 = vpack.c.b16 %v2778, %v2770
    %v3355 = vpack.c.b16 %v2779, %v2771
    %v3356 = vpack.c.b16 %v2780, %v2772
    %v3357 = vpack.c.b16 %v2781, %v2773
    %v3358 = vpack.c.b16 %v2790, %v2782
    %v3359 = vpack.c.b16 %v2791, %v2783
    %v3360 = vpack.c.b16 %v2792, %v2784
    %v3361 = vpack.c.b16 %v2793, %v2785
    %v3362 = vpack.c.b16 %v2794, %v2786
    %v3363 = vpack.c.b16 %v2795, %v2787
    %v3364 = vpack.c.b16 %v2796, %v2788
    %v3365 = vpack.c.b16 %v2797, %v2789
    %v3366 = vpack.c.b16 %v2806, %v2798
    %v3367 = vpack.c.b16 %v2807, %v2799
    %v3368 = vpack.c.b16 %v2808, %v2800
    %v3369 = vpack.c.b16 %v2809, %v2801
    %v3370 = vpack.c.b16 %v2810, %v2802
    %v3371 = vpack.c.b16 %v2811, %v2803
    %v3372 = vpack.c.b16 %v2812, %v2804
    %v3373 = vpack.c.b16 %v2813, %v2805
    %v3374 = vpack.c.b16 %v2822, %v2814
    %v3375 = vpack.c.b16 %v2823, %v2815
    %v3376 = vpack.c.b16 %v2824, %v2816
    %v3377 = vpack.c.b16 %v2825, %v2817
    %v3378 = vpack.c.b16 %v2826, %v2818
    %v3379 = vpack.c.b16 %v2827, %v2819
    %v3380 = vpack.c.b16 %v2828, %v2820
    %v3381 = vpack.c.b16 %v2829, %v2821
    %v3382 = vpack.c.b16 %v2838, %v2830
    %v3383 = vpack.c.b16 %v2839, %v2831
    %v3384 = vpack.c.b16 %v2840, %v2832
    %v3385 = vpack.c.b16 %v2841, %v2833
    %v3386 = vpack.c.b16 %v2842, %v2834
    %v3387 = vpack.c.b16 %v2843, %v2835
    %v3388 = vpack.c.b16 %v2844, %v2836
    %v3389 = vpack.c.b16 %v2845, %v2837
    %v3390 = vpack.c.b16 %v2854, %v2846
    %v3391 = vpack.c.b16 %v2855, %v2847
    %v3392 = vpack.c.b16 %v2856, %v2848
    %v3393 = vpack.c.b16 %v2857, %v2849
    %v3394 = vpack.c.b16 %v2858, %v2850
    %v3395 = vpack.c.b16 %v2859, %v2851
    %v3396 = vpack.c.b16 %v2860, %v2852
    %v3397 = vpack.c.b16 %v2861, %v2853
    %v3398 = vpack.c.b16 %v2870, %v2862
    %v3399 = vpack.c.b16 %v2871, %v2863
    %v3400 = vpack.c.b16 %v2872, %v2864
    %v3401 = vpack.c.b16 %v2873, %v2865
    %v3402 = vpack.c.b16 %v2874, %v2866
    %v3403 = vpack.c.b16 %v2875, %v2867
    %v3404 = vpack.c.b16 %v2876, %v2868
    %v3405 = vpack.c.b16 %v2877, %v2869
    %v3406 = vpack.c.b16 %v2886, %v2878
    %v3407 = vpack.c.b16 %v2887, %v2879
    %v3408 = vpack.c.b16 %v2888, %v2880
    %v3409 = vpack.c.b16 %v2889, %v2881
    %v3410 = vpack.c.b16 %v2890, %v2882
    %v3411 = vpack.c.b16 %v2891, %v2883
    %v3412 = vpack.c.b16 %v2892, %v2884
    %v3413 = vpack.c.b16 %v2893, %v2885
    %v3414 = vpack.c.b16 %v2902, %v2894
    %v3415 = vpack.c.b16 %v2903, %v2895
    %v3416 = vpack.c.b16 %v2904, %v2896
    %v3417 = vpack.c.b16 %v2905, %v2897
    %v3418 = vpack.c.b16 %v2906, %v2898
    %v3419 = vpack.c.b16 %v2907, %v2899
    %v3420 = vpack.c.b16 %v2908, %v2900
    %v3421 = vpack.c.b16 %v2909, %v2901
    %3934 = vmatprep.subr.bf16.mxu0 %v2911
    %3935 = vmatpush1.bf16.msra.mxu0 %v2910
    %3936 = vmatprep.subr.bf16.mxu0 %v2919
    %3937 = vmatpush1.bf16.msra.mxu0 %v2918
    %3938 = vmatprep.subr.bf16.mxu0 %v2927
    %3939 = vmatpush1.bf16.msra.mxu0 %v2926
    %3940 = vmatprep.subr.bf16.mxu0 %v2935
    %3941 = vmatpush1.bf16.msra.mxu0 %v2934
    %3942 = vmatprep.subr.bf16.mxu0 %v2943
    %3943 = vmatpush1.bf16.msra.mxu0 %v2942
    %3944 = vmatprep.subr.bf16.mxu0 %v2951
    %3945 = vmatpush1.bf16.msra.mxu0 %v2950
    %3946 = vmatprep.subr.bf16.mxu0 %v2959
    %3947 = vmatpush1.bf16.msra.mxu0 %v2958
    %3948 = vmatprep.subr.bf16.mxu0 %v2967
    %3949 = vmatpush1.bf16.msra.mxu0 %v2966
    %3950 = vmatprep.subr.bf16.mxu0 %v2975
    %3951 = vmatpush1.bf16.msra.mxu0 %v2974
    %3952 = vmatprep.subr.bf16.mxu0 %v2983
    %3953 = vmatpush1.bf16.msra.mxu0 %v2982
    %3954 = vmatprep.subr.bf16.mxu0 %v2991
    %3955 = vmatpush1.bf16.msra.mxu0 %v2990
    %3956 = vmatprep.subr.bf16.mxu0 %v2999
    %3957 = vmatpush1.bf16.msra.mxu0 %v2998
    %3958 = vmatprep.subr.bf16.mxu0 %v3007
    %3959 = vmatpush1.bf16.msra.mxu0 %v3006
    %3960 = vmatprep.subr.bf16.mxu0 %v3015
    %3961 = vmatpush1.bf16.msra.mxu0 %v3014
    %3962 = vmatprep.subr.bf16.mxu0 %v3023
    %3963 = vmatpush1.bf16.msra.mxu0 %v3022
    %3964 = vmatprep.subr.bf16.mxu0 %v3031
    %3965 = vmatpush1.bf16.msra.mxu0 %v3030
    %3966 = vmatprep.mubr.bf16.mxu0 %v847
    %3967 = vmatmul.mubr.bf16.gmra.mrb[0].mxu0 %v846
    %v3968 = vpop.f32.mrb[0].mxu0
    %v3969 = vadd.f32 0.0, %v3968
    %v3970 = vpop.f32.mrb[0].mxu0
    %v3971 = vadd.f32 0.0, %v3970
    %v3972 = vpop.f32.mrb[0].mxu0
    %v3973 = vadd.f32 0.0, %v3972
    %v3974 = vpop.f32.mrb[0].mxu0
    %v3975 = vadd.f32 0.0, %v3974
    %3976 = vmatprep.mubr.bf16.mxu0 %v855
    %3977 = vmatmul.mubr.bf16.gmra.mrb[0].mxu0 %v854
    %v3978 = vpop.f32.mrb[0].mxu0
    %v3979 = vadd.f32 0.0, %v3978
    %v3980 = vpop.f32.mrb[0].mxu0
    %v3981 = vadd.f32 0.0, %v3980
    %v3982 = vpop.f32.mrb[0].mxu0
    %v3983 = vadd.f32 0.0, %v3982
    %v3984 = vpop.f32.mrb[0].mxu0
    %v3985 = vadd.f32 0.0, %v3984
    %3986 = vdwg.mxu0
    %3987 = vmatprep.subr.bf16.mxu0 %v3039
    %3988 = vmatpush1.bf16.msra.mxu0 %v3038
    %3989 = vmatprep.subr.bf16.mxu0 %v3047
    %3990 = vmatpush1.bf16.msra.mxu0 %v3046
    %3991 = vmatprep.subr.bf16.mxu0 %v3055
    %3992 = vmatpush1.bf16.msra.mxu0 %v3054
    %3993 = vmatprep.subr.bf16.mxu0 %v3063
    %3994 = vmatpush1.bf16.msra.mxu0 %v3062
    %3995 = vmatprep.subr.bf16.mxu0 %v3071
    %3996 = vmatpush1.bf16.msra.mxu0 %v3070
    %3997 = vmatprep.subr.bf16.mxu0 %v3079
    %3998 = vmatpush1.bf16.msra.mxu0 %v3078
    %3999 = vmatprep.subr.bf16.mxu0 %v3087
    %4000 = vmatpush1.bf16.msra.mxu0 %v3086
    %4001 = vmatprep.subr.bf16.mxu0 %v3095
    %4002 = vmatpush1.bf16.msra.mxu0 %v3094
    %4003 = vmatprep.subr.bf16.mxu0 %v3103
    %4004 = vmatpush1.bf16.msra.mxu0 %v3102
    %4005 = vmatprep.subr.bf16.mxu0 %v3111
    %4006 = vmatpush1.bf16.msra.mxu0 %v3110
    %4007 = vmatprep.subr.bf16.mxu0 %v3119
    %4008 = vmatpush1.bf16.msra.mxu0 %v3118
    %4009 = vmatprep.subr.bf16.mxu0 %v3127
    %4010 = vmatpush1.bf16.msra.mxu0 %v3126
    %4011 = vmatprep.subr.bf16.mxu0 %v3135
    %4012 = vmatpush1.bf16.msra.mxu0 %v3134
    %4013 = vmatprep.subr.bf16.mxu0 %v3143
    %4014 = vmatpush1.bf16.msra.mxu0 %v3142
    %4015 = vmatprep.subr.bf16.mxu0 %v3151
    %4016 = vmatpush1.bf16.msra.mxu0 %v3150
    %4017 = vmatprep.subr.bf16.mxu0 %v3159
    %4018 = vmatpush1.bf16.msra.mxu0 %v3158
    %4019 = vmatprep.mubr.bf16.mxu0 %v849
    %4020 = vmatmul.mubr.bf16.gmra.mrb[0].mxu0 %v848
    %v4021 = vpop.f32.mrb[0].mxu0
    %v4022 = vadd.f32 %v3969, %v4021
    %v4023 = vpop.f32.mrb[0].mxu0
    %v4024 = vadd.f32 %v3971, %v4023
    %v4025 = vpop.f32.mrb[0].mxu0
    %v4026 = vadd.f32 %v3973, %v4025
    %v4027 = vpop.f32.mrb[0].mxu0
    %v4028 = vadd.f32 %v3975, %v4027
    %4029 = vmatprep.mubr.bf16.mxu0 %v857
    %4030 = vmatmul.mubr.bf16.gmra.mrb[0].mxu0 %v856
    %v4031 = vpop.f32.mrb[0].mxu0
    %v4032 = vadd.f32 %v3979, %v4031
    %v4033 = vpop.f32.mrb[0].mxu0
    %v4034 = vadd.f32 %v3981, %v4033
    %v4035 = vpop.f32.mrb[0].mxu0
    %v4036 = vadd.f32 %v3983, %v4035
    %v4037 = vpop.f32.mrb[0].mxu0
    %v4038 = vadd.f32 %v3985, %v4037
    %4039 = vdwg.mxu0
    %4040 = vmatprep.subr.bf16.mxu0 %v3167
    %4041 = vmatpush1.bf16.msra.mxu0 %v3166
    %4042 = vmatprep.subr.bf16.mxu0 %v3175
    %4043 = vmatpush1.bf16.msra.mxu0 %v3174
    %4044 = vmatprep.subr.bf16.mxu0 %v3183
    %4045 = vmatpush1.bf16.msra.mxu0 %v3182
    %4046 = vmatprep.subr.bf16.mxu0 %v3191
    %4047 = vmatpush1.bf16.msra.mxu0 %v3190
    %4048 = vmatprep.subr.bf16.mxu0 %v3199
    %4049 = vmatpush1.bf16.msra.mxu0 %v3198
    %4050 = vmatprep.subr.bf16.mxu0 %v3207
    %4051 = vmatpush1.bf16.msra.mxu0 %v3206
    %4052 = vmatprep.subr.bf16.mxu0 %v3215
    %4053 = vmatpush1.bf16.msra.mxu0 %v3214
    %4054 = vmatprep.subr.bf16.mxu0 %v3223
    %4055 = vmatpush1.bf16.msra.mxu0 %v3222
    %4056 = vmatprep.subr.bf16.mxu0 %v3231
    %4057 = vmatpush1.bf16.msra.mxu0 %v3230
    %4058 = vmatprep.subr.bf16.mxu0 %v3239
    %4059 = vmatpush1.bf16.msra.mxu0 %v3238
    %4060 = vmatprep.subr.bf16.mxu0 %v3247
    %4061 = vmatpush1.bf16.msra.mxu0 %v3246
    %4062 = vmatprep.subr.bf16.mxu0 %v3255
    %4063 = vmatpush1.bf16.msra.mxu0 %v3254
    %4064 = vmatprep.subr.bf16.mxu0 %v3263
    %4065 = vmatpush1.bf16.msra.mxu0 %v3262
    %4066 = vmatprep.subr.bf16.mxu0 %v3271
    %4067 = vmatpush1.bf16.msra.mxu0 %v3270
    %4068 = vmatprep.subr.bf16.mxu0 %v3279
    %4069 = vmatpush1.bf16.msra.mxu0 %v3278
    %4070 = vmatprep.subr.bf16.mxu0 %v3287
    %4071 = vmatpush1.bf16.msra.mxu0 %v3286
    %4072 = vmatprep.mubr.bf16.mxu0 %v851
    %4073 = vmatmul.mubr.bf16.gmra.mrb[0].mxu0 %v850
    %v4074 = vpop.f32.mrb[0].mxu0
    %v4075 = vadd.f32 %v4022, %v4074
    %v4076 = vpop.f32.mrb[0].mxu0
    %v4077 = vadd.f32 %v4024, %v4076
    %v4078 = vpop.f32.mrb[0].mxu0
    %v4079 = vadd.f32 %v4026, %v4078
    %v4080 = vpop.f32.mrb[0].mxu0
    %v4081 = vadd.f32 %v4028, %v4080
    %4082 = vmatprep.mubr.bf16.mxu0 %v859
    %4083 = vmatmul.mubr.bf16.gmra.mrb[0].mxu0 %v858
    %v4084 = vpop.f32.mrb[0].mxu0
    %v4085 = vadd.f32 %v4032, %v4084
    %v4086 = vpop.f32.mrb[0].mxu0
    %v4087 = vadd.f32 %v4034, %v4086
    %v4088 = vpop.f32.mrb[0].mxu0
    %v4089 = vadd.f32 %v4036, %v4088
    %v4090 = vpop.f32.mrb[0].mxu0
    %v4091 = vadd.f32 %v4038, %v4090
    %4092 = vdwg.mxu0
    %4093 = vmatprep.subr.bf16.mxu0 %v3295
    %4094 = vmatpush1.bf16.msra.mxu0 %v3294
    %4095 = vmatprep.subr.bf16.mxu0 %v3303
    %4096 = vmatpush1.bf16.msra.mxu0 %v3302
    %4097 = vmatprep.subr.bf16.mxu0 %v3311
    %4098 = vmatpush1.bf16.msra.mxu0 %v3310
    %4099 = vmatprep.subr.bf16.mxu0 %v3319
    %4100 = vmatpush1.bf16.msra.mxu0 %v3318
    %4101 = vmatprep.subr.bf16.mxu0 %v3327
    %4102 = vmatpush1.bf16.msra.mxu0 %v3326
    %4103 = vmatprep.subr.bf16.mxu0 %v3335
    %4104 = vmatpush1.bf16.msra.mxu0 %v3334
    %4105 = vmatprep.subr.bf16.mxu0 %v3343
    %4106 = vmatpush1.bf16.msra.mxu0 %v3342
    %4107 = vmatprep.subr.bf16.mxu0 %v3351
    %4108 = vmatpush1.bf16.msra.mxu0 %v3350
    %4109 = vmatprep.subr.bf16.mxu0 %v3359
    %4110 = vmatpush1.bf16.msra.mxu0 %v3358
    %4111 = vmatprep.subr.bf16.mxu0 %v3367
    %4112 = vmatpush1.bf16.msra.mxu0 %v3366
    %4113 = vmatprep.subr.bf16.mxu0 %v3375
    %4114 = vmatpush1.bf16.msra.mxu0 %v3374
    %4115 = vmatprep.subr.bf16.mxu0 %v3383
    %4116 = vmatpush1.bf16.msra.mxu0 %v3382
    %4117 = vmatprep.subr.bf16.mxu0 %v3391
    %4118 = vmatpush1.bf16.msra.mxu0 %v3390
    %4119 = vmatprep.subr.bf16.mxu0 %v3399
    %4120 = vmatpush1.bf16.msra.mxu0 %v3398
    %4121 = vmatprep.subr.bf16.mxu0 %v3407
    %4122 = vmatpush1.bf16.msra.mxu0 %v3406
    %4123 = vmatprep.subr.bf16.mxu0 %v3415
    %4124 = vmatpush1.bf16.msra.mxu0 %v3414
    %4125 = vmatprep.mubr.bf16.mxu0 %v853
    %4126 = vmatmul.mubr.bf16.gmra.mrb[0].mxu0 %v852
    %v4127 = vpop.f32.mrb[0].mxu0
    %v4128 = vadd.f32 %v4075, %v4127
    %v4129 = vpop.f32.mrb[0].mxu0
    %v4130 = vadd.f32 %v4077, %v4129
    %v4131 = vpop.f32.mrb[0].mxu0
    %v4132 = vadd.f32 %v4079, %v4131
    %v4133 = vpop.f32.mrb[0].mxu0
    %v4134 = vadd.f32 %v4081, %v4133
    %4135 = vmatprep.mubr.bf16.mxu0 %v861
    %4136 = vmatmul.mubr.bf16.gmra.mrb[0].mxu0 %v860
    %v4137 = vpop.f32.mrb[0].mxu0
    %v4138 = vadd.f32 %v4085, %v4137
    %v4139 = vpop.f32.mrb[0].mxu0
    %v4140 = vadd.f32 %v4087, %v4139
    %v4141 = vpop.f32.mrb[0].mxu0
    %v4142 = vadd.f32 %v4089, %v4141
    %v4143 = vpop.f32.mrb[0].mxu0
    %v4144 = vadd.f32 %v4091, %v4143
    %4145 = vdwg.mxu0
    %4146 = vmatprep.subr.bf16.mxu0 %v2913
    %4147 = vmatpush1.bf16.msra.mxu0 %v2912
    %4148 = vmatprep.subr.bf16.mxu0 %v2921
    %4149 = vmatpush1.bf16.msra.mxu0 %v2920
    %4150 = vmatprep.subr.bf16.mxu0 %v2929
    %4151 = vmatpush1.bf16.msra.mxu0 %v2928
    %4152 = vmatprep.subr.bf16.mxu0 %v2937
    %4153 = vmatpush1.bf16.msra.mxu0 %v2936
    %4154 = vmatprep.subr.bf16.mxu0 %v2945
    %4155 = vmatpush1.bf16.msra.mxu0 %v2944
    %4156 = vmatprep.subr.bf16.mxu0 %v2953
    %4157 = vmatpush1.bf16.msra.mxu0 %v2952
    %4158 = vmatprep.subr.bf16.mxu0 %v2961
    %4159 = vmatpush1.bf16.msra.mxu0 %v2960
    %4160 = vmatprep.subr.bf16.mxu0 %v2969
    %4161 = vmatpush1.bf16.msra.mxu0 %v2968
    %4162 = vmatprep.subr.bf16.mxu0 %v2977
    %4163 = vmatpush1.bf16.msra.mxu0 %v2976
    %4164 = vmatprep.subr.bf16.mxu0 %v2985
    %4165 = vmatpush1.bf16.msra.mxu0 %v2984
    %4166 = vmatprep.subr.bf16.mxu0 %v2993
    %4167 = vmatpush1.bf16.msra.mxu0 %v2992
    %4168 = vmatprep.subr.bf16.mxu0 %v3001
    %4169 = vmatpush1.bf16.msra.mxu0 %v3000
    %4170 = vmatprep.subr.bf16.mxu0 %v3009
    %4171 = vmatpush1.bf16.msra.mxu0 %v3008
    %4172 = vmatprep.subr.bf16.mxu0 %v3017
    %4173 = vmatpush1.bf16.msra.mxu0 %v3016
    %4174 = vmatprep.subr.bf16.mxu0 %v3025
    %4175 = vmatpush1.bf16.msra.mxu0 %v3024
    %4176 = vmatprep.subr.bf16.mxu0 %v3033
    %4177 = vmatpush1.bf16.msra.mxu0 %v3032
    %4178 = vmatprep.mubr.bf16.mxu0 %v847
    %4179 = vmatmul.mubr.bf16.gmra.mrb[0].mxu0 %v846
    %v4180 = vpop.f32.mrb[0].mxu0
    %v4181 = vadd.f32 0.0, %v4180
    %v4182 = vpop.f32.mrb[0].mxu0
    %v4183 = vadd.f32 0.0, %v4182
    %v4184 = vpop.f32.mrb[0].mxu0
    %v4185 = vadd.f32 0.0, %v4184
    %v4186 = vpop.f32.mrb[0].mxu0
    %v4187 = vadd.f32 0.0, %v4186
    %4188 = vmatprep.mubr.bf16.mxu0 %v855
    %4189 = vmatmul.mubr.bf16.gmra.mrb[0].mxu0 %v854
    %v4190 = vpop.f32.mrb[0].mxu0
    %v4191 = vadd.f32 0.0, %v4190
    %v4192 = vpop.f32.mrb[0].mxu0
    %v4193 = vadd.f32 0.0, %v4192
    %v4194 = vpop.f32.mrb[0].mxu0
    %v4195 = vadd.f32 0.0, %v4194
    %v4196 = vpop.f32.mrb[0].mxu0
    %v4197 = vadd.f32 0.0, %v4196
    %4198 = vdwg.mxu0
    %4199 = vmatprep.subr.bf16.mxu0 %v3041
    %4200 = vmatpush1.bf16.msra.mxu0 %v3040
    %4201 = vmatprep.subr.bf16.mxu0 %v3049
    %4202 = vmatpush1.bf16.msra.mxu0 %v3048
    %4203 = vmatprep.subr.bf16.mxu0 %v3057
    %4204 = vmatpush1.bf16.msra.mxu0 %v3056
    %4205 = vmatprep.subr.bf16.mxu0 %v3065
    %4206 = vmatpush1.bf16.msra.mxu0 %v3064
    %4207 = vmatprep.subr.bf16.mxu0 %v3073
    %4208 = vmatpush1.bf16.msra.mxu0 %v3072
    %4209 = vmatprep.subr.bf16.mxu0 %v3081
    %4210 = vmatpush1.bf16.msra.mxu0 %v3080
    %4211 = vmatprep.subr.bf16.mxu0 %v3089
    %4212 = vmatpush1.bf16.msra.mxu0 %v3088
    %4213 = vmatprep.subr.bf16.mxu0 %v3097
    %4214 = vmatpush1.bf16.msra.mxu0 %v3096
    %4215 = vmatprep.subr.bf16.mxu0 %v3105
    %4216 = vmatpush1.bf16.msra.mxu0 %v3104
    %4217 = vmatprep.subr.bf16.mxu0 %v3113
    %4218 = vmatpush1.bf16.msra.mxu0 %v3112
    %4219 = vmatprep.subr.bf16.mxu0 %v3121
    %4220 = vmatpush1.bf16.msra.mxu0 %v3120
    %4221 = vmatprep.subr.bf16.mxu0 %v3129
    %4222 = vmatpush1.bf16.msra.mxu0 %v3128
    %4223 = vmatprep.subr.bf16.mxu0 %v3137
    %4224 = vmatpush1.bf16.msra.mxu0 %v3136
    %4225 = vmatprep.subr.bf16.mxu0 %v3145
    %4226 = vmatpush1.bf16.msra.mxu0 %v3144
    %4227 = vmatprep.subr.bf16.mxu0 %v3153
    %4228 = vmatpush1.bf16.msra.mxu0 %v3152
    %4229 = vmatprep.subr.bf16.mxu0 %v3161
    %4230 = vmatpush1.bf16.msra.mxu0 %v3160
    %4231 = vmatprep.mubr.bf16.mxu0 %v849
    %4232 = vmatmul.mubr.bf16.gmra.mrb[0].mxu0 %v848
    %v4233 = vpop.f32.mrb[0].mxu0
    %v4234 = vadd.f32 %v4181, %v4233
    %v4235 = vpop.f32.mrb[0].mxu0
    %v4236 = vadd.f32 %v4183, %v4235
    %v4237 = vpop.f32.mrb[0].mxu0
    %v4238 = vadd.f32 %v4185, %v4237
    %v4239 = vpop.f32.mrb[0].mxu0
    %v4240 = vadd.f32 %v4187, %v4239
    %4241 = vmatprep.mubr.bf16.mxu0 %v857
    %4242 = vmatmul.mubr.bf16.gmra.mrb[0].mxu0 %v856
    %v4243 = vpop.f32.mrb[0].mxu0
    %v4244 = vadd.f32 %v4191, %v4243
    %v4245 = vpop.f32.mrb[0].mxu0
    %v4246 = vadd.f32 %v4193, %v4245
    %v4247 = vpop.f32.mrb[0].mxu0
    %v4248 = vadd.f32 %v4195, %v4247
    %v4249 = vpop.f32.mrb[0].mxu0
    %v4250 = vadd.f32 %v4197, %v4249
    %4251 = vdwg.mxu0
    %4252 = vmatprep.subr.bf16.mxu0 %v3169
    %4253 = vmatpush1.bf16.msra.mxu0 %v3168
    %4254 = vmatprep.subr.bf16.mxu0 %v3177
    %4255 = vmatpush1.bf16.msra.mxu0 %v3176
    %4256 = vmatprep.subr.bf16.mxu0 %v3185
    %4257 = vmatpush1.bf16.msra.mxu0 %v3184
    %4258 = vmatprep.subr.bf16.mxu0 %v3193
    %4259 = vmatpush1.bf16.msra.mxu0 %v3192
    %4260 = vmatprep.subr.bf16.mxu0 %v3201
    %4261 = vmatpush1.bf16.msra.mxu0 %v3200
    %4262 = vmatprep.subr.bf16.mxu0 %v3209
    %4263 = vmatpush1.bf16.msra.mxu0 %v3208
    %4264 = vmatprep.subr.bf16.mxu0 %v3217
    %4265 = vmatpush1.bf16.msra.mxu0 %v3216
    %4266 = vmatprep.subr.bf16.mxu0 %v3225
    %4267 = vmatpush1.bf16.msra.mxu0 %v3224
    %4268 = vmatprep.subr.bf16.mxu0 %v3233
    %4269 = vmatpush1.bf16.msra.mxu0 %v3232
    %4270 = vmatprep.subr.bf16.mxu0 %v3241
    %4271 = vmatpush1.bf16.msra.mxu0 %v3240
    %4272 = vmatprep.subr.bf16.mxu0 %v3249
    %4273 = vmatpush1.bf16.msra.mxu0 %v3248
    %4274 = vmatprep.subr.bf16.mxu0 %v3257
    %4275 = vmatpush1.bf16.msra.mxu0 %v3256
    %4276 = vmatprep.subr.bf16.mxu0 %v3265
    %4277 = vmatpush1.bf16.msra.mxu0 %v3264
    %4278 = vmatprep.subr.bf16.mxu0 %v3273
    %4279 = vmatpush1.bf16.msra.mxu0 %v3272
    %4280 = vmatprep.subr.bf16.mxu0 %v3281
    %4281 = vmatpush1.bf16.msra.mxu0 %v3280
    %4282 = vmatprep.subr.bf16.mxu0 %v3289
    %4283 = vmatpush1.bf16.msra.mxu0 %v3288
    %4284 = vmatprep.mubr.bf16.mxu0 %v851
    %4285 = vmatmul.mubr.bf16.gmra.mrb[0].mxu0 %v850
    %v4286 = vpop.f32.mrb[0].mxu0
    %v4287 = vadd.f32 %v4234, %v4286
    %v4288 = vpop.f32.mrb[0].mxu0
    %v4289 = vadd.f32 %v4236, %v4288
    %v4290 = vpop.f32.mrb[0].mxu0
    %v4291 = vadd.f32 %v4238, %v4290
    %v4292 = vpop.f32.mrb[0].mxu0
    %v4293 = vadd.f32 %v4240, %v4292
    %4294 = vmatprep.mubr.bf16.mxu0 %v859
    %4295 = vmatmul.mubr.bf16.gmra.mrb[0].mxu0 %v858
    %v4296 = vpop.f32.mrb[0].mxu0
    %v4297 = vadd.f32 %v4244, %v4296
    %v4298 = vpop.f32.mrb[0].mxu0
    %v4299 = vadd.f32 %v4246, %v4298
    %v4300 = vpop.f32.mrb[0].mxu0
    %v4301 = vadd.f32 %v4248, %v4300
    %v4302 = vpop.f32.mrb[0].mxu0
    %v4303 = vadd.f32 %v4250, %v4302
    %4304 = vdwg.mxu0
    %4305 = vmatprep.subr.bf16.mxu0 %v3297
    %4306 = vmatpush1.bf16.msra.mxu0 %v3296
    %4307 = vmatprep.subr.bf16.mxu0 %v3305
    %4308 = vmatpush1.bf16.msra.mxu0 %v3304
    %4309 = vmatprep.subr.bf16.mxu0 %v3313
    %4310 = vmatpush1.bf16.msra.mxu0 %v3312
    %4311 = vmatprep.subr.bf16.mxu0 %v3321
    %4312 = vmatpush1.bf16.msra.mxu0 %v3320
    %4313 = vmatprep.subr.bf16.mxu0 %v3329
    %4314 = vmatpush1.bf16.msra.mxu0 %v3328
    %4315 = vmatprep.subr.bf16.mxu0 %v3337
    %4316 = vmatpush1.bf16.msra.mxu0 %v3336
    %4317 = vmatprep.subr.bf16.mxu0 %v3345
    %4318 = vmatpush1.bf16.msra.mxu0 %v3344
    %4319 = vmatprep.subr.bf16.mxu0 %v3353
    %4320 = vmatpush1.bf16.msra.mxu0 %v3352
    %4321 = vmatprep.subr.bf16.mxu0 %v3361
    %4322 = vmatpush1.bf16.msra.mxu0 %v3360
    %4323 = vmatprep.subr.bf16.mxu0 %v3369
    %4324 = vmatpush1.bf16.msra.mxu0 %v3368
    %4325 = vmatprep.subr.bf16.mxu0 %v3377
    %4326 = vmatpush1.bf16.msra.mxu0 %v3376
    %4327 = vmatprep.subr.bf16.mxu0 %v3385
    %4328 = vmatpush1.bf16.msra.mxu0 %v3384
    %4329 = vmatprep.subr.bf16.mxu0 %v3393
    %4330 = vmatpush1.bf16.msra.mxu0 %v3392
    %4331 = vmatprep.subr.bf16.mxu0 %v3401
    %4332 = vmatpush1.bf16.msra.mxu0 %v3400
    %4333 = vmatprep.subr.bf16.mxu0 %v3409
    %4334 = vmatpush1.bf16.msra.mxu0 %v3408
    %4335 = vmatprep.subr.bf16.mxu0 %v3417
    %4336 = vmatpush1.bf16.msra.mxu0 %v3416
    %4337 = vmatprep.mubr.bf16.mxu0 %v853
    %4338 = vmatmul.mubr.bf16.gmra.mrb[0].mxu0 %v852
    %v4339 = vpop.f32.mrb[0].mxu0
    %v4340 = vadd.f32 %v4287, %v4339
    %v4341 = vpop.f32.mrb[0].mxu0
    %v4342 = vadd.f32 %v4289, %v4341
    %v4343 = vpop.f32.mrb[0].mxu0
    %v4344 = vadd.f32 %v4291, %v4343
    %v4345 = vpop.f32.mrb[0].mxu0
    %v4346 = vadd.f32 %v4293, %v4345
    %4347 = vmatprep.mubr.bf16.mxu0 %v861
    %4348 = vmatmul.mubr.bf16.gmra.mrb[0].mxu0 %v860
    %v4349 = vpop.f32.mrb[0].mxu0
    %v4350 = vadd.f32 %v4297, %v4349
    %v4351 = vpop.f32.mrb[0].mxu0
    %v4352 = vadd.f32 %v4299, %v4351
    %v4353 = vpop.f32.mrb[0].mxu0
    %v4354 = vadd.f32 %v4301, %v4353
    %v4355 = vpop.f32.mrb[0].mxu0
    %v4356 = vadd.f32 %v4303, %v4355
    %4357 = vdwg.mxu0
    %4358 = vmatprep.subr.bf16.mxu0 %v2915
    %4359 = vmatpush1.bf16.msra.mxu0 %v2914
    %4360 = vmatprep.subr.bf16.mxu0 %v2923
    %4361 = vmatpush1.bf16.msra.mxu0 %v2922
    %4362 = vmatprep.subr.bf16.mxu0 %v2931
    %4363 = vmatpush1.bf16.msra.mxu0 %v2930
    %4364 = vmatprep.subr.bf16.mxu0 %v2939
    %4365 = vmatpush1.bf16.msra.mxu0 %v2938
    %4366 = vmatprep.subr.bf16.mxu0 %v2947
    %4367 = vmatpush1.bf16.msra.mxu0 %v2946
    %4368 = vmatprep.subr.bf16.mxu0 %v2955
    %4369 = vmatpush1.bf16.msra.mxu0 %v2954
    %4370 = vmatprep.subr.bf16.mxu0 %v2963
    %4371 = vmatpush1.bf16.msra.mxu0 %v2962
    %4372 = vmatprep.subr.bf16.mxu0 %v2971
    %4373 = vmatpush1.bf16.msra.mxu0 %v2970
    %4374 = vmatprep.subr.bf16.mxu0 %v2979
    %4375 = vmatpush1.bf16.msra.mxu0 %v2978
    %4376 = vmatprep.subr.bf16.mxu0 %v2987
    %4377 = vmatpush1.bf16.msra.mxu0 %v2986
    %4378 = vmatprep.subr.bf16.mxu0 %v2995
    %4379 = vmatpush1.bf16.msra.mxu0 %v2994
    %4380 = vmatprep.subr.bf16.mxu0 %v3003
    %4381 = vmatpush1.bf16.msra.mxu0 %v3002
    %4382 = vmatprep.subr.bf16.mxu0 %v3011
    %4383 = vmatpush1.bf16.msra.mxu0 %v3010
    %4384 = vmatprep.subr.bf16.mxu0 %v3019
    %4385 = vmatpush1.bf16.msra.mxu0 %v3018
    %4386 = vmatprep.subr.bf16.mxu0 %v3027
    %4387 = vmatpush1.bf16.msra.mxu0 %v3026
    %4388 = vmatprep.subr.bf16.mxu0 %v3035
    %4389 = vmatpush1.bf16.msra.mxu0 %v3034
    %4390 = vmatprep.mubr.bf16.mxu0 %v847
    %4391 = vmatmul.mubr.bf16.gmra.mrb[0].mxu0 %v846
    %v4392 = vpop.f32.mrb[0].mxu0
    %v4393 = vadd.f32 0.0, %v4392
    %v4394 = vpop.f32.mrb[0].mxu0
    %v4395 = vadd.f32 0.0, %v4394
    %v4396 = vpop.f32.mrb[0].mxu0
    %v4397 = vadd.f32 0.0, %v4396
    %v4398 = vpop.f32.mrb[0].mxu0
    %v4399 = vadd.f32 0.0, %v4398
    %4400 = vmatprep.mubr.bf16.mxu0 %v855
    %4401 = vmatmul.mubr.bf16.gmra.mrb[0].mxu0 %v854
    %v4402 = vpop.f32.mrb[0].mxu0
    %v4403 = vadd.f32 0.0, %v4402
    %v4404 = vpop.f32.mrb[0].mxu0
    %v4405 = vadd.f32 0.0, %v4404
    %v4406 = vpop.f32.mrb[0].mxu0
    %v4407 = vadd.f32 0.0, %v4406
    %v4408 = vpop.f32.mrb[0].mxu0
    %v4409 = vadd.f32 0.0, %v4408
    %4410 = vdwg.mxu0
    %4411 = vmatprep.subr.bf16.mxu0 %v3043
    %4412 = vmatpush1.bf16.msra.mxu0 %v3042
    %4413 = vmatprep.subr.bf16.mxu0 %v3051
    %4414 = vmatpush1.bf16.msra.mxu0 %v3050
    %4415 = vmatprep.subr.bf16.mxu0 %v3059
    %4416 = vmatpush1.bf16.msra.mxu0 %v3058
    %4417 = vmatprep.subr.bf16.mxu0 %v3067
    %4418 = vmatpush1.bf16.msra.mxu0 %v3066
    %4419 = vmatprep.subr.bf16.mxu0 %v3075
    %4420 = vmatpush1.bf16.msra.mxu0 %v3074
    %4421 = vmatprep.subr.bf16.mxu0 %v3083
    %4422 = vmatpush1.bf16.msra.mxu0 %v3082
    %4423 = vmatprep.subr.bf16.mxu0 %v3091
    %4424 = vmatpush1.bf16.msra.mxu0 %v3090
    %4425 = vmatprep.subr.bf16.mxu0 %v3099
    %4426 = vmatpush1.bf16.msra.mxu0 %v3098
    %4427 = vmatprep.subr.bf16.mxu0 %v3107
    %4428 = vmatpush1.bf16.msra.mxu0 %v3106
    %4429 = vmatprep.subr.bf16.mxu0 %v3115
    %4430 = vmatpush1.bf16.msra.mxu0 %v3114
    %4431 = vmatprep.subr.bf16.mxu0 %v3123
    %4432 = vmatpush1.bf16.msra.mxu0 %v3122
    %4433 = vmatprep.subr.bf16.mxu0 %v3131
    %4434 = vmatpush1.bf16.msra.mxu0 %v3130
    %4435 = vmatprep.subr.bf16.mxu0 %v3139
    %4436 = vmatpush1.bf16.msra.mxu0 %v3138
    %4437 = vmatprep.subr.bf16.mxu0 %v3147
    %4438 = vmatpush1.bf16.msra.mxu0 %v3146
    %4439 = vmatprep.subr.bf16.mxu0 %v3155
    %4440 = vmatpush1.bf16.msra.mxu0 %v3154
    %4441 = vmatprep.subr.bf16.mxu0 %v3163
    %4442 = vmatpush1.bf16.msra.mxu0 %v3162
    %4443 = vmatprep.mubr.bf16.mxu0 %v849
    %4444 = vmatmul.mubr.bf16.gmra.mrb[0].mxu0 %v848
    %v4445 = vpop.f32.mrb[0].mxu0
    %v4446 = vadd.f32 %v4393, %v4445
    %v4447 = vpop.f32.mrb[0].mxu0
    %v4448 = vadd.f32 %v4395, %v4447
    %v4449 = vpop.f32.mrb[0].mxu0
    %v4450 = vadd.f32 %v4397, %v4449
    %v4451 = vpop.f32.mrb[0].mxu0
    %v4452 = vadd.f32 %v4399, %v4451
    %4453 = vmatprep.mubr.bf16.mxu0 %v857
    %4454 = vmatmul.mubr.bf16.gmra.mrb[0].mxu0 %v856
    %v4455 = vpop.f32.mrb[0].mxu0
    %v4456 = vadd.f32 %v4403, %v4455
    %v4457 = vpop.f32.mrb[0].mxu0
    %v4458 = vadd.f32 %v4405, %v4457
    %v4459 = vpop.f32.mrb[0].mxu0
    %v4460 = vadd.f32 %v4407, %v4459
    %v4461 = vpop.f32.mrb[0].mxu0
    %v4462 = vadd.f32 %v4409, %v4461
    %4463 = vdwg.mxu0
    %4464 = vmatprep.subr.bf16.mxu0 %v3171
    %4465 = vmatpush1.bf16.msra.mxu0 %v3170
    %4466 = vmatprep.subr.bf16.mxu0 %v3179
    %4467 = vmatpush1.bf16.msra.mxu0 %v3178
    %4468 = vmatprep.subr.bf16.mxu0 %v3187
    %4469 = vmatpush1.bf16.msra.mxu0 %v3186
    %4470 = vmatprep.subr.bf16.mxu0 %v3195
    %4471 = vmatpush1.bf16.msra.mxu0 %v3194
    %4472 = vmatprep.subr.bf16.mxu0 %v3203
    %4473 = vmatpush1.bf16.msra.mxu0 %v3202
    %4474 = vmatprep.subr.bf16.mxu0 %v3211
    %4475 = vmatpush1.bf16.msra.mxu0 %v3210
    %4476 = vmatprep.subr.bf16.mxu0 %v3219
    %4477 = vmatpush1.bf16.msra.mxu0 %v3218
    %4478 = vmatprep.subr.bf16.mxu0 %v3227
    %4479 = vmatpush1.bf16.msra.mxu0 %v3226
    %4480 = vmatprep.subr.bf16.mxu0 %v3235
    %4481 = vmatpush1.bf16.msra.mxu0 %v3234
    %4482 = vmatprep.subr.bf16.mxu0 %v3243
    %4483 = vmatpush1.bf16.msra.mxu0 %v3242
    %4484 = vmatprep.subr.bf16.mxu0 %v3251
    %4485 = vmatpush1.bf16.msra.mxu0 %v3250
    %4486 = vmatprep.subr.bf16.mxu0 %v3259
    %4487 = vmatpush1.bf16.msra.mxu0 %v3258
    %4488 = vmatprep.subr.bf16.mxu0 %v3267
    %4489 = vmatpush1.bf16.msra.mxu0 %v3266
    %4490 = vmatprep.subr.bf16.mxu0 %v3275
    %4491 = vmatpush1.bf16.msra.mxu0 %v3274
    %4492 = vmatprep.subr.bf16.mxu0 %v3283
    %4493 = vmatpush1.bf16.msra.mxu0 %v3282
    %4494 = vmatprep.subr.bf16.mxu0 %v3291
    %4495 = vmatpush1.bf16.msra.mxu0 %v3290
    %4496 = vmatprep.mubr.bf16.mxu0 %v851
    %4497 = vmatmul.mubr.bf16.gmra.mrb[0].mxu0 %v850
    %v4498 = vpop.f32.mrb[0].mxu0
    %v4499 = vadd.f32 %v4446, %v4498
    %v4500 = vpop.f32.mrb[0].mxu0
    %v4501 = vadd.f32 %v4448, %v4500
    %v4502 = vpop.f32.mrb[0].mxu0
    %v4503 = vadd.f32 %v4450, %v4502
    %v4504 = vpop.f32.mrb[0].mxu0
    %v4505 = vadd.f32 %v4452, %v4504
    %4506 = vmatprep.mubr.bf16.mxu0 %v859
    %4507 = vmatmul.mubr.bf16.gmra.mrb[0].mxu0 %v858
    %v4508 = vpop.f32.mrb[0].mxu0
    %v4509 = vadd.f32 %v4456, %v4508
    %v4510 = vpop.f32.mrb[0].mxu0
    %v4511 = vadd.f32 %v4458, %v4510
    %v4512 = vpop.f32.mrb[0].mxu0
    %v4513 = vadd.f32 %v4460, %v4512
    %v4514 = vpop.f32.mrb[0].mxu0
    %v4515 = vadd.f32 %v4462, %v4514
    %4516 = vdwg.mxu0
    %4517 = vmatprep.subr.bf16.mxu0 %v3299
    %4518 = vmatpush1.bf16.msra.mxu0 %v3298
    %4519 = vmatprep.subr.bf16.mxu0 %v3307
    %4520 = vmatpush1.bf16.msra.mxu0 %v3306
    %4521 = vmatprep.subr.bf16.mxu0 %v3315
    %4522 = vmatpush1.bf16.msra.mxu0 %v3314
    %4523 = vmatprep.subr.bf16.mxu0 %v3323
    %4524 = vmatpush1.bf16.msra.mxu0 %v3322
    %4525 = vmatprep.subr.bf16.mxu0 %v3331
    %4526 = vmatpush1.bf16.msra.mxu0 %v3330
    %4527 = vmatprep.subr.bf16.mxu0 %v3339
    %4528 = vmatpush1.bf16.msra.mxu0 %v3338
    %4529 = vmatprep.subr.bf16.mxu0 %v3347
    %4530 = vmatpush1.bf16.msra.mxu0 %v3346
    %4531 = vmatprep.subr.bf16.mxu0 %v3355
    %4532 = vmatpush1.bf16.msra.mxu0 %v3354
    %4533 = vmatprep.subr.bf16.mxu0 %v3363
    %4534 = vmatpush1.bf16.msra.mxu0 %v3362
    %4535 = vmatprep.subr.bf16.mxu0 %v3371
    %4536 = vmatpush1.bf16.msra.mxu0 %v3370
    %4537 = vmatprep.subr.bf16.mxu0 %v3379
    %4538 = vmatpush1.bf16.msra.mxu0 %v3378
    %4539 = vmatprep.subr.bf16.mxu0 %v3387
    %4540 = vmatpush1.bf16.msra.mxu0 %v3386
    %4541 = vmatprep.subr.bf16.mxu0 %v3395
    %4542 = vmatpush1.bf16.msra.mxu0 %v3394
    %4543 = vmatprep.subr.bf16.mxu0 %v3403
    %4544 = vmatpush1.bf16.msra.mxu0 %v3402
    %4545 = vmatprep.subr.bf16.mxu0 %v3411
    %4546 = vmatpush1.bf16.msra.mxu0 %v3410
    %4547 = vmatprep.subr.bf16.mxu0 %v3419
    %4548 = vmatpush1.bf16.msra.mxu0 %v3418
    %4549 = vmatprep.mubr.bf16.mxu0 %v853
    %4550 = vmatmul.mubr.bf16.gmra.mrb[0].mxu0 %v852
    %v4551 = vpop.f32.mrb[0].mxu0
    %v4552 = vadd.f32 %v4499, %v4551
    %v4553 = vpop.f32.mrb[0].mxu0
    %v4554 = vadd.f32 %v4501, %v4553
    %v4555 = vpop.f32.mrb[0].mxu0
    %v4556 = vadd.f32 %v4503, %v4555
    %v4557 = vpop.f32.mrb[0].mxu0
    %v4558 = vadd.f32 %v4505, %v4557
    %4559 = vmatprep.mubr.bf16.mxu0 %v861
    %4560 = vmatmul.mubr.bf16.gmra.mrb[0].mxu0 %v860
    %v4561 = vpop.f32.mrb[0].mxu0
    %v4562 = vadd.f32 %v4509, %v4561
    %v4563 = vpop.f32.mrb[0].mxu0
    %v4564 = vadd.f32 %v4511, %v4563
    %v4565 = vpop.f32.mrb[0].mxu0
    %v4566 = vadd.f32 %v4513, %v4565
    %v4567 = vpop.f32.mrb[0].mxu0
    %v4568 = vadd.f32 %v4515, %v4567
    %4569 = vdwg.mxu0
    %4570 = vmatprep.subr.bf16.mxu0 %v2917
    %4571 = vmatpush1.bf16.msra.mxu0 %v2916
    %4572 = vmatprep.subr.bf16.mxu0 %v2925
    %4573 = vmatpush1.bf16.msra.mxu0 %v2924
    %4574 = vmatprep.subr.bf16.mxu0 %v2933
    %4575 = vmatpush1.bf16.msra.mxu0 %v2932
    %4576 = vmatprep.subr.bf16.mxu0 %v2941
    %4577 = vmatpush1.bf16.msra.mxu0 %v2940
    %4578 = vmatprep.subr.bf16.mxu0 %v2949
    %4579 = vmatpush1.bf16.msra.mxu0 %v2948
    %4580 = vmatprep.subr.bf16.mxu0 %v2957
    %4581 = vmatpush1.bf16.msra.mxu0 %v2956
    %4582 = vmatprep.subr.bf16.mxu0 %v2965
    %4583 = vmatpush1.bf16.msra.mxu0 %v2964
    %4584 = vmatprep.subr.bf16.mxu0 %v2973
    %4585 = vmatpush1.bf16.msra.mxu0 %v2972
    %4586 = vmatprep.subr.bf16.mxu0 %v2981
    %4587 = vmatpush1.bf16.msra.mxu0 %v2980
    %4588 = vmatprep.subr.bf16.mxu0 %v2989
    %4589 = vmatpush1.bf16.msra.mxu0 %v2988
    %4590 = vmatprep.subr.bf16.mxu0 %v2997
    %4591 = vmatpush1.bf16.msra.mxu0 %v2996
    %4592 = vmatprep.subr.bf16.mxu0 %v3005
    %4593 = vmatpush1.bf16.msra.mxu0 %v3004
    %4594 = vmatprep.subr.bf16.mxu0 %v3013
    %4595 = vmatpush1.bf16.msra.mxu0 %v3012
    %4596 = vmatprep.subr.bf16.mxu0 %v3021
    %4597 = vmatpush1.bf16.msra.mxu0 %v3020
    %4598 = vmatprep.subr.bf16.mxu0 %v3029
    %4599 = vmatpush1.bf16.msra.mxu0 %v3028
    %4600 = vmatprep.subr.bf16.mxu0 %v3037
    %4601 = vmatpush1.bf16.msra.mxu0 %v3036
    %4602 = vmatprep.mubr.bf16.mxu0 %v847
    %4603 = vmatmul.mubr.bf16.gmra.mrb[0].mxu0 %v846
    %v4604 = vpop.f32.mrb[0].mxu0
    %v4605 = vadd.f32 0.0, %v4604
    %v4606 = vpop.f32.mrb[0].mxu0
    %v4607 = vadd.f32 0.0, %v4606
    %v4608 = vpop.f32.mrb[0].mxu0
    %v4609 = vadd.f32 0.0, %v4608
    %v4610 = vpop.f32.mrb[0].mxu0
    %v4611 = vadd.f32 0.0, %v4610
    %4612 = vmatprep.mubr.bf16.mxu0 %v855
    %4613 = vmatmul.mubr.bf16.gmra.mrb[0].mxu0 %v854
    %v4614 = vpop.f32.mrb[0].mxu0
    %v4615 = vadd.f32 0.0, %v4614
    %v4616 = vpop.f32.mrb[0].mxu0
    %v4617 = vadd.f32 0.0, %v4616
    %v4618 = vpop.f32.mrb[0].mxu0
    %v4619 = vadd.f32 0.0, %v4618
    %v4620 = vpop.f32.mrb[0].mxu0
    %v4621 = vadd.f32 0.0, %v4620
    %4622 = vdwg.mxu0
    %4623 = vmatprep.subr.bf16.mxu0 %v3045
    %4624 = vmatpush1.bf16.msra.mxu0 %v3044
    %4625 = vmatprep.subr.bf16.mxu0 %v3053
    %4626 = vmatpush1.bf16.msra.mxu0 %v3052
    %4627 = vmatprep.subr.bf16.mxu0 %v3061
    %4628 = vmatpush1.bf16.msra.mxu0 %v3060
    %4629 = vmatprep.subr.bf16.mxu0 %v3069
    %4630 = vmatpush1.bf16.msra.mxu0 %v3068
    %4631 = vmatprep.subr.bf16.mxu0 %v3077
    %4632 = vmatpush1.bf16.msra.mxu0 %v3076
    %4633 = vmatprep.subr.bf16.mxu0 %v3085
    %4634 = vmatpush1.bf16.msra.mxu0 %v3084
    %4635 = vmatprep.subr.bf16.mxu0 %v3093
    %4636 = vmatpush1.bf16.msra.mxu0 %v3092
    %4637 = vmatprep.subr.bf16.mxu0 %v3101
    %4638 = vmatpush1.bf16.msra.mxu0 %v3100
    %4639 = vmatprep.subr.bf16.mxu0 %v3109
    %4640 = vmatpush1.bf16.msra.mxu0 %v3108
    %4641 = vmatprep.subr.bf16.mxu0 %v3117
    %4642 = vmatpush1.bf16.msra.mxu0 %v3116
    %4643 = vmatprep.subr.bf16.mxu0 %v3125
    %4644 = vmatpush1.bf16.msra.mxu0 %v3124
    %4645 = vmatprep.subr.bf16.mxu0 %v3133
    %4646 = vmatpush1.bf16.msra.mxu0 %v3132
    %4647 = vmatprep.subr.bf16.mxu0 %v3141
    %4648 = vmatpush1.bf16.msra.mxu0 %v3140
    %4649 = vmatprep.subr.bf16.mxu0 %v3149
    %4650 = vmatpush1.bf16.msra.mxu0 %v3148
    %4651 = vmatprep.subr.bf16.mxu0 %v3157
    %4652 = vmatpush1.bf16.msra.mxu0 %v3156
    %4653 = vmatprep.subr.bf16.mxu0 %v3165
    %4654 = vmatpush1.bf16.msra.mxu0 %v3164
    %4655 = vmatprep.mubr.bf16.mxu0 %v849
    %4656 = vmatmul.mubr.bf16.gmra.mrb[0].mxu0 %v848
    %v4657 = vpop.f32.mrb[0].mxu0
    %v4658 = vadd.f32 %v4605, %v4657
    %v4659 = vpop.f32.mrb[0].mxu0
    %v4660 = vadd.f32 %v4607, %v4659
    %v4661 = vpop.f32.mrb[0].mxu0
    %v4662 = vadd.f32 %v4609, %v4661
    %v4663 = vpop.f32.mrb[0].mxu0
    %v4664 = vadd.f32 %v4611, %v4663
    %4665 = vmatprep.mubr.bf16.mxu0 %v857
    %4666 = vmatmul.mubr.bf16.gmra.mrb[0].mxu0 %v856
    %v4667 = vpop.f32.mrb[0].mxu0
    %v4668 = vadd.f32 %v4615, %v4667
    %v4669 = vpop.f32.mrb[0].mxu0
    %v4670 = vadd.f32 %v4617, %v4669
    %v4671 = vpop.f32.mrb[0].mxu0
    %v4672 = vadd.f32 %v4619, %v4671
    %v4673 = vpop.f32.mrb[0].mxu0
    %v4674 = vadd.f32 %v4621, %v4673
    %4675 = vdwg.mxu0
    %4676 = vmatprep.subr.bf16.mxu0 %v3173
    %4677 = vmatpush1.bf16.msra.mxu0 %v3172
    %4678 = vmatprep.subr.bf16.mxu0 %v3181
    %4679 = vmatpush1.bf16.msra.mxu0 %v3180
    %4680 = vmatprep.subr.bf16.mxu0 %v3189
    %4681 = vmatpush1.bf16.msra.mxu0 %v3188
    %4682 = vmatprep.subr.bf16.mxu0 %v3197
    %4683 = vmatpush1.bf16.msra.mxu0 %v3196
    %4684 = vmatprep.subr.bf16.mxu0 %v3205
    %4685 = vmatpush1.bf16.msra.mxu0 %v3204
    %4686 = vmatprep.subr.bf16.mxu0 %v3213
    %4687 = vmatpush1.bf16.msra.mxu0 %v3212
    %4688 = vmatprep.subr.bf16.mxu0 %v3221
    %4689 = vmatpush1.bf16.msra.mxu0 %v3220
    %4690 = vmatprep.subr.bf16.mxu0 %v3229
    %4691 = vmatpush1.bf16.msra.mxu0 %v3228
    %4692 = vmatprep.subr.bf16.mxu0 %v3237
    %4693 = vmatpush1.bf16.msra.mxu0 %v3236
    %4694 = vmatprep.subr.bf16.mxu0 %v3245
    %4695 = vmatpush1.bf16.msra.mxu0 %v3244
    %4696 = vmatprep.subr.bf16.mxu0 %v3253
    %4697 = vmatpush1.bf16.msra.mxu0 %v3252
    %4698 = vmatprep.subr.bf16.mxu0 %v3261
    %4699 = vmatpush1.bf16.msra.mxu0 %v3260
    %4700 = vmatprep.subr.bf16.mxu0 %v3269
    %4701 = vmatpush1.bf16.msra.mxu0 %v3268
    %4702 = vmatprep.subr.bf16.mxu0 %v3277
    %4703 = vmatpush1.bf16.msra.mxu0 %v3276
    %4704 = vmatprep.subr.bf16.mxu0 %v3285
    %4705 = vmatpush1.bf16.msra.mxu0 %v3284
    %4706 = vmatprep.subr.bf16.mxu0 %v3293
    %4707 = vmatpush1.bf16.msra.mxu0 %v3292
    %4708 = vmatprep.mubr.bf16.mxu0 %v851
    %4709 = vmatmul.mubr.bf16.gmra.mrb[0].mxu0 %v850
    %v4710 = vpop.f32.mrb[0].mxu0
    %v4711 = vadd.f32 %v4658, %v4710
    %v4712 = vpop.f32.mrb[0].mxu0
    %v4713 = vadd.f32 %v4660, %v4712
    %v4714 = vpop.f32.mrb[0].mxu0
    %v4715 = vadd.f32 %v4662, %v4714
    %v4716 = vpop.f32.mrb[0].mxu0
    %v4717 = vadd.f32 %v4664, %v4716
    %4718 = vmatprep.mubr.bf16.mxu0 %v859
    %4719 = vmatmul.mubr.bf16.gmra.mrb[0].mxu0 %v858
    %v4720 = vpop.f32.mrb[0].mxu0
    %v4721 = vadd.f32 %v4668, %v4720
    %v4722 = vpop.f32.mrb[0].mxu0
    %v4723 = vadd.f32 %v4670, %v4722
    %v4724 = vpop.f32.mrb[0].mxu0
    %v4725 = vadd.f32 %v4672, %v4724
    %v4726 = vpop.f32.mrb[0].mxu0
    %v4727 = vadd.f32 %v4674, %v4726
    %4728 = vdwg.mxu0
    %4729 = vmatprep.subr.bf16.mxu0 %v3301
    %4730 = vmatpush1.bf16.msra.mxu0 %v3300
    %4731 = vmatprep.subr.bf16.mxu0 %v3309
    %4732 = vmatpush1.bf16.msra.mxu0 %v3308
    %4733 = vmatprep.subr.bf16.mxu0 %v3317
    %4734 = vmatpush1.bf16.msra.mxu0 %v3316
    %4735 = vmatprep.subr.bf16.mxu0 %v3325
    %4736 = vmatpush1.bf16.msra.mxu0 %v3324
    %4737 = vmatprep.subr.bf16.mxu0 %v3333
    %4738 = vmatpush1.bf16.msra.mxu0 %v3332
    %4739 = vmatprep.subr.bf16.mxu0 %v3341
    %4740 = vmatpush1.bf16.msra.mxu0 %v3340
    %4741 = vmatprep.subr.bf16.mxu0 %v3349
    %4742 = vmatpush1.bf16.msra.mxu0 %v3348
    %4743 = vmatprep.subr.bf16.mxu0 %v3357
    %4744 = vmatpush1.bf16.msra.mxu0 %v3356
    %4745 = vmatprep.subr.bf16.mxu0 %v3365
    %4746 = vmatpush1.bf16.msra.mxu0 %v3364
    %4747 = vmatprep.subr.bf16.mxu0 %v3373
    %4748 = vmatpush1.bf16.msra.mxu0 %v3372
    %4749 = vmatprep.subr.bf16.mxu0 %v3381
    %4750 = vmatpush1.bf16.msra.mxu0 %v3380
    %4751 = vmatprep.subr.bf16.mxu0 %v3389
    %4752 = vmatpush1.bf16.msra.mxu0 %v3388
    %4753 = vmatprep.subr.bf16.mxu0 %v3397
    %4754 = vmatpush1.bf16.msra.mxu0 %v3396
    %4755 = vmatprep.subr.bf16.mxu0 %v3405
    %4756 = vmatpush1.bf16.msra.mxu0 %v3404
    %4757 = vmatprep.subr.bf16.mxu0 %v3413
    %4758 = vmatpush1.bf16.msra.mxu0 %v3412
    %4759 = vmatprep.subr.bf16.mxu0 %v3421
    %4760 = vmatpush1.bf16.msra.mxu0 %v3420
    %4761 = vmatprep.mubr.bf16.mxu0 %v853
    %4762 = vmatmul.mubr.bf16.gmra.mrb[0].mxu0 %v852
    %v4763 = vpop.f32.mrb[0].mxu0
    %v4764 = vadd.f32 %v4711, %v4763
    %v4765 = vpop.f32.mrb[0].mxu0
    %v4766 = vadd.f32 %v4713, %v4765
    %v4767 = vpop.f32.mrb[0].mxu0
    %v4768 = vadd.f32 %v4715, %v4767
    %v4769 = vpop.f32.mrb[0].mxu0
    %v4770 = vadd.f32 %v4717, %v4769
    %4771 = vmatprep.mubr.bf16.mxu0 %v861
    %4772 = vmatmul.mubr.bf16.gmra.mrb[0].mxu0 %v860
    %v4773 = vpop.f32.mrb[0].mxu0
    %v4774 = vadd.f32 %v4721, %v4773
    %v4775 = vpop.f32.mrb[0].mxu0
    %v4776 = vadd.f32 %v4723, %v4775
    %v4777 = vpop.f32.mrb[0].mxu0
    %v4778 = vadd.f32 %v4725, %v4777
    %v4779 = vpop.f32.mrb[0].mxu0
    %v4780 = vadd.f32 %v4727, %v4779
    %4781 = vdwg.mxu0
    %v4782 = vpack.c.bf16 %v4132, %v4128
    %v4783 = vpack.c.bf16 %v4134, %v4130
    %v4784 = vpack.c.bf16 %v4344, %v4340
    %v4785 = vpack.c.bf16 %v4346, %v4342
    %v4786 = vpack.c.bf16 %v4556, %v4552
    %v4787 = vpack.c.bf16 %v4558, %v4554
    %v4788 = vpack.c.bf16 %v4768, %v4764
    %v4789 = vpack.c.bf16 %v4770, %v4766
    %v4790 = vpack.c.bf16 %v4142, %v4138
    %v4791 = vpack.c.bf16 %v4144, %v4140
    %v4792 = vpack.c.bf16 %v4354, %v4350
    %v4793 = vpack.c.bf16 %v4356, %v4352
    %v4794 = vpack.c.bf16 %v4566, %v4562
    %v4795 = vpack.c.bf16 %v4568, %v4564
    %v4796 = vpack.c.bf16 %v4778, %v4774
    %v4797 = vpack.c.bf16 %v4780, %v4776
    %v4798 = vld [vmem:[#allocation11] sm:$0xff]
    %v4800 = vcombine.high %v4798, %v4798
    %v4802 = vunpack.c.l.s4 1966171168
    %v4803 = vunpack.c.0.s8 %v4802
    %v4804 = vlaneseq
    %v4805 = vshrl.u32 %v4804, 7
    %v4806 = vsub.s32 %v4803, %v4805
    %v4807 = vrot.slane %v4798, %v4806
    %v4809 = vunpack.c.l.s4 1966171168
    %v4810 = vunpack.c.0.s8 %v4809
    %v4811 = vlaneseq
    %v4812 = vshrl.u32 %v4811, 7
    %v4813 = vsub.s32 %v4810, %v4812
    %v4814 = vrot.slane %v4800, %v4813
    %v4815 = vcombine.high %v4807, %v4807
    %v4816 = vcombine.high %v4814, %v4814
    %v4818 = vunpack.c.l.s4 1966171168
    %v4819 = vunpack.c.0.s8 %v4818
    %v4820 = vlaneseq
    %v4821 = vshrl.u32 %v4820, 7
    %v4822 = vsub.s32 %v4819, %v4821
    %v4823 = vrot.slane %v4807, %v4822
    %v4825 = vunpack.c.l.s4 1966171168
    %v4826 = vunpack.c.0.s8 %v4825
    %v4827 = vlaneseq
    %v4828 = vshrl.u32 %v4827, 7
    %v4829 = vsub.s32 %v4826, %v4828
    %v4830 = vrot.slane %v4814, %v4829
    %v4832 = vunpack.c.l.s4 1966171168
    %v4833 = vunpack.c.0.s8 %v4832
    %v4834 = vlaneseq
    %v4835 = vshrl.u32 %v4834, 7
    %v4836 = vsub.s32 %v4833, %v4835
    %v4837 = vrot.slane %v4815, %v4836
    %v4839 = vunpack.c.l.s4 1966171168
    %v4840 = vunpack.c.0.s8 %v4839
    %v4841 = vlaneseq
    %v4842 = vshrl.u32 %v4841, 7
    %v4843 = vsub.s32 %v4840, %v4842
    %v4844 = vrot.slane %v4816, %v4843
    %v4845 = vcombine.high %v4823, %v4823
    %v4846 = vcombine.high %v4830, %v4830
    %v4847 = vcombine.high %v4837, %v4837
    %v4848 = vcombine.high %v4844, %v4844
    %v4850 = vpack.i.b16 %v4823, %v4823
    %v4852 = vlaneseq
    %v4853 = vshrl.u32 %v4852, 7
    %v4854 = vsub.s32 0, %v4853
    %v4855 = vrot.slane %v4850, %v4854
    %v4857 = vpack.i.b16 %v4837, %v4837
    %v4859 = vlaneseq
    %v4860 = vshrl.u32 %v4859, 7
    %v4861 = vsub.s32 0, %v4860
    %v4862 = vrot.slane %v4857, %v4861
    %v4864 = vpack.i.b16 %v4845, %v4845
    %v4866 = vlaneseq
    %v4867 = vshrl.u32 %v4866, 7
    %v4868 = vsub.s32 0, %v4867
    %v4869 = vrot.slane %v4864, %v4868
    %v4871 = vpack.i.b16 %v4847, %v4847
    %v4873 = vlaneseq
    %v4874 = vshrl.u32 %v4873, 7
    %v4875 = vsub.s32 0, %v4874
    %v4876 = vrot.slane %v4871, %v4875
    %v4878 = vpack.i.b16 %v4830, %v4830
    %v4880 = vlaneseq
    %v4881 = vshrl.u32 %v4880, 7
    %v4882 = vsub.s32 0, %v4881
    %v4883 = vrot.slane %v4878, %v4882
    %v4885 = vpack.i.b16 %v4844, %v4844
    %v4887 = vlaneseq
    %v4888 = vshrl.u32 %v4887, 7
    %v4889 = vsub.s32 0, %v4888
    %v4890 = vrot.slane %v4885, %v4889
    %v4892 = vpack.i.b16 %v4846, %v4846
    %v4894 = vlaneseq
    %v4895 = vshrl.u32 %v4894, 7
    %v4896 = vsub.s32 0, %v4895
    %v4897 = vrot.slane %v4892, %v4896
    %v4899 = vpack.i.b16 %v4848, %v4848
    %v4901 = vlaneseq
    %v4902 = vshrl.u32 %v4901, 7
    %v4903 = vsub.s32 0, %v4902
    %v4904 = vrot.slane %v4899, %v4903
    %v4905 = vadd.bf16 %v4782, %v4855
    %v4906 = vadd.bf16 %v4783, %v4862
    %v4907 = vadd.bf16 %v4784, %v4869
    %v4908 = vadd.bf16 %v4785, %v4876
    %v4909 = vadd.bf16 %v4786, %v4883
    %v4910 = vadd.bf16 %v4787, %v4890
    %v4911 = vadd.bf16 %v4788, %v4897
    %v4912 = vadd.bf16 %v4789, %v4904
    %v4913 = vadd.bf16 %v4790, %v4855
    %v4914 = vadd.bf16 %v4791, %v4862
    %v4915 = vadd.bf16 %v4792, %v4869
    %v4916 = vadd.bf16 %v4793, %v4876
    %v4917 = vadd.bf16 %v4794, %v4883
    %v4918 = vadd.bf16 %v4795, %v4890
    %v4919 = vadd.bf16 %v4796, %v4897
    %v4920 = vadd.bf16 %v4797, %v4904
    %v4921 = vmax.bf16 %v4905, 0
    %v4922 = vmax.bf16 %v4906, 0
    %v4923 = vmax.bf16 %v4907, 0
    %v4924 = vmax.bf16 %v4908, 0
    %v4925 = vmax.bf16 %v4909, 0
    %v4926 = vmax.bf16 %v4910, 0
    %v4927 = vmax.bf16 %v4911, 0
    %v4928 = vmax.bf16 %v4912, 0
    %v4929 = vmax.bf16 %v4913, 0
    %v4930 = vmax.bf16 %v4914, 0
    %v4931 = vmax.bf16 %v4915, 0
    %v4932 = vmax.bf16 %v4916, 0
    %v4933 = vmax.bf16 %v4917, 0
    %v4934 = vmax.bf16 %v4918, 0
    %v4935 = vmax.bf16 %v4919, 0
    %v4936 = vmax.bf16 %v4920, 0
    %v4937 = vld [vmem:[#allocation12] sm:$0xff]
    %s4938 = sld [smem:[#allocation2]]
    %v4939 = vstv %s4938
    %v4941 = vcombine.high %v4937, %v4937
    %v4943 = vunpack.c.l.s4 1966171168
    %v4944 = vunpack.c.0.s8 %v4943
    %v4945 = vlaneseq
    %v4946 = vshrl.u32 %v4945, 7
    %v4947 = vsub.s32 %v4944, %v4946
    %v4948 = vrot.slane %v4937, %v4947
    %v4950 = vunpack.c.l.s4 1966171168
    %v4951 = vunpack.c.0.s8 %v4950
    %v4952 = vlaneseq
    %v4953 = vshrl.u32 %v4952, 7
    %v4954 = vsub.s32 %v4951, %v4953
    %v4955 = vrot.slane %v4941, %v4954
    %v4956 = vcombine.high %v4948, %v4948
    %v4957 = vcombine.high %v4955, %v4955
    %v4959 = vunpack.c.l.s4 1966171168
    %v4960 = vunpack.c.0.s8 %v4959
    %v4961 = vlaneseq
    %v4962 = vshrl.u32 %v4961, 7
    %v4963 = vsub.s32 %v4960, %v4962
    %v4964 = vrot.slane %v4948, %v4963
    %v4966 = vunpack.c.l.s4 1966171168
    %v4967 = vunpack.c.0.s8 %v4966
    %v4968 = vlaneseq
    %v4969 = vshrl.u32 %v4968, 7
    %v4970 = vsub.s32 %v4967, %v4969
    %v4971 = vrot.slane %v4955, %v4970
    %v4973 = vunpack.c.l.s4 1966171168
    %v4974 = vunpack.c.0.s8 %v4973
    %v4975 = vlaneseq
    %v4976 = vshrl.u32 %v4975, 7
    %v4977 = vsub.s32 %v4974, %v4976
    %v4978 = vrot.slane %v4956, %v4977
    %v4980 = vunpack.c.l.s4 1966171168
    %v4981 = vunpack.c.0.s8 %v4980
    %v4982 = vlaneseq
    %v4983 = vshrl.u32 %v4982, 7
    %v4984 = vsub.s32 %v4981, %v4983
    %v4985 = vrot.slane %v4957, %v4984
    %v4986 = vcombine.high %v4964, %v4964
    %v4987 = vcombine.high %v4971, %v4971
    %v4988 = vcombine.high %v4978, %v4978
    %v4989 = vcombine.high %v4985, %v4985
    %4998 = vmatprep.subr.bf16.mxu0 %v4922
    %4999 = vmatpush1.bf16.xpose.msra.mxu0 %v4921
    %5000 = vmatprep.subr.bf16.mxu0 %v4930
    %5001 = vmatpush1.bf16.xpose.msra.mxu0 %v4929
    %5002 = vmatprep.subr.bf16.mxu0 0
    %5003 = vmatpush1.bf16.xpose.msra.mxu0 0
    %5004 = vmatprep.subr.bf16.mxu0 0
    %5005 = vmatpush1.bf16.xpose.msra.mxu0 0
    %5006 = vmatprep.subr.bf16.mxu0 0
    %5007 = vmatpush1.bf16.xpose.msra.mxu0 0
    %5008 = vmatprep.subr.bf16.mxu0 0
    %5009 = vmatpush1.bf16.xpose.msra.mxu0 0
    %5010 = vmatprep.subr.bf16.mxu0 0
    %5011 = vmatpush1.bf16.xpose.msra.mxu0 0
    %5012 = vmatprep.subr.bf16.mxu0 0
    %5013 = vmatpush1.bf16.xpose.msra.mxu0 0
    %5014 = vmatprep.subr.bf16.mxu0 0
    %5015 = vmatpush1.bf16.xpose.msra.mxu0 0
    %5016 = vmatprep.subr.bf16.mxu0 0
    %5017 = vmatpush1.bf16.xpose.msra.mxu0 0
    %5018 = vmatprep.subr.bf16.mxu0 0
    %5019 = vmatpush1.bf16.xpose.msra.mxu0 0
    %5020 = vmatprep.subr.bf16.mxu0 0
    %5021 = vmatpush1.bf16.xpose.msra.mxu0 0
    %5022 = vmatprep.subr.bf16.mxu0 0
    %5023 = vmatpush1.bf16.xpose.msra.mxu0 0
    %5024 = vmatprep.subr.bf16.mxu0 0
    %5025 = vmatpush1.bf16.xpose.msra.mxu0 0
    %5026 = vmatprep.subr.bf16.mxu0 0
    %5027 = vmatpush1.bf16.xpose.msra.mxu0 0
    %5028 = vmatprep.subr.bf16.mxu0 0
    %5029 = vmatpush1.bf16.xpose.msra.mxu0 0
    %5030 = vmatprep.mubr.bf16.mxu0 %v4978
    %5031 = vmatmul.mubr.bf16.gmra.mrb[0].mxu0 %v4964
    %v5032 = vpop.f32.mrb[0].mxu0
    %v5033 = vadd.f32 %v4939, %v5032
    %v5034 = vpop.f32.mrb[0].mxu0
    %v5035 = vpop.f32.mrb[0].mxu0
    %v5036 = vpop.f32.mrb[0].mxu0
    %5037 = vdwg.mxu0
    %5038 = vmatprep.subr.bf16.mxu0 %v4924
    %5039 = vmatpush1.bf16.xpose.msra.mxu0 %v4923
    %5040 = vmatprep.subr.bf16.mxu0 %v4932
    %5041 = vmatpush1.bf16.xpose.msra.mxu0 %v4931
    %5042 = vmatprep.subr.bf16.mxu0 0
    %5043 = vmatpush1.bf16.xpose.msra.mxu0 0
    %5044 = vmatprep.subr.bf16.mxu0 0
    %5045 = vmatpush1.bf16.xpose.msra.mxu0 0
    %5046 = vmatprep.subr.bf16.mxu0 0
    %5047 = vmatpush1.bf16.xpose.msra.mxu0 0
    %5048 = vmatprep.subr.bf16.mxu0 0
    %5049 = vmatpush1.bf16.xpose.msra.mxu0 0
    %5050 = vmatprep.subr.bf16.mxu0 0
    %5051 = vmatpush1.bf16.xpose.msra.mxu0 0
    %5052 = vmatprep.subr.bf16.mxu0 0
    %5053 = vmatpush1.bf16.xpose.msra.mxu0 0
    %5054 = vmatprep.subr.bf16.mxu0 0
    %5055 = vmatpush1.bf16.xpose.msra.mxu0 0
    %5056 = vmatprep.subr.bf16.mxu0 0
    %5057 = vmatpush1.bf16.xpose.msra.mxu0 0
    %5058 = vmatprep.subr.bf16.mxu0 0
    %5059 = vmatpush1.bf16.xpose.msra.mxu0 0
    %5060 = vmatprep.subr.bf16.mxu0 0
    %5061 = vmatpush1.bf16.xpose.msra.mxu0 0
    %5062 = vmatprep.subr.bf16.mxu0 0
    %5063 = vmatpush1.bf16.xpose.msra.mxu0 0
    %5064 = vmatprep.subr.bf16.mxu0 0
    %5065 = vmatpush1.bf16.xpose.msra.mxu0 0
    %5066 = vmatprep.subr.bf16.mxu0 0
    %5067 = vmatpush1.bf16.xpose.msra.mxu0 0
    %5068 = vmatprep.subr.bf16.mxu0 0
    %5069 = vmatpush1.bf16.xpose.msra.mxu0 0
    %5070 = vmatprep.mubr.bf16.mxu0 %v4988
    %5071 = vmatmul.mubr.bf16.gmra.mrb[0].mxu0 %v4986
    %v5072 = vpop.f32.mrb[0].mxu0
    %v5073 = vadd.f32 %v5033, %v5072
    %v5074 = vpop.f32.mrb[0].mxu0
    %v5075 = vpop.f32.mrb[0].mxu0
    %v5076 = vpop.f32.mrb[0].mxu0
    %5077 = vdwg.mxu0
    %5078 = vmatprep.subr.bf16.mxu0 %v4926
    %5079 = vmatpush1.bf16.xpose.msra.mxu0 %v4925
    %5080 = vmatprep.subr.bf16.mxu0 %v4934
    %5081 = vmatpush1.bf16.xpose.msra.mxu0 %v4933
    %5082 = vmatprep.subr.bf16.mxu0 0
    %5083 = vmatpush1.bf16.xpose.msra.mxu0 0
    %5084 = vmatprep.subr.bf16.mxu0 0
    %5085 = vmatpush1.bf16.xpose.msra.mxu0 0
    %5086 = vmatprep.subr.bf16.mxu0 0
    %5087 = vmatpush1.bf16.xpose.msra.mxu0 0
    %5088 = vmatprep.subr.bf16.mxu0 0
    %5089 = vmatpush1.bf16.xpose.msra.mxu0 0
    %5090 = vmatprep.subr.bf16.mxu0 0
    %5091 = vmatpush1.bf16.xpose.msra.mxu0 0
    %5092 = vmatprep.subr.bf16.mxu0 0
    %5093 = vmatpush1.bf16.xpose.msra.mxu0 0
    %5094 = vmatprep.subr.bf16.mxu0 0
    %5095 = vmatpush1.bf16.xpose.msra.mxu0 0
    %5096 = vmatprep.subr.bf16.mxu0 0
    %5097 = vmatpush1.bf16.xpose.msra.mxu0 0
    %5098 = vmatprep.subr.bf16.mxu0 0
    %5099 = vmatpush1.bf16.xpose.msra.mxu0 0
    %5100 = vmatprep.subr.bf16.mxu0 0
    %5101 = vmatpush1.bf16.xpose.msra.mxu0 0
    %5102 = vmatprep.subr.bf16.mxu0 0
    %5103 = vmatpush1.bf16.xpose.msra.mxu0 0
    %5104 = vmatprep.subr.bf16.mxu0 0
    %5105 = vmatpush1.bf16.xpose.msra.mxu0 0
    %5106 = vmatprep.subr.bf16.mxu0 0
    %5107 = vmatpush1.bf16.xpose.msra.mxu0 0
    %5108 = vmatprep.subr.bf16.mxu0 0
    %5109 = vmatpush1.bf16.xpose.msra.mxu0 0
    %5110 = vmatprep.mubr.bf16.mxu0 %v4985
    %5111 = vmatmul.mubr.bf16.gmra.mrb[0].mxu0 %v4971
    %v5112 = vpop.f32.mrb[0].mxu0
    %v5113 = vadd.f32 %v5073, %v5112
    %v5114 = vpop.f32.mrb[0].mxu0
    %v5115 = vpop.f32.mrb[0].mxu0
    %v5116 = vpop.f32.mrb[0].mxu0
    %5117 = vdwg.mxu0
    %5118 = vmatprep.subr.bf16.mxu0 %v4928
    %5119 = vmatpush1.bf16.xpose.msra.mxu0 %v4927
    %5120 = vmatprep.subr.bf16.mxu0 %v4936
    %5121 = vmatpush1.bf16.xpose.msra.mxu0 %v4935
    %5122 = vmatprep.subr.bf16.mxu0 0
    %5123 = vmatpush1.bf16.xpose.msra.mxu0 0
    %5124 = vmatprep.subr.bf16.mxu0 0
    %5125 = vmatpush1.bf16.xpose.msra.mxu0 0
    %5126 = vmatprep.subr.bf16.mxu0 0
    %5127 = vmatpush1.bf16.xpose.msra.mxu0 0
    %5128 = vmatprep.subr.bf16.mxu0 0
    %5129 = vmatpush1.bf16.xpose.msra.mxu0 0
    %5130 = vmatprep.subr.bf16.mxu0 0
    %5131 = vmatpush1.bf16.xpose.msra.mxu0 0
    %5132 = vmatprep.subr.bf16.mxu0 0
    %5133 = vmatpush1.bf16.xpose.msra.mxu0 0
    %5134 = vmatprep.subr.bf16.mxu0 0
    %5135 = vmatpush1.bf16.xpose.msra.mxu0 0
    %5136 = vmatprep.subr.bf16.mxu0 0
    %5137 = vmatpush1.bf16.xpose.msra.mxu0 0
    %5138 = vmatprep.subr.bf16.mxu0 0
    %5139 = vmatpush1.bf16.xpose.msra.mxu0 0
    %5140 = vmatprep.subr.bf16.mxu0 0
    %5141 = vmatpush1.bf16.xpose.msra.mxu0 0
    %5142 = vmatprep.subr.bf16.mxu0 0
    %5143 = vmatpush1.bf16.xpose.msra.mxu0 0
    %5144 = vmatprep.subr.bf16.mxu0 0
    %5145 = vmatpush1.bf16.xpose.msra.mxu0 0
    %5146 = vmatprep.subr.bf16.mxu0 0
    %5147 = vmatpush1.bf16.xpose.msra.mxu0 0
    %5148 = vmatprep.subr.bf16.mxu0 0
    %5149 = vmatpush1.bf16.xpose.msra.mxu0 0
    %5150 = vmatprep.mubr.bf16.mxu0 %v4989
    %5151 = vmatmul.mubr.bf16.gmra.mrb[0].mxu0 %v4987
    %v5152 = vpop.f32.mrb[0].mxu0
    %v5153 = vadd.f32 %v5113, %v5152
    %v5154 = vpop.f32.mrb[0].mxu0
    %v5155 = vpop.f32.mrb[0].mxu0
    %v5156 = vpop.f32.mrb[0].mxu0
    %5157 = vdwg.mxu0
    %vm5158 = vcmask 253952
    %5159 = vst.msk [vmem:[#allocation14] sm:$0x1] %vm5158, %v5153
    // Predicated region
    $region54: #{tpu_custom_call.1} parent=1 // pred_check
      _
    $region55: #{tpu_custom_call.1} parent=1 // pred_check_branch
      %5161 = sbr.rel (0) target = $region57
    $region56: #{tpu_custom_call.1} parent=1 // pred_region
      %s5163 = ssub.s32 16, 16
      %5164 = vsyncadd [#allocation5], %s5163
      %s5166 = sshll.u32 [#allocation14], 4
      %s5167 = int_to_ptr.vmem [resolvable:$true] %s5166
      %5169 = dma.vmem_to_hbm [thread:$0]  %s5167, 16, %s7, [#allocation5]
    $region57: #{tpu_custom_call.1} parent=1 // pred_fallthru
      _
    // Predicated region
    $region58: #{tpu_custom_call.1} parent=1 // pred_check
      _
    $region59: #{tpu_custom_call.1} parent=1 // pred_check_branch
      %5171 = sbr.rel (0) target = $region61
    $region60: #{tpu_custom_call.1} parent=1 // pred_region
      %5172 = dma.done [#allocation5], 16
    $region61: #{tpu_custom_call.1} parent=1 // pred_fallthru
      _
    %5173 = vsyncpa [#allocation4], 1
    %5174 = vsyncpa [#allocation7], 1
    %5175 = vsyncpa [#allocation10], 1
    %5176 = vsyncpa [#allocation13], 1
    %5177 = vsyncpa [#allocation5], 1

</llo_original>
